<compile_context>
chip_gen: v7x
topology: tpu7x:2x2x1
jax: 0.10.0
libtpu: 0.0.40
codegen_flags: <defaults>
</compile_context>

<pallas_src>
import jax
import jax.numpy as jnp
from jax.experimental import pallas as pl
from jax.experimental.pallas import tpu as pltpu


def _causal_kernel(x_ref, w1a_t_ref, w1b_t_ref, b1_ref, w2_ref, b2_ref, out_ref):
    """One grid step scores all (i, j) pairs for a block of Bt batches.

    x_ref     : (Bt, N, N) structure block (VMEM)
    w1a_t_ref : (N, H)     first-layer weights acting on row_i (pre-transposed)
    w1b_t_ref : (N, H)     first-layer weights acting on row_j (pre-transposed)
    b1_ref    : (1, H)     first-layer bias
    w2_ref    : (1, H)     second-layer weights
    b2_ref    : (1,)       second-layer bias (SMEM scalar)
    out_ref   : (Bt, N, N) causal scores
    """
    Bt, N, _ = x_ref.shape

    x3 = x_ref[...]                                        # (Bt, N, N)
    # Leading-dim merge only (N % 8 == 0 keeps vreg grouping unchanged):
    # one fused matmul operand instead of Bt tiny per-batch matmuls.
    x2 = x3.reshape(Bt * N, N)                             # (Bt*N, N)

    # One MXU matmul per weight half; weights arrive pre-transposed, so no
    # in-kernel transpose.  f32 accumulation.
    a = jnp.dot(x2, w1a_t_ref[...], preferred_element_type=jnp.float32)  # (Bt*N, H)
    b = jnp.dot(x2, w1b_t_ref[...], preferred_element_type=jnp.float32)  # (Bt*N, H)
    a = a + b1_ref[...]                                    # fold bias once (small)

    H = a.shape[-1]
    # Split the sublane axis back into (batch, node); free since N % 8 == 0.
    a3 = a.reshape(Bt, N, H)                               # rows indexed by (b, i)
    b3 = b.reshape(Bt, N, H)                               # rows indexed by (b, j)

    # hidden[b, i, j, :] = relu(W1a @ x_i + W1b @ x_j + b1)
    # (a3 broadcasts along the sublane (j) axis, b3 along a leading axis —
    # both cheap; the add + relu + weighted reduce dominate the step.)
    hidden = jnp.maximum(a3[:, :, None, :] + b3[:, None, :, :], 0.0)     # (Bt,N,N,H)

    # Weighted H-reduction + bias + sigmoid (EUP).
    w2 = w2_ref[...]                                       # (1, H)
    logits = jnp.sum(hidden * w2, axis=-1) + b2_ref[0]     # (Bt, N, N)
    score = jax.nn.sigmoid(logits)

    # nx.from_numpy_array only creates edges for nonzero entries.
    out_ref[...] = jnp.where(x3 != 0.0, score, 0.0).astype(out_ref.dtype)


def _pick_batch_tile(B, N, H, budget_bytes=6 << 20):
    """Largest batch block Bt whose lane-padded (Bt,N,N,H) f32 hidden fits budget.

    Bigger Bt fills the MXU (Bt*N rows) and amortizes per-grid-step overhead,
    but the live hidden intermediate occupies Bt*N*N*ceil(H/128)*128*4 bytes in
    VMEM (H sits in the lane axis and pads to a full 128-lane vreg row), so it
    is capped well below scoped VMEM on every chip generation, leaving room for
    the double-buffered input/output blocks and elementwise temporaries.
    """
    lane_padded_h = -(-H // 128) * 128
    per_batch = N * N * lane_padded_h * 4
    return max(1, min(B, budget_bytes // per_batch))


def causal_discovery_pallas(structure, w1, b1, w2, b2):
    """structure: (B, N, N) f32, N == hidden_dim.
    w1: (H, 2H), b1: (H,), w2: (1, H), b2: (1,)  (PyTorch Linear layout)."""
    B, N, N2 = structure.shape
    assert N == N2
    H = w1.shape[0]
    assert w1.shape == (H, 2 * N) and H == N, "hidden_dim must equal N"
    assert N % 8 == 0, "N must be a multiple of 8 (sublane tiling)"

    structure = structure.astype(jnp.float32)
    # Pre-transpose the two halves of W1 in XLA so the kernel never transposes.
    w1a_t = jnp.asarray(w1[:, :N].T, dtype=jnp.float32)    # (N, H), acts on row_i
    w1b_t = jnp.asarray(w1[:, N:].T, dtype=jnp.float32)    # (N, H), acts on row_j
    b1_2d = b1.reshape(1, H).astype(jnp.float32)
    w2_2d = w2.reshape(1, H).astype(jnp.float32)
    b2_1d = b2.reshape(1).astype(jnp.float32)              # SMEM scalar

    Bt = _pick_batch_tile(B, N, H)
    num_steps = pl.cdiv(B, Bt)
    b_pad = num_steps * Bt
    # Pad the batch axis so any B works with the chosen Bt; padded rows are all
    # zero, so the nonzero-edge mask zeroes their outputs and they are sliced
    # away below.
    x = structure if b_pad == B else jnp.pad(
        structure, ((0, b_pad - B), (0, 0), (0, 0)))

    out = pl.pallas_call(
        _causal_kernel,
        out_shape=jax.ShapeDtypeStruct((b_pad, N, N), structure.dtype),
        grid_spec=pltpu.PrefetchScalarGridSpec(
            num_scalar_prefetch=0,
            grid=(num_steps,),
            in_specs=[
                pl.BlockSpec((Bt, N, N), lambda g: (g, 0, 0)),       # structure
                pl.BlockSpec((N, H), lambda g: (0, 0)),              # W1a^T (resident)
                pl.BlockSpec((N, H), lambda g: (0, 0)),              # W1b^T (resident)
                pl.BlockSpec((1, H), lambda g: (0, 0)),              # b1
                pl.BlockSpec((1, H), lambda g: (0, 0)),              # w2
                pl.BlockSpec(memory_space=pltpu.MemorySpace.SMEM),   # b2 scalar
            ],
            out_specs=pl.BlockSpec((Bt, N, N), lambda g: (g, 0, 0)),
        ),
        compiler_params=pltpu.CompilerParams(
            dimension_semantics=("parallel",),   # batch blocks are independent
            vmem_limit_bytes=32 * 1024 * 1024,
        ),
    )(x, w1a_t, w1b_t, b1_2d, w2_2d, b2_1d)

    return out if b_pad == B else out[:B]


def _reference(structure, w1, b1, w2, b2):
    """Pure-JAX reference of the same semantics, for a correctness check."""
    N = structure.shape[1]
    w1a, w1b = w1[:, :N], w1[:, N:]
    a = structure @ w1a.T                                  # (B, N, H)
    b = structure @ w1b.T                                  # (B, N, H)
    hidden = jax.nn.relu(a[:, :, None, :] + b[:, None, :, :] + b1)
    logits = jnp.einsum("bijh,h->bij", hidden, w2[0]) + b2[0]
    score = jax.nn.sigmoid(logits)
    return jnp.where(structure != 0.0, score, 0.0)


if __name__ == "__main__":
    hidden_dim = 32                      # N == hidden_dim
    B, N = 2, hidden_dim

    key = jax.random.PRNGKey(0)
    k_x, k_w1, k_b1, k_w2, k_b2 = jax.random.split(key, 5)

    # Sparse-ish adjacency structure so the nonzero-edge mask is exercised.
    u = jax.random.uniform(k_x, (B, N, N), dtype=jnp.float32)
    structure = jnp.where(u > 0.5, u, 0.0)

    # Deterministic PyTorch-style Linear init: U(-1/sqrt(fan_in), 1/sqrt(fan_in)).
    lim1 = 1.0 / jnp.sqrt(2.0 * hidden_dim)
    lim2 = 1.0 / jnp.sqrt(1.0 * hidden_dim)
    w1 = jax.random.uniform(k_w1, (hidden_dim, 2 * hidden_dim),
                            minval=-lim1, maxval=lim1, dtype=jnp.float32)
    b1 = jax.random.uniform(k_b1, (hidden_dim,),
                            minval=-lim1, maxval=lim1, dtype=jnp.float32)
    w2 = jax.random.uniform(k_w2, (1, hidden_dim),
                            minval=-lim2, maxval=lim2, dtype=jnp.float32)
    b2 = jax.random.uniform(k_b2, (1,),
                            minval=-lim2, maxval=lim2, dtype=jnp.float32)

    out = causal_discovery_pallas(structure, w1, b1, w2, b2)
    out = jax.block_until_ready(out)

    ref = _reference(structure, w1, b1, w2, b2)
    assert out.shape == (B, N, N)
    assert jnp.max(jnp.abs(out - ref)) < 1e-5, "mismatch vs JAX reference"

    print("KERNEL_OK")
</pallas_src>

<mosaic_0001>
module attributes {stable_mosaic.version = 11 : i64} {
  func.func @_causal_kernel(%arg0: i32, %arg1: memref<2x32x32xf32, #tpu.memory_space<vmem>>, %arg2: memref<32x32xf32, #tpu.memory_space<vmem>>, %arg3: memref<32x32xf32, #tpu.memory_space<vmem>>, %arg4: memref<1x32xf32, #tpu.memory_space<vmem>>, %arg5: memref<1x32xf32, #tpu.memory_space<vmem>>, %arg6: memref<1xf32, #tpu.memory_space<smem>>, %arg7: memref<2x32x32xf32, #tpu.memory_space<vmem>>) attributes {dimension_semantics = [#tpu.dimension_semantics<parallel>], iteration_bounds = array<i64: 1>, scalar_prefetch = 0 : i64, scratch_operands = 0 : i64, tpu.core_type = #tpu.core_type<tc>, window_params = [{transform_indices = @transform_0, window_bounds = array<i64: 2, 32, 32>}, {pipeline_mode = #tpu.pipeline_mode<synchronous>, transform_indices = @transform_1, window_bounds = array<i64: 32, 32>}, {pipeline_mode = #tpu.pipeline_mode<synchronous>, transform_indices = @transform_2, window_bounds = array<i64: 32, 32>}, {pipeline_mode = #tpu.pipeline_mode<synchronous>, transform_indices = @transform_3, window_bounds = array<i64: 1, 32>}, {pipeline_mode = #tpu.pipeline_mode<synchronous>, transform_indices = @transform_4, window_bounds = array<i64: 1, 32>}, {transform_indices = @transform_5, window_bounds = array<i64: 1>}, {transform_indices = @transform_6, window_bounds = array<i64: 2, 32, 32>}]} {
    %c0 = arith.constant 0 : index
    %c0_0 = arith.constant 0 : index
    %c0_1 = arith.constant 0 : index
    %0 = vector.load %arg1[%c0, %c0_0, %c0_1] : memref<2x32x32xf32, #tpu.memory_space<vmem>>, vector<2x32x32xf32>
    %1 = vector.shape_cast %0 : vector<2x32x32xf32> to vector<64x32xf32>
    %c0_2 = arith.constant 0 : index
    %c0_3 = arith.constant 0 : index
    %2 = vector.load %arg2[%c0_2, %c0_3] : memref<32x32xf32, #tpu.memory_space<vmem>>, vector<32x32xf32>
    %cst = arith.constant dense<0.000000e+00> : vector<64x32xf32>
    %3 = tpu.matmul %1, %2, %cst {dimension_numbers = #tpu.dot_dimension_numbers<[1], [0], [0], [1], [0, 0, 1, 1], [], []>} : vector<64x32xf32>, vector<32x32xf32>, vector<64x32xf32> -> vector<64x32xf32>
    %c0_4 = arith.constant 0 : index
    %c0_5 = arith.constant 0 : index
    %4 = vector.load %arg3[%c0_4, %c0_5] : memref<32x32xf32, #tpu.memory_space<vmem>>, vector<32x32xf32>
    %cst_6 = arith.constant dense<0.000000e+00> : vector<64x32xf32>
    %5 = tpu.matmul %1, %4, %cst_6 {dimension_numbers = #tpu.dot_dimension_numbers<[1], [0], [0], [1], [0, 0, 1, 1], [], []>} : vector<64x32xf32>, vector<32x32xf32>, vector<64x32xf32> -> vector<64x32xf32>
    %c0_7 = arith.constant 0 : index
    %c0_8 = arith.constant 0 : index
    %6 = vector.load %arg4[%c0_7, %c0_8] : memref<1x32xf32, #tpu.memory_space<vmem>>, vector<1x32xf32>
    %7 = vector.broadcast %6 : vector<1x32xf32> to vector<64x32xf32>
    %8 = arith.addf %3, %7 : vector<64x32xf32>
    %9 = vector.shape_cast %8 : vector<64x32xf32> to vector<2x32x32xf32>
    %10 = vector.shape_cast %5 : vector<64x32xf32> to vector<2x32x32xf32>
    %11 = vector.shape_cast %9 : vector<2x32x32xf32> to vector<2x32x1x32xf32>
    %12 = vector.shape_cast %10 : vector<2x32x32xf32> to vector<2x1x32x32xf32>
    %13 = vector.broadcast %11 : vector<2x32x1x32xf32> to vector<2x32x32x32xf32>
    %14 = vector.broadcast %12 : vector<2x1x32x32xf32> to vector<2x32x32x32xf32>
    %15 = arith.addf %13, %14 : vector<2x32x32x32xf32>
    %cst_9 = arith.constant 0.000000e+00 : f32
    %16 = vector.broadcast %cst_9 : f32 to vector<2x32x32x32xf32>
    %17 = arith.maximumf %15, %16 : vector<2x32x32x32xf32>
    %c0_10 = arith.constant 0 : index
    %c0_11 = arith.constant 0 : index
    %18 = vector.load %arg5[%c0_10, %c0_11] : memref<1x32xf32, #tpu.memory_space<vmem>>, vector<1x32xf32>
    %19 = vector.shape_cast %18 : vector<1x32xf32> to vector<1x1x1x32xf32>
    %20 = vector.broadcast %19 : vector<1x1x1x32xf32> to vector<2x32x32x32xf32>
    %21 = arith.mulf %17, %20 : vector<2x32x32x32xf32>
    %cst_12 = arith.constant dense<0.000000e+00> : vector<2x32x32xf32>
    %22 = vector.multi_reduction <add>, %21, %cst_12 [3] : vector<2x32x32x32xf32> to vector<2x32x32xf32>
    %c0_13 = arith.constant 0 : index
    %23 = memref.load %arg6[%c0_13] : memref<1xf32, #tpu.memory_space<smem>>
    %24 = vector.broadcast %23 : f32 to vector<2x32x32xf32>
    %25 = arith.addf %22, %24 : vector<2x32x32xf32>
    %26 = arith.negf %25 : vector<2x32x32xf32>
    %27 = math.exp %26 : vector<2x32x32xf32>
    %cst_14 = arith.constant 1.000000e+00 : f32
    %28 = vector.broadcast %cst_14 : f32 to vector<2x32x32xf32>
    %29 = arith.addf %28, %27 : vector<2x32x32xf32>
    %30 = arith.divf %28, %29 : vector<2x32x32xf32>
    %cst_15 = arith.constant 0.000000e+00 : f32
    %31 = vector.broadcast %cst_15 : f32 to vector<2x32x32xf32>
    %32 = arith.cmpf one, %0, %31 : vector<2x32x32xf32>
    %cst_16 = arith.constant 0.000000e+00 : f32
    %33 = vector.broadcast %cst_16 : f32 to vector<2x32x32xf32>
    %34 = arith.select %32, %30, %33 : vector<2x32x32xi1>, vector<2x32x32xf32>
    %c0_17 = arith.constant 0 : index
    %c0_18 = arith.constant 0 : index
    %c0_19 = arith.constant 0 : index
    %35 = vector.load %arg7[%c0_17, %c0_18, %c0_19] : memref<2x32x32xf32, #tpu.memory_space<vmem>>, vector<2x32x32xf32>
    tpu.vector_store %arg7[%c0_17, %c0_18, %c0_19], %34 {strides = array<i32>} : memref<2x32x32xf32, #tpu.memory_space<vmem>>, vector<2x32x32xf32>,
    return
  }
  func.func @transform_0(%arg0: i32) -> (i32, i32, i32) {
    %c0_i32 = arith.constant 0 : i32
    %c0_i32_0 = arith.constant 0 : i32
    %c0_i32_1 = arith.constant 0 : i32
    return %arg0, %c0_i32, %c0_i32_0 : i32, i32, i32
  }
  func.func @transform_1(%arg0: i32) -> (i32, i32) {
    %c0_i32 = arith.constant 0 : i32
    %c0_i32_0 = arith.constant 0 : i32
    %c0_i32_1 = arith.constant 0 : i32
    return %c0_i32, %c0_i32_0 : i32, i32
  }
  func.func @transform_2(%arg0: i32) -> (i32, i32) {
    %c0_i32 = arith.constant 0 : i32
    %c0_i32_0 = arith.constant 0 : i32
    %c0_i32_1 = arith.constant 0 : i32
    return %c0_i32, %c0_i32_0 : i32, i32
  }
  func.func @transform_3(%arg0: i32) -> (i32, i32) {
    %c0_i32 = arith.constant 0 : i32
    %c0_i32_0 = arith.constant 0 : i32
    %c0_i32_1 = arith.constant 0 : i32
    return %c0_i32, %c0_i32_0 : i32, i32
  }
  func.func @transform_4(%arg0: i32) -> (i32, i32) {
    %c0_i32 = arith.constant 0 : i32
    %c0_i32_0 = arith.constant 0 : i32
    %c0_i32_1 = arith.constant 0 : i32
    return %c0_i32, %c0_i32_0 : i32, i32
  }
  func.func @transform_5(%arg0: i32) -> i32 {
    %c0_i32 = arith.constant 0 : i32
    %c0_i32_0 = arith.constant 0 : i32
    return %c0_i32 : i32
  }
  func.func @transform_6(%arg0: i32) -> (i32, i32, i32) {
    %c0_i32 = arith.constant 0 : i32
    %c0_i32_0 = arith.constant 0 : i32
    %c0_i32_1 = arith.constant 0 : i32
    return %arg0, %c0_i32, %c0_i32_0 : i32, i32, i32
  }
}

</mosaic_0001>

<llo_original>
// kernel: tpu_custom_call.1
$region0: #{tpu_custom_call.1}
  #allocation0 [shape = 'u32[]', space=smem, size = 0x4, offset = 0x4, fixed_abs, tag = 'smem constant byte address 0x4 - core index']
  #allocation1 [shape = 'u32[144,128]{1,0:T(1,128)}', space=vmem, size = 0x12000, scoped, tag = 'internal scratch']
  #allocation2 [shape = 'f32[1]{0:T(128)S(6)}', space=smem, size = 0x200, scoped, tag = 'scoped memory for tpu_custom_call.1']
  %s0 = inlined_call_operand.hbm [shape: f32[2,32,32], index: 0, kind: input, shape index: {}]
  %s1 = inlined_call_operand.hbm [shape: f32[32,32], index: 1, kind: input, shape index: {}]
  %s2 = inlined_call_operand.hbm [shape: f32[32,32], index: 2, kind: input, shape index: {}]
  %s3 = inlined_call_operand.vmem [shape: f32[1,32], index: 3, kind: input, shape index: {}]
  %s4 = inlined_call_operand.vmem [shape: f32[1,32], index: 4, kind: input, shape index: {}]
  %s5 = inlined_call_operand.<no memory space> [shape: f32[1], index: 5, kind: input, shape index: {}]
  %s6 = inlined_call_operand.hbm [shape: f32[2,32,32], index: 6, kind: output, shape index: {}]
  %s7 = sld [smem:[#allocation0]]
  $region46: #{tpu_custom_call.1} parent=0
    _
  %s9 = ssub.s32 1, %s7
  %s10 = scalar_select 0, %s9, %s7
  %11 = sst [smem:[#allocation2]] %s5
  $region1: #{tpu_custom_call.1} parent=0
    #allocation3 [shape = 'u8[32768]{0}', space=vmem, size = 0x8000, scoped, tag = 'input window, operand 0, single buffered']
    #allocation4 [shape = 's32[1]{0}', space=sflag, size = 0x4, scoped, tag = 'scoped memory for tpu_custom_call.1']
    #allocation5 [shape = 's32[1]{0}', space=sflag, size = 0x4, scoped, tag = 'scoped memory for tpu_custom_call.1']
    #allocation6 [shape = 'u8[16384]{0}', space=vmem, size = 0x4000, scoped, tag = 'input window, operand 1, single buffered']
    #allocation7 [shape = 's32[1]{0}', space=sflag, size = 0x4, scoped, tag = 'scoped memory for tpu_custom_call.1']
    #allocation8 [shape = 'u8[16384]{0}', space=vmem, size = 0x4000, scoped, tag = 'input window, operand 2, single buffered']
    #allocation9 [shape = 'u8[32768]{0}', space=vmem, size = 0x8000, scoped, tag = 'output window, operand 0, single buffered']
    %12 = vsyncpa [#allocation4], 0
    %13 = vsyncpa [#allocation7], 0
    %14 = vsyncpa [#allocation5], 0
    // Predicated region
    $region2: #{tpu_custom_call.1} parent=1 // pred_check
      _
    $region3: #{tpu_custom_call.1} parent=1 // pred_check_branch
      %16 = sbr.rel (0) target = $region5
    $region4: #{tpu_custom_call.1} parent=1 // pred_region
      %s18 = ssub.s32 1024, 1024
      %19 = vsyncadd [#allocation4], %s18
      %s20 = sshll.u32 [#allocation3], 4
      %s21 = int_to_ptr.vmem [resolvable:$true] %s20
      %26 = dma.hbm_to_vmem [thread:$0]  %s0, 1024, %s21, [#allocation4], 128, 128, 8
    $region5: #{tpu_custom_call.1} parent=1 // pred_fallthru
      _
    // Predicated region
    $region6: #{tpu_custom_call.1} parent=1 // pred_check
      _
    $region7: #{tpu_custom_call.1} parent=1 // pred_check_branch
      %28 = sbr.rel (0) target = $region9
    $region8: #{tpu_custom_call.1} parent=1 // pred_region
      %s30 = ssub.s32 512, 512
      %31 = vsyncadd [#allocation7], %s30
      %s32 = sshll.u32 [#allocation6], 4
      %s33 = int_to_ptr.vmem [resolvable:$true] %s32
      %38 = dma.hbm_to_vmem [thread:$0]  %s1, 512, %s33, [#allocation7], 128, 128, 8
    $region9: #{tpu_custom_call.1} parent=1 // pred_fallthru
      _
    // Predicated region
    $region10: #{tpu_custom_call.1} parent=1 // pred_check
      _
    $region11: #{tpu_custom_call.1} parent=1 // pred_check_branch
      %40 = sbr.rel (0) target = $region13
    $region12: #{tpu_custom_call.1} parent=1 // pred_region
      %s42 = ssub.s32 512, 512
      %43 = vsyncadd [#allocation7], %s42
      %s44 = sshll.u32 [#allocation8], 4
      %s45 = int_to_ptr.vmem [resolvable:$true] %s44
      %50 = dma.hbm_to_vmem [thread:$0]  %s2, 512, %s45, [#allocation7], 128, 128, 8
    $region13: #{tpu_custom_call.1} parent=1 // pred_fallthru
      _
    // Predicated region
    $region14: #{tpu_custom_call.1} parent=1 // pred_check
      _
    $region15: #{tpu_custom_call.1} parent=1 // pred_check_branch
      %52 = sbr.rel (0) target = $region17
    $region16: #{tpu_custom_call.1} parent=1 // pred_region
      _
    $region17: #{tpu_custom_call.1} parent=1 // pred_fallthru
      _
    // Predicated region
    $region18: #{tpu_custom_call.1} parent=1 // pred_check
      _
    $region19: #{tpu_custom_call.1} parent=1 // pred_check_branch
      %54 = sbr.rel (0) target = $region21
    $region20: #{tpu_custom_call.1} parent=1 // pred_region
      _
    $region21: #{tpu_custom_call.1} parent=1 // pred_fallthru
      _
    // Predicated region
    $region22: #{tpu_custom_call.1} parent=1 // pred_check
      _
    $region23: #{tpu_custom_call.1} parent=1 // pred_check_branch
      %56 = sbr.rel (0) target = $region25
    $region24: #{tpu_custom_call.1} parent=1 // pred_region
      _
    $region25: #{tpu_custom_call.1} parent=1 // pred_fallthru
      _
    // Predicated region
    $region26: #{tpu_custom_call.1} parent=1 // pred_check
      _
    $region27: #{tpu_custom_call.1} parent=1 // pred_check_branch
      %58 = sbr.rel (0) target = $region29
    $region28: #{tpu_custom_call.1} parent=1 // pred_region
      %59 = dma.done [#allocation4], 1024
    $region29: #{tpu_custom_call.1} parent=1 // pred_fallthru
      _
    // Predicated region
    $region30: #{tpu_custom_call.1} parent=1 // pred_check
      _
    $region31: #{tpu_custom_call.1} parent=1 // pred_check_branch
      %61 = sbr.rel (0) target = $region33
    $region32: #{tpu_custom_call.1} parent=1 // pred_region
      %62 = dma.done [#allocation7], 512
    $region33: #{tpu_custom_call.1} parent=1 // pred_fallthru
      _
    // Predicated region
    $region34: #{tpu_custom_call.1} parent=1 // pred_check
      _
    $region35: #{tpu_custom_call.1} parent=1 // pred_check_branch
      %64 = sbr.rel (0) target = $region37
    $region36: #{tpu_custom_call.1} parent=1 // pred_region
      %65 = dma.done [#allocation7], 512
    $region37: #{tpu_custom_call.1} parent=1 // pred_fallthru
      _
    %v66 = vld [vmem:[#allocation3] sm:$0xff]
    %v67 = vld [vmem:[#allocation3 + $0x8] sm:$0xff]
    %v68 = vld [vmem:[#allocation3 + $0x10] sm:$0xff]
    %v69 = vld [vmem:[#allocation3 + $0x18] sm:$0xff]
    %v70 = vld [vmem:[#allocation3 + $0x20] sm:$0xff]
    %v71 = vld [vmem:[#allocation3 + $0x28] sm:$0xff]
    %v72 = vld [vmem:[#allocation3 + $0x30] sm:$0xff]
    %v73 = vld [vmem:[#allocation3 + $0x38] sm:$0xff]
    %v74 = vld [vmem:[#allocation6] sm:$0xff]
    %v75 = vld [vmem:[#allocation6 + $0x8] sm:$0xff]
    %v76 = vld [vmem:[#allocation6 + $0x10] sm:$0xff]
    %v77 = vld [vmem:[#allocation6 + $0x18] sm:$0xff]
    %v78 = vld [vmem:[#allocation8] sm:$0xff]
    %v79 = vld [vmem:[#allocation8 + $0x8] sm:$0xff]
    %v80 = vld [vmem:[#allocation8 + $0x10] sm:$0xff]
    %v81 = vld [vmem:[#allocation8 + $0x18] sm:$0xff]
    %vm82 = vcmask 261120
    %v84 = vsel %vm82, %v66, 0
    %v87 = vsel %vm82, %v67, 0
    %v90 = vsel %vm82, %v68, 0
    %v93 = vsel %vm82, %v69, 0
    %v96 = vsel %vm82, %v70, 0
    %v99 = vsel %vm82, %v71, 0
    %v102 = vsel %vm82, %v72, 0
    %v105 = vsel %vm82, %v73, 0
    %107 = vmatprep.subr.mxu0 0.0
    %108 = vmatpush1.msra.mxu0 %v78
    %109 = vmatprep.subr.mxu0 0.0
    %110 = vmatpush1.msra.mxu0 %v79
    %111 = vmatprep.subr.mxu0 0.0
    %112 = vmatpush1.msra.mxu0 %v80
    %113 = vmatprep.subr.mxu0 0.0
    %114 = vmatpush1.msra.mxu0 %v81
    %115 = vmatprep.subr.mxu0 0.0
    %116 = vmatpush1.msra.mxu0 0.0
    %117 = vmatprep.subr.mxu0 0.0
    %118 = vmatpush1.msra.mxu0 0.0
    %119 = vmatprep.subr.mxu0 0.0
    %120 = vmatpush1.msra.mxu0 0.0
    %121 = vmatprep.subr.mxu0 0.0
    %122 = vmatpush1.msra.mxu0 0.0
    %123 = vmatprep.subr.mxu0 0.0
    %124 = vmatpush1.msra.mxu0 0.0
    %125 = vmatprep.subr.mxu0 0.0
    %126 = vmatpush1.msra.mxu0 0.0
    %127 = vmatprep.subr.mxu0 0.0
    %128 = vmatpush1.msra.mxu0 0.0
    %129 = vmatprep.subr.mxu0 0.0
    %130 = vmatpush1.msra.mxu0 0.0
    %131 = vmatprep.subr.mxu0 0.0
    %132 = vmatpush1.msra.mxu0 0.0
    %133 = vmatprep.subr.mxu0 0.0
    %134 = vmatpush1.msra.mxu0 0.0
    %135 = vmatprep.subr.mxu0 0.0
    %136 = vmatpush1.msra.mxu0 0.0
    %137 = vmatprep.subr.mxu0 0.0
    %138 = vmatpush1.msra.mxu0 0.0
    %139 = vmatprep.subr.mxu0 0.0
    %140 = vmatpush1.msra.mxu0 0.0
    %141 = vmatprep.subr.mxu0 0.0
    %142 = vmatpush1.msra.mxu0 0.0
    %143 = vmatprep.subr.mxu0 0.0
    %144 = vmatpush1.msra.mxu0 0.0
    %145 = vmatprep.subr.mxu0 0.0
    %146 = vmatpush1.msra.mxu0 0.0
    %147 = vmatprep.subr.mxu0 0.0
    %148 = vmatpush1.msra.mxu0 0.0
    %149 = vmatprep.subr.mxu0 0.0
    %150 = vmatpush1.msra.mxu0 0.0
    %151 = vmatprep.subr.mxu0 0.0
    %152 = vmatpush1.msra.mxu0 0.0
    %153 = vmatprep.subr.mxu0 0.0
    %154 = vmatpush1.msra.mxu0 0.0
    %155 = vmatprep.subr.mxu0 0.0
    %156 = vmatpush1.msra.mxu0 0.0
    %157 = vmatprep.subr.mxu0 0.0
    %158 = vmatpush1.msra.mxu0 0.0
    %159 = vmatprep.subr.mxu0 0.0
    %160 = vmatpush1.msra.mxu0 0.0
    %161 = vmatprep.subr.mxu0 0.0
    %162 = vmatpush1.msra.mxu0 0.0
    %163 = vmatprep.subr.mxu0 0.0
    %164 = vmatpush1.msra.mxu0 0.0
    %165 = vmatprep.subr.mxu0 0.0
    %166 = vmatpush1.msra.mxu0 0.0
    %167 = vmatprep.subr.mxu0 0.0
    %168 = vmatpush1.msra.mxu0 0.0
    %169 = vmatprep.subr.mxu0 0.0
    %170 = vmatpush1.msra.mxu0 0.0
    %171 = vmatprep.mubr.f32.mxu0 0.0
    %172 = vmatmul.mubr.f32.gmra.mrb[0].mxu0 %v84
    %v173 = vpop.f32.mrb[0].mxu0
    %v174 = vadd.f32 0.0, %v173
    %v175 = vpop.f32.mrb[0].mxu0
    %176 = vmatprep.mubr.f32.mxu0 0.0
    %177 = vmatmul.mubr.f32.gmra.mrb[0].mxu0 %v87
    %v178 = vpop.f32.mrb[0].mxu0
    %v179 = vadd.f32 0.0, %v178
    %v180 = vpop.f32.mrb[0].mxu0
    %181 = vmatprep.mubr.f32.mxu0 0.0
    %182 = vmatmul.mubr.f32.gmra.mrb[0].mxu0 %v90
    %v183 = vpop.f32.mrb[0].mxu0
    %v184 = vadd.f32 0.0, %v183
    %v185 = vpop.f32.mrb[0].mxu0
    %186 = vmatprep.mubr.f32.mxu0 0.0
    %187 = vmatmul.mubr.f32.gmra.mrb[0].mxu0 %v93
    %v188 = vpop.f32.mrb[0].mxu0
    %v189 = vadd.f32 0.0, %v188
    %v190 = vpop.f32.mrb[0].mxu0
    %191 = vmatprep.mubr.f32.mxu0 0.0
    %192 = vmatmul.mubr.f32.gmra.mrb[0].mxu0 %v96
    %v193 = vpop.f32.mrb[0].mxu0
    %v194 = vadd.f32 0.0, %v193
    %v195 = vpop.f32.mrb[0].mxu0
    %196 = vmatprep.mubr.f32.mxu0 0.0
    %197 = vmatmul.mubr.f32.gmra.mrb[0].mxu0 %v99
    %v198 = vpop.f32.mrb[0].mxu0
    %v199 = vadd.f32 0.0, %v198
    %v200 = vpop.f32.mrb[0].mxu0
    %201 = vmatprep.mubr.f32.mxu0 0.0
    %202 = vmatmul.mubr.f32.gmra.mrb[0].mxu0 %v102
    %v203 = vpop.f32.mrb[0].mxu0
    %v204 = vadd.f32 0.0, %v203
    %v205 = vpop.f32.mrb[0].mxu0
    %206 = vmatprep.mubr.f32.mxu0 0.0
    %207 = vmatmul.mubr.f32.gmra.mrb[0].mxu0 %v105
    %v208 = vpop.f32.mrb[0].mxu0
    %v209 = vadd.f32 0.0, %v208
    %v210 = vpop.f32.mrb[0].mxu0
    %211 = vdwg.mxu0
    %v212 = vld [vmem:[%s3] sm:$0x1]
    %v214 = vlaneseq
    %v215 = vshrl.u32 %v214, 7
    %v216 = vsub.s32 0, %v215
    %v217 = vrot.slane %v212, %v216
    %219 = vmatprep.subr.mxu0 0.0
    %220 = vmatpush1.msra.mxu0 %v74
    %221 = vmatprep.subr.mxu0 0.0
    %222 = vmatpush1.msra.mxu0 %v75
    %223 = vmatprep.subr.mxu0 0.0
    %224 = vmatpush1.msra.mxu0 %v76
    %225 = vmatprep.subr.mxu0 0.0
    %226 = vmatpush1.msra.mxu0 %v77
    %227 = vmatprep.subr.mxu0 0.0
    %228 = vmatpush1.msra.mxu0 0.0
    %229 = vmatprep.subr.mxu0 0.0
    %230 = vmatpush1.msra.mxu0 0.0
    %231 = vmatprep.subr.mxu0 0.0
    %232 = vmatpush1.msra.mxu0 0.0
    %233 = vmatprep.subr.mxu0 0.0
    %234 = vmatpush1.msra.mxu0 0.0
    %235 = vmatprep.subr.mxu0 0.0
    %236 = vmatpush1.msra.mxu0 0.0
    %237 = vmatprep.subr.mxu0 0.0
    %238 = vmatpush1.msra.mxu0 0.0
    %239 = vmatprep.subr.mxu0 0.0
    %240 = vmatpush1.msra.mxu0 0.0
    %241 = vmatprep.subr.mxu0 0.0
    %242 = vmatpush1.msra.mxu0 0.0
    %243 = vmatprep.subr.mxu0 0.0
    %244 = vmatpush1.msra.mxu0 0.0
    %245 = vmatprep.subr.mxu0 0.0
    %246 = vmatpush1.msra.mxu0 0.0
    %247 = vmatprep.subr.mxu0 0.0
    %248 = vmatpush1.msra.mxu0 0.0
    %249 = vmatprep.subr.mxu0 0.0
    %250 = vmatpush1.msra.mxu0 0.0
    %251 = vmatprep.subr.mxu0 0.0
    %252 = vmatpush1.msra.mxu0 0.0
    %253 = vmatprep.subr.mxu0 0.0
    %254 = vmatpush1.msra.mxu0 0.0
    %255 = vmatprep.subr.mxu0 0.0
    %256 = vmatpush1.msra.mxu0 0.0
    %257 = vmatprep.subr.mxu0 0.0
    %258 = vmatpush1.msra.mxu0 0.0
    %259 = vmatprep.subr.mxu0 0.0
    %260 = vmatpush1.msra.mxu0 0.0
    %261 = vmatprep.subr.mxu0 0.0
    %262 = vmatpush1.msra.mxu0 0.0
    %263 = vmatprep.subr.mxu0 0.0
    %264 = vmatpush1.msra.mxu0 0.0
    %265 = vmatprep.subr.mxu0 0.0
    %266 = vmatpush1.msra.mxu0 0.0
    %267 = vmatprep.subr.mxu0 0.0
    %268 = vmatpush1.msra.mxu0 0.0
    %269 = vmatprep.subr.mxu0 0.0
    %270 = vmatpush1.msra.mxu0 0.0
    %271 = vmatprep.subr.mxu0 0.0
    %272 = vmatpush1.msra.mxu0 0.0
    %273 = vmatprep.subr.mxu0 0.0
    %274 = vmatpush1.msra.mxu0 0.0
    %275 = vmatprep.subr.mxu0 0.0
    %276 = vmatpush1.msra.mxu0 0.0
    %277 = vmatprep.subr.mxu0 0.0
    %278 = vmatpush1.msra.mxu0 0.0
    %279 = vmatprep.subr.mxu0 0.0
    %280 = vmatpush1.msra.mxu0 0.0
    %281 = vmatprep.subr.mxu0 0.0
    %282 = vmatpush1.msra.mxu0 0.0
    %283 = vmatprep.mubr.f32.mxu0 0.0
    %284 = vmatmul.mubr.f32.gmra.mrb[0].mxu0 %v84
    %v285 = vpop.f32.mrb[0].mxu0
    %v286 = vadd.f32 %v217, %v285
    %v287 = vpop.f32.mrb[0].mxu0
    %288 = vmatprep.mubr.f32.mxu0 0.0
    %289 = vmatmul.mubr.f32.gmra.mrb[0].mxu0 %v87
    %v290 = vpop.f32.mrb[0].mxu0
    %v291 = vadd.f32 %v217, %v290
    %v292 = vpop.f32.mrb[0].mxu0
    %293 = vmatprep.mubr.f32.mxu0 0.0
    %294 = vmatmul.mubr.f32.gmra.mrb[0].mxu0 %v90
    %v295 = vpop.f32.mrb[0].mxu0
    %v296 = vadd.f32 %v217, %v295
    %v297 = vpop.f32.mrb[0].mxu0
    %298 = vmatprep.mubr.f32.mxu0 0.0
    %299 = vmatmul.mubr.f32.gmra.mrb[0].mxu0 %v93
    %v300 = vpop.f32.mrb[0].mxu0
    %v301 = vadd.f32 %v217, %v300
    %v302 = vpop.f32.mrb[0].mxu0
    %303 = vmatprep.mubr.f32.mxu0 0.0
    %304 = vmatmul.mubr.f32.gmra.mrb[0].mxu0 %v96
    %v305 = vpop.f32.mrb[0].mxu0
    %v306 = vadd.f32 %v217, %v305
    %v307 = vpop.f32.mrb[0].mxu0
    %308 = vmatprep.mubr.f32.mxu0 0.0
    %309 = vmatmul.mubr.f32.gmra.mrb[0].mxu0 %v99
    %v310 = vpop.f32.mrb[0].mxu0
    %v311 = vadd.f32 %v217, %v310
    %v312 = vpop.f32.mrb[0].mxu0
    %313 = vmatprep.mubr.f32.mxu0 0.0
    %314 = vmatmul.mubr.f32.gmra.mrb[0].mxu0 %v102
    %v315 = vpop.f32.mrb[0].mxu0
    %v316 = vadd.f32 %v217, %v315
    %v317 = vpop.f32.mrb[0].mxu0
    %318 = vmatprep.mubr.f32.mxu0 0.0
    %319 = vmatmul.mubr.f32.gmra.mrb[0].mxu0 %v105
    %v320 = vpop.f32.mrb[0].mxu0
    %v321 = vadd.f32 %v217, %v320
    %v322 = vpop.f32.mrb[0].mxu0
    %323 = vdwg.mxu0
    %v332 = vcombine.high %v286, %v286
    %v334 = vunpack.c.l.s4 1966171168
    %v335 = vunpack.c.0.s8 %v334
    %v336 = vlaneseq
    %v337 = vshrl.u32 %v336, 7
    %v338 = vsub.s32 %v335, %v337
    %v339 = vrot.slane %v286, %v338
    %v341 = vunpack.c.l.s4 1966171168
    %v342 = vunpack.c.0.s8 %v341
    %v343 = vlaneseq
    %v344 = vshrl.u32 %v343, 7
    %v345 = vsub.s32 %v342, %v344
    %v346 = vrot.slane %v332, %v345
    %v347 = vcombine.high %v339, %v339
    %v348 = vcombine.high %v346, %v346
    %v350 = vunpack.c.l.s4 1966171168
    %v351 = vunpack.c.0.s8 %v350
    %v352 = vlaneseq
    %v353 = vshrl.u32 %v352, 7
    %v354 = vsub.s32 %v351, %v353
    %v355 = vrot.slane %v339, %v354
    %v357 = vunpack.c.l.s4 1966171168
    %v358 = vunpack.c.0.s8 %v357
    %v359 = vlaneseq
    %v360 = vshrl.u32 %v359, 7
    %v361 = vsub.s32 %v358, %v360
    %v362 = vrot.slane %v346, %v361
    %v364 = vunpack.c.l.s4 1966171168
    %v365 = vunpack.c.0.s8 %v364
    %v366 = vlaneseq
    %v367 = vshrl.u32 %v366, 7
    %v368 = vsub.s32 %v365, %v367
    %v369 = vrot.slane %v347, %v368
    %v371 = vunpack.c.l.s4 1966171168
    %v372 = vunpack.c.0.s8 %v371
    %v373 = vlaneseq
    %v374 = vshrl.u32 %v373, 7
    %v375 = vsub.s32 %v372, %v374
    %v376 = vrot.slane %v348, %v375
    %v377 = vcombine.high %v355, %v355
    %v378 = vcombine.high %v362, %v362
    %v379 = vcombine.high %v369, %v369
    %v380 = vcombine.high %v376, %v376
    %v381 = vcombine.high %v291, %v291
    %v383 = vunpack.c.l.s4 1966171168
    %v384 = vunpack.c.0.s8 %v383
    %v385 = vlaneseq
    %v386 = vshrl.u32 %v385, 7
    %v387 = vsub.s32 %v384, %v386
    %v388 = vrot.slane %v291, %v387
    %v390 = vunpack.c.l.s4 1966171168
    %v391 = vunpack.c.0.s8 %v390
    %v392 = vlaneseq
    %v393 = vshrl.u32 %v392, 7
    %v394 = vsub.s32 %v391, %v393
    %v395 = vrot.slane %v381, %v394
    %v396 = vcombine.high %v388, %v388
    %v397 = vcombine.high %v395, %v395
    %v399 = vunpack.c.l.s4 1966171168
    %v400 = vunpack.c.0.s8 %v399
    %v401 = vlaneseq
    %v402 = vshrl.u32 %v401, 7
    %v403 = vsub.s32 %v400, %v402
    %v404 = vrot.slane %v388, %v403
    %v406 = vunpack.c.l.s4 1966171168
    %v407 = vunpack.c.0.s8 %v406
    %v408 = vlaneseq
    %v409 = vshrl.u32 %v408, 7
    %v410 = vsub.s32 %v407, %v409
    %v411 = vrot.slane %v395, %v410
    %v413 = vunpack.c.l.s4 1966171168
    %v414 = vunpack.c.0.s8 %v413
    %v415 = vlaneseq
    %v416 = vshrl.u32 %v415, 7
    %v417 = vsub.s32 %v414, %v416
    %v418 = vrot.slane %v396, %v417
    %v420 = vunpack.c.l.s4 1966171168
    %v421 = vunpack.c.0.s8 %v420
    %v422 = vlaneseq
    %v423 = vshrl.u32 %v422, 7
    %v424 = vsub.s32 %v421, %v423
    %v425 = vrot.slane %v397, %v424
    %v426 = vcombine.high %v404, %v404
    %v427 = vcombine.high %v411, %v411
    %v428 = vcombine.high %v418, %v418
    %v429 = vcombine.high %v425, %v425
    %v430 = vcombine.high %v296, %v296
    %v432 = vunpack.c.l.s4 1966171168
    %v433 = vunpack.c.0.s8 %v432
    %v434 = vlaneseq
    %v435 = vshrl.u32 %v434, 7
    %v436 = vsub.s32 %v433, %v435
    %v437 = vrot.slane %v296, %v436
    %v439 = vunpack.c.l.s4 1966171168
    %v440 = vunpack.c.0.s8 %v439
    %v441 = vlaneseq
    %v442 = vshrl.u32 %v441, 7
    %v443 = vsub.s32 %v440, %v442
    %v444 = vrot.slane %v430, %v443
    %v445 = vcombine.high %v437, %v437
    %v446 = vcombine.high %v444, %v444
    %v448 = vunpack.c.l.s4 1966171168
    %v449 = vunpack.c.0.s8 %v448
    %v450 = vlaneseq
    %v451 = vshrl.u32 %v450, 7
    %v452 = vsub.s32 %v449, %v451
    %v453 = vrot.slane %v437, %v452
    %v455 = vunpack.c.l.s4 1966171168
    %v456 = vunpack.c.0.s8 %v455
    %v457 = vlaneseq
    %v458 = vshrl.u32 %v457, 7
    %v459 = vsub.s32 %v456, %v458
    %v460 = vrot.slane %v444, %v459
    %v462 = vunpack.c.l.s4 1966171168
    %v463 = vunpack.c.0.s8 %v462
    %v464 = vlaneseq
    %v465 = vshrl.u32 %v464, 7
    %v466 = vsub.s32 %v463, %v465
    %v467 = vrot.slane %v445, %v466
    %v469 = vunpack.c.l.s4 1966171168
    %v470 = vunpack.c.0.s8 %v469
    %v471 = vlaneseq
    %v472 = vshrl.u32 %v471, 7
    %v473 = vsub.s32 %v470, %v472
    %v474 = vrot.slane %v446, %v473
    %v475 = vcombine.high %v453, %v453
    %v476 = vcombine.high %v460, %v460
    %v477 = vcombine.high %v467, %v467
    %v478 = vcombine.high %v474, %v474
    %v479 = vcombine.high %v301, %v301
    %v481 = vunpack.c.l.s4 1966171168
    %v482 = vunpack.c.0.s8 %v481
    %v483 = vlaneseq
    %v484 = vshrl.u32 %v483, 7
    %v485 = vsub.s32 %v482, %v484
    %v486 = vrot.slane %v301, %v485
    %v488 = vunpack.c.l.s4 1966171168
    %v489 = vunpack.c.0.s8 %v488
    %v490 = vlaneseq
    %v491 = vshrl.u32 %v490, 7
    %v492 = vsub.s32 %v489, %v491
    %v493 = vrot.slane %v479, %v492
    %v494 = vcombine.high %v486, %v486
    %v495 = vcombine.high %v493, %v493
    %v497 = vunpack.c.l.s4 1966171168
    %v498 = vunpack.c.0.s8 %v497
    %v499 = vlaneseq
    %v500 = vshrl.u32 %v499, 7
    %v501 = vsub.s32 %v498, %v500
    %v502 = vrot.slane %v486, %v501
    %v504 = vunpack.c.l.s4 1966171168
    %v505 = vunpack.c.0.s8 %v504
    %v506 = vlaneseq
    %v507 = vshrl.u32 %v506, 7
    %v508 = vsub.s32 %v505, %v507
    %v509 = vrot.slane %v493, %v508
    %v511 = vunpack.c.l.s4 1966171168
    %v512 = vunpack.c.0.s8 %v511
    %v513 = vlaneseq
    %v514 = vshrl.u32 %v513, 7
    %v515 = vsub.s32 %v512, %v514
    %v516 = vrot.slane %v494, %v515
    %v518 = vunpack.c.l.s4 1966171168
    %v519 = vunpack.c.0.s8 %v518
    %v520 = vlaneseq
    %v521 = vshrl.u32 %v520, 7
    %v522 = vsub.s32 %v519, %v521
    %v523 = vrot.slane %v495, %v522
    %v524 = vcombine.high %v502, %v502
    %v525 = vcombine.high %v509, %v509
    %v526 = vcombine.high %v516, %v516
    %v527 = vcombine.high %v523, %v523
    %v528 = vcombine.high %v306, %v306
    %v530 = vunpack.c.l.s4 1966171168
    %v531 = vunpack.c.0.s8 %v530
    %v532 = vlaneseq
    %v533 = vshrl.u32 %v532, 7
    %v534 = vsub.s32 %v531, %v533
    %v535 = vrot.slane %v306, %v534
    %v537 = vunpack.c.l.s4 1966171168
    %v538 = vunpack.c.0.s8 %v537
    %v539 = vlaneseq
    %v540 = vshrl.u32 %v539, 7
    %v541 = vsub.s32 %v538, %v540
    %v542 = vrot.slane %v528, %v541
    %v543 = vcombine.high %v535, %v535
    %v544 = vcombine.high %v542, %v542
    %v546 = vunpack.c.l.s4 1966171168
    %v547 = vunpack.c.0.s8 %v546
    %v548 = vlaneseq
    %v549 = vshrl.u32 %v548, 7
    %v550 = vsub.s32 %v547, %v549
    %v551 = vrot.slane %v535, %v550
    %v553 = vunpack.c.l.s4 1966171168
    %v554 = vunpack.c.0.s8 %v553
    %v555 = vlaneseq
    %v556 = vshrl.u32 %v555, 7
    %v557 = vsub.s32 %v554, %v556
    %v558 = vrot.slane %v542, %v557
    %v560 = vunpack.c.l.s4 1966171168
    %v561 = vunpack.c.0.s8 %v560
    %v562 = vlaneseq
    %v563 = vshrl.u32 %v562, 7
    %v564 = vsub.s32 %v561, %v563
    %v565 = vrot.slane %v543, %v564
    %v567 = vunpack.c.l.s4 1966171168
    %v568 = vunpack.c.0.s8 %v567
    %v569 = vlaneseq
    %v570 = vshrl.u32 %v569, 7
    %v571 = vsub.s32 %v568, %v570
    %v572 = vrot.slane %v544, %v571
    %v573 = vcombine.high %v551, %v551
    %v574 = vcombine.high %v558, %v558
    %v575 = vcombine.high %v565, %v565
    %v576 = vcombine.high %v572, %v572
    %v577 = vcombine.high %v311, %v311
    %v579 = vunpack.c.l.s4 1966171168
    %v580 = vunpack.c.0.s8 %v579
    %v581 = vlaneseq
    %v582 = vshrl.u32 %v581, 7
    %v583 = vsub.s32 %v580, %v582
    %v584 = vrot.slane %v311, %v583
    %v586 = vunpack.c.l.s4 1966171168
    %v587 = vunpack.c.0.s8 %v586
    %v588 = vlaneseq
    %v589 = vshrl.u32 %v588, 7
    %v590 = vsub.s32 %v587, %v589
    %v591 = vrot.slane %v577, %v590
    %v592 = vcombine.high %v584, %v584
    %v593 = vcombine.high %v591, %v591
    %v595 = vunpack.c.l.s4 1966171168
    %v596 = vunpack.c.0.s8 %v595
    %v597 = vlaneseq
    %v598 = vshrl.u32 %v597, 7
    %v599 = vsub.s32 %v596, %v598
    %v600 = vrot.slane %v584, %v599
    %v602 = vunpack.c.l.s4 1966171168
    %v603 = vunpack.c.0.s8 %v602
    %v604 = vlaneseq
    %v605 = vshrl.u32 %v604, 7
    %v606 = vsub.s32 %v603, %v605
    %v607 = vrot.slane %v591, %v606
    %v609 = vunpack.c.l.s4 1966171168
    %v610 = vunpack.c.0.s8 %v609
    %v611 = vlaneseq
    %v612 = vshrl.u32 %v611, 7
    %v613 = vsub.s32 %v610, %v612
    %v614 = vrot.slane %v592, %v613
    %v616 = vunpack.c.l.s4 1966171168
    %v617 = vunpack.c.0.s8 %v616
    %v618 = vlaneseq
    %v619 = vshrl.u32 %v618, 7
    %v620 = vsub.s32 %v617, %v619
    %v621 = vrot.slane %v593, %v620
    %v622 = vcombine.high %v600, %v600
    %v623 = vcombine.high %v607, %v607
    %v624 = vcombine.high %v614, %v614
    %v625 = vcombine.high %v621, %v621
    %v626 = vcombine.high %v316, %v316
    %v628 = vunpack.c.l.s4 1966171168
    %v629 = vunpack.c.0.s8 %v628
    %v630 = vlaneseq
    %v631 = vshrl.u32 %v630, 7
    %v632 = vsub.s32 %v629, %v631
    %v633 = vrot.slane %v316, %v632
    %v635 = vunpack.c.l.s4 1966171168
    %v636 = vunpack.c.0.s8 %v635
    %v637 = vlaneseq
    %v638 = vshrl.u32 %v637, 7
    %v639 = vsub.s32 %v636, %v638
    %v640 = vrot.slane %v626, %v639
    %v641 = vcombine.high %v633, %v633
    %v642 = vcombine.high %v640, %v640
    %v644 = vunpack.c.l.s4 1966171168
    %v645 = vunpack.c.0.s8 %v644
    %v646 = vlaneseq
    %v647 = vshrl.u32 %v646, 7
    %v648 = vsub.s32 %v645, %v647
    %v649 = vrot.slane %v633, %v648
    %v651 = vunpack.c.l.s4 1966171168
    %v652 = vunpack.c.0.s8 %v651
    %v653 = vlaneseq
    %v654 = vshrl.u32 %v653, 7
    %v655 = vsub.s32 %v652, %v654
    %v656 = vrot.slane %v640, %v655
    %v658 = vunpack.c.l.s4 1966171168
    %v659 = vunpack.c.0.s8 %v658
    %v660 = vlaneseq
    %v661 = vshrl.u32 %v660, 7
    %v662 = vsub.s32 %v659, %v661
    %v663 = vrot.slane %v641, %v662
    %v665 = vunpack.c.l.s4 1966171168
    %v666 = vunpack.c.0.s8 %v665
    %v667 = vlaneseq
    %v668 = vshrl.u32 %v667, 7
    %v669 = vsub.s32 %v666, %v668
    %v670 = vrot.slane %v642, %v669
    %v671 = vcombine.high %v649, %v649
    %v672 = vcombine.high %v656, %v656
    %v673 = vcombine.high %v663, %v663
    %v674 = vcombine.high %v670, %v670
    %v675 = vcombine.high %v321, %v321
    %v677 = vunpack.c.l.s4 1966171168
    %v678 = vunpack.c.0.s8 %v677
    %v679 = vlaneseq
    %v680 = vshrl.u32 %v679, 7
    %v681 = vsub.s32 %v678, %v680
    %v682 = vrot.slane %v321, %v681
    %v684 = vunpack.c.l.s4 1966171168
    %v685 = vunpack.c.0.s8 %v684
    %v686 = vlaneseq
    %v687 = vshrl.u32 %v686, 7
    %v688 = vsub.s32 %v685, %v687
    %v689 = vrot.slane %v675, %v688
    %v690 = vcombine.high %v682, %v682
    %v691 = vcombine.high %v689, %v689
    %v693 = vunpack.c.l.s4 1966171168
    %v694 = vunpack.c.0.s8 %v693
    %v695 = vlaneseq
    %v696 = vshrl.u32 %v695, 7
    %v697 = vsub.s32 %v694, %v696
    %v698 = vrot.slane %v682, %v697
    %v700 = vunpack.c.l.s4 1966171168
    %v701 = vunpack.c.0.s8 %v700
    %v702 = vlaneseq
    %v703 = vshrl.u32 %v702, 7
    %v704 = vsub.s32 %v701, %v703
    %v705 = vrot.slane %v689, %v704
    %v707 = vunpack.c.l.s4 1966171168
    %v708 = vunpack.c.0.s8 %v707
    %v709 = vlaneseq
    %v710 = vshrl.u32 %v709, 7
    %v711 = vsub.s32 %v708, %v710
    %v712 = vrot.slane %v690, %v711
    %v714 = vunpack.c.l.s4 1966171168
    %v715 = vunpack.c.0.s8 %v714
    %v716 = vlaneseq
    %v717 = vshrl.u32 %v716, 7
    %v718 = vsub.s32 %v715, %v717
    %v719 = vrot.slane %v691, %v718
    %v720 = vcombine.high %v698, %v698
    %v721 = vcombine.high %v705, %v705
    %v722 = vcombine.high %v712, %v712
    %v723 = vcombine.high %v719, %v719
    %v724 = vlaneseq
    %v725 = vshrl.u32 %v724, 7
    %v726 = vsub.s32 0, %v725
    %v727 = vrot.slane %v355, %v726
    %v728 = vlaneseq
    %v729 = vshrl.u32 %v728, 7
    %v730 = vsub.s32 0, %v729
    %v731 = vrot.slane %v369, %v730
    %v732 = vlaneseq
    %v733 = vshrl.u32 %v732, 7
    %v734 = vsub.s32 0, %v733
    %v735 = vrot.slane %v377, %v734
    %v736 = vlaneseq
    %v737 = vshrl.u32 %v736, 7
    %v738 = vsub.s32 0, %v737
    %v739 = vrot.slane %v379, %v738
    %v740 = vlaneseq
    %v741 = vshrl.u32 %v740, 7
    %v742 = vsub.s32 0, %v741
    %v743 = vrot.slane %v362, %v742
    %v744 = vlaneseq
    %v745 = vshrl.u32 %v744, 7
    %v746 = vsub.s32 0, %v745
    %v747 = vrot.slane %v376, %v746
    %v748 = vlaneseq
    %v749 = vshrl.u32 %v748, 7
    %v750 = vsub.s32 0, %v749
    %v751 = vrot.slane %v378, %v750
    %v752 = vlaneseq
    %v753 = vshrl.u32 %v752, 7
    %v754 = vsub.s32 0, %v753
    %v755 = vrot.slane %v380, %v754
    %v756 = vlaneseq
    %v757 = vshrl.u32 %v756, 7
    %v758 = vsub.s32 0, %v757
    %v759 = vrot.slane %v404, %v758
    %v760 = vlaneseq
    %v761 = vshrl.u32 %v760, 7
    %v762 = vsub.s32 0, %v761
    %v763 = vrot.slane %v418, %v762
    %v764 = vlaneseq
    %v765 = vshrl.u32 %v764, 7
    %v766 = vsub.s32 0, %v765
    %v767 = vrot.slane %v426, %v766
    %v768 = vlaneseq
    %v769 = vshrl.u32 %v768, 7
    %v770 = vsub.s32 0, %v769
    %v771 = vrot.slane %v428, %v770
    %v772 = vlaneseq
    %v773 = vshrl.u32 %v772, 7
    %v774 = vsub.s32 0, %v773
    %v775 = vrot.slane %v411, %v774
    %v776 = vlaneseq
    %v777 = vshrl.u32 %v776, 7
    %v778 = vsub.s32 0, %v777
    %v779 = vrot.slane %v425, %v778
    %v780 = vlaneseq
    %v781 = vshrl.u32 %v780, 7
    %v782 = vsub.s32 0, %v781
    %v783 = vrot.slane %v427, %v782
    %v784 = vlaneseq
    %v785 = vshrl.u32 %v784, 7
    %v786 = vsub.s32 0, %v785
    %v787 = vrot.slane %v429, %v786
    %v788 = vlaneseq
    %v789 = vshrl.u32 %v788, 7
    %v790 = vsub.s32 0, %v789
    %v791 = vrot.slane %v453, %v790
    %v792 = vlaneseq
    %v793 = vshrl.u32 %v792, 7
    %v794 = vsub.s32 0, %v793
    %v795 = vrot.slane %v467, %v794
    %v796 = vlaneseq
    %v797 = vshrl.u32 %v796, 7
    %v798 = vsub.s32 0, %v797
    %v799 = vrot.slane %v475, %v798
    %v800 = vlaneseq
    %v801 = vshrl.u32 %v800, 7
    %v802 = vsub.s32 0, %v801
    %v803 = vrot.slane %v477, %v802
    %v804 = vlaneseq
    %v805 = vshrl.u32 %v804, 7
    %v806 = vsub.s32 0, %v805
    %v807 = vrot.slane %v460, %v806
    %v808 = vlaneseq
    %v809 = vshrl.u32 %v808, 7
    %v810 = vsub.s32 0, %v809
    %v811 = vrot.slane %v474, %v810
    %v812 = vlaneseq
    %v813 = vshrl.u32 %v812, 7
    %v814 = vsub.s32 0, %v813
    %v815 = vrot.slane %v476, %v814
    %v816 = vlaneseq
    %v817 = vshrl.u32 %v816, 7
    %v818 = vsub.s32 0, %v817
    %v819 = vrot.slane %v478, %v818
    %v820 = vlaneseq
    %v821 = vshrl.u32 %v820, 7
    %v822 = vsub.s32 0, %v821
    %v823 = vrot.slane %v502, %v822
    %v824 = vlaneseq
    %v825 = vshrl.u32 %v824, 7
    %v826 = vsub.s32 0, %v825
    %v827 = vrot.slane %v516, %v826
    %v828 = vlaneseq
    %v829 = vshrl.u32 %v828, 7
    %v830 = vsub.s32 0, %v829
    %v831 = vrot.slane %v524, %v830
    %v832 = vlaneseq
    %v833 = vshrl.u32 %v832, 7
    %v834 = vsub.s32 0, %v833
    %v835 = vrot.slane %v526, %v834
    %v836 = vlaneseq
    %v837 = vshrl.u32 %v836, 7
    %v838 = vsub.s32 0, %v837
    %v839 = vrot.slane %v509, %v838
    %v840 = vlaneseq
    %v841 = vshrl.u32 %v840, 7
    %v842 = vsub.s32 0, %v841
    %v843 = vrot.slane %v523, %v842
    %v844 = vlaneseq
    %v845 = vshrl.u32 %v844, 7
    %v846 = vsub.s32 0, %v845
    %v847 = vrot.slane %v525, %v846
    %v848 = vlaneseq
    %v849 = vshrl.u32 %v848, 7
    %v850 = vsub.s32 0, %v849
    %v851 = vrot.slane %v527, %v850
    %v852 = vlaneseq
    %v853 = vshrl.u32 %v852, 7
    %v854 = vsub.s32 0, %v853
    %v855 = vrot.slane %v551, %v854
    %v856 = vlaneseq
    %v857 = vshrl.u32 %v856, 7
    %v858 = vsub.s32 0, %v857
    %v859 = vrot.slane %v565, %v858
    %v860 = vlaneseq
    %v861 = vshrl.u32 %v860, 7
    %v862 = vsub.s32 0, %v861
    %v863 = vrot.slane %v573, %v862
    %v864 = vlaneseq
    %v865 = vshrl.u32 %v864, 7
    %v866 = vsub.s32 0, %v865
    %v867 = vrot.slane %v575, %v866
    %v868 = vlaneseq
    %v869 = vshrl.u32 %v868, 7
    %v870 = vsub.s32 0, %v869
    %v871 = vrot.slane %v558, %v870
    %v872 = vlaneseq
    %v873 = vshrl.u32 %v872, 7
    %v874 = vsub.s32 0, %v873
    %v875 = vrot.slane %v572, %v874
    %v876 = vlaneseq
    %v877 = vshrl.u32 %v876, 7
    %v878 = vsub.s32 0, %v877
    %v879 = vrot.slane %v574, %v878
    %v880 = vlaneseq
    %v881 = vshrl.u32 %v880, 7
    %v882 = vsub.s32 0, %v881
    %v883 = vrot.slane %v576, %v882
    %v884 = vlaneseq
    %v885 = vshrl.u32 %v884, 7
    %v886 = vsub.s32 0, %v885
    %v887 = vrot.slane %v600, %v886
    %v888 = vlaneseq
    %v889 = vshrl.u32 %v888, 7
    %v890 = vsub.s32 0, %v889
    %v891 = vrot.slane %v614, %v890
    %v892 = vlaneseq
    %v893 = vshrl.u32 %v892, 7
    %v894 = vsub.s32 0, %v893
    %v895 = vrot.slane %v622, %v894
    %v896 = vlaneseq
    %v897 = vshrl.u32 %v896, 7
    %v898 = vsub.s32 0, %v897
    %v899 = vrot.slane %v624, %v898
    %v900 = vlaneseq
    %v901 = vshrl.u32 %v900, 7
    %v902 = vsub.s32 0, %v901
    %v903 = vrot.slane %v607, %v902
    %v904 = vlaneseq
    %v905 = vshrl.u32 %v904, 7
    %v906 = vsub.s32 0, %v905
    %v907 = vrot.slane %v621, %v906
    %v908 = vlaneseq
    %v909 = vshrl.u32 %v908, 7
    %v910 = vsub.s32 0, %v909
    %v911 = vrot.slane %v623, %v910
    %v912 = vlaneseq
    %v913 = vshrl.u32 %v912, 7
    %v914 = vsub.s32 0, %v913
    %v915 = vrot.slane %v625, %v914
    %v916 = vlaneseq
    %v917 = vshrl.u32 %v916, 7
    %v918 = vsub.s32 0, %v917
    %v919 = vrot.slane %v649, %v918
    %v920 = vlaneseq
    %v921 = vshrl.u32 %v920, 7
    %v922 = vsub.s32 0, %v921
    %v923 = vrot.slane %v663, %v922
    %v924 = vlaneseq
    %v925 = vshrl.u32 %v924, 7
    %v926 = vsub.s32 0, %v925
    %v927 = vrot.slane %v671, %v926
    %v928 = vlaneseq
    %v929 = vshrl.u32 %v928, 7
    %v930 = vsub.s32 0, %v929
    %v931 = vrot.slane %v673, %v930
    %v932 = vlaneseq
    %v933 = vshrl.u32 %v932, 7
    %v934 = vsub.s32 0, %v933
    %v935 = vrot.slane %v656, %v934
    %v936 = vlaneseq
    %v937 = vshrl.u32 %v936, 7
    %v938 = vsub.s32 0, %v937
    %v939 = vrot.slane %v670, %v938
    %v940 = vlaneseq
    %v941 = vshrl.u32 %v940, 7
    %v942 = vsub.s32 0, %v941
    %v943 = vrot.slane %v672, %v942
    %v944 = vlaneseq
    %v945 = vshrl.u32 %v944, 7
    %v946 = vsub.s32 0, %v945
    %v947 = vrot.slane %v674, %v946
    %v948 = vlaneseq
    %v949 = vshrl.u32 %v948, 7
    %v950 = vsub.s32 0, %v949
    %v951 = vrot.slane %v698, %v950
    %v952 = vlaneseq
    %v953 = vshrl.u32 %v952, 7
    %v954 = vsub.s32 0, %v953
    %v955 = vrot.slane %v712, %v954
    %v956 = vlaneseq
    %v957 = vshrl.u32 %v956, 7
    %v958 = vsub.s32 0, %v957
    %v959 = vrot.slane %v720, %v958
    %v960 = vlaneseq
    %v961 = vshrl.u32 %v960, 7
    %v962 = vsub.s32 0, %v961
    %v963 = vrot.slane %v722, %v962
    %v964 = vlaneseq
    %v965 = vshrl.u32 %v964, 7
    %v966 = vsub.s32 0, %v965
    %v967 = vrot.slane %v705, %v966
    %v968 = vlaneseq
    %v969 = vshrl.u32 %v968, 7
    %v970 = vsub.s32 0, %v969
    %v971 = vrot.slane %v719, %v970
    %v972 = vlaneseq
    %v973 = vshrl.u32 %v972, 7
    %v974 = vsub.s32 0, %v973
    %v975 = vrot.slane %v721, %v974
    %v976 = vlaneseq
    %v977 = vshrl.u32 %v976, 7
    %v978 = vsub.s32 0, %v977
    %v979 = vrot.slane %v723, %v978
    %v1044 = vadd.f32 %v727, %v174
    %v1045 = vadd.f32 %v727, %v179
    %v1046 = vadd.f32 %v727, %v184
    %v1047 = vadd.f32 %v727, %v189
    %v1048 = vadd.f32 %v731, %v174
    %v1049 = vadd.f32 %v731, %v179
    %v1050 = vadd.f32 %v731, %v184
    %v1051 = vadd.f32 %v731, %v189
    %v1052 = vadd.f32 %v735, %v174
    %v1053 = vadd.f32 %v735, %v179
    %v1054 = vadd.f32 %v735, %v184
    %v1055 = vadd.f32 %v735, %v189
    %v1056 = vadd.f32 %v739, %v174
    %v1057 = vadd.f32 %v739, %v179
    %v1058 = vadd.f32 %v739, %v184
    %v1059 = vadd.f32 %v739, %v189
    %v1060 = vadd.f32 %v743, %v174
    %v1061 = vadd.f32 %v743, %v179
    %v1062 = vadd.f32 %v743, %v184
    %v1063 = vadd.f32 %v743, %v189
    %v1064 = vadd.f32 %v747, %v174
    %v1065 = vadd.f32 %v747, %v179
    %v1066 = vadd.f32 %v747, %v184
    %v1067 = vadd.f32 %v747, %v189
    %v1068 = vadd.f32 %v751, %v174
    %v1069 = vadd.f32 %v751, %v179
    %v1070 = vadd.f32 %v751, %v184
    %v1071 = vadd.f32 %v751, %v189
    %v1072 = vadd.f32 %v755, %v174
    %v1073 = vadd.f32 %v755, %v179
    %v1074 = vadd.f32 %v755, %v184
    %v1075 = vadd.f32 %v755, %v189
    %v1076 = vadd.f32 %v759, %v174
    %v1077 = vadd.f32 %v759, %v179
    %v1078 = vadd.f32 %v759, %v184
    %v1079 = vadd.f32 %v759, %v189
    %v1080 = vadd.f32 %v763, %v174
    %v1081 = vadd.f32 %v763, %v179
    %v1082 = vadd.f32 %v763, %v184
    %v1083 = vadd.f32 %v763, %v189
    %v1084 = vadd.f32 %v767, %v174
    %v1085 = vadd.f32 %v767, %v179
    %v1086 = vadd.f32 %v767, %v184
    %v1087 = vadd.f32 %v767, %v189
    %v1088 = vadd.f32 %v771, %v174
    %v1089 = vadd.f32 %v771, %v179
    %v1090 = vadd.f32 %v771, %v184
    %v1091 = vadd.f32 %v771, %v189
    %v1092 = vadd.f32 %v775, %v174
    %v1093 = vadd.f32 %v775, %v179
    %v1094 = vadd.f32 %v775, %v184
    %v1095 = vadd.f32 %v775, %v189
    %v1096 = vadd.f32 %v779, %v174
    %v1097 = vadd.f32 %v779, %v179
    %v1098 = vadd.f32 %v779, %v184
    %v1099 = vadd.f32 %v779, %v189
    %v1100 = vadd.f32 %v783, %v174
    %v1101 = vadd.f32 %v783, %v179
    %v1102 = vadd.f32 %v783, %v184
    %v1103 = vadd.f32 %v783, %v189
    %v1104 = vadd.f32 %v787, %v174
    %v1105 = vadd.f32 %v787, %v179
    %v1106 = vadd.f32 %v787, %v184
    %v1107 = vadd.f32 %v787, %v189
    %v1108 = vadd.f32 %v791, %v174
    %v1109 = vadd.f32 %v791, %v179
    %v1110 = vadd.f32 %v791, %v184
    %v1111 = vadd.f32 %v791, %v189
    %v1112 = vadd.f32 %v795, %v174
    %v1113 = vadd.f32 %v795, %v179
    %v1114 = vadd.f32 %v795, %v184
    %v1115 = vadd.f32 %v795, %v189
    %v1116 = vadd.f32 %v799, %v174
    %v1117 = vadd.f32 %v799, %v179
    %v1118 = vadd.f32 %v799, %v184
    %v1119 = vadd.f32 %v799, %v189
    %v1120 = vadd.f32 %v803, %v174
    %v1121 = vadd.f32 %v803, %v179
    %v1122 = vadd.f32 %v803, %v184
    %v1123 = vadd.f32 %v803, %v189
    %v1124 = vadd.f32 %v807, %v174
    %v1125 = vadd.f32 %v807, %v179
    %v1126 = vadd.f32 %v807, %v184
    %v1127 = vadd.f32 %v807, %v189
    %v1128 = vadd.f32 %v811, %v174
    %v1129 = vadd.f32 %v811, %v179
    %v1130 = vadd.f32 %v811, %v184
    %v1131 = vadd.f32 %v811, %v189
    %v1132 = vadd.f32 %v815, %v174
    %v1133 = vadd.f32 %v815, %v179
    %v1134 = vadd.f32 %v815, %v184
    %v1135 = vadd.f32 %v815, %v189
    %v1136 = vadd.f32 %v819, %v174
    %v1137 = vadd.f32 %v819, %v179
    %v1138 = vadd.f32 %v819, %v184
    %v1139 = vadd.f32 %v819, %v189
    %v1140 = vadd.f32 %v823, %v174
    %v1141 = vadd.f32 %v823, %v179
    %v1142 = vadd.f32 %v823, %v184
    %v1143 = vadd.f32 %v823, %v189
    %v1144 = vadd.f32 %v827, %v174
    %v1145 = vadd.f32 %v827, %v179
    %v1146 = vadd.f32 %v827, %v184
    %v1147 = vadd.f32 %v827, %v189
    %v1148 = vadd.f32 %v831, %v174
    %v1149 = vadd.f32 %v831, %v179
    %v1150 = vadd.f32 %v831, %v184
    %v1151 = vadd.f32 %v831, %v189
    %v1152 = vadd.f32 %v835, %v174
    %v1153 = vadd.f32 %v835, %v179
    %v1154 = vadd.f32 %v835, %v184
    %v1155 = vadd.f32 %v835, %v189
    %v1156 = vadd.f32 %v839, %v174
    %v1157 = vadd.f32 %v839, %v179
    %v1158 = vadd.f32 %v839, %v184
    %v1159 = vadd.f32 %v839, %v189
    %v1160 = vadd.f32 %v843, %v174
    %v1161 = vadd.f32 %v843, %v179
    %v1162 = vadd.f32 %v843, %v184
    %v1163 = vadd.f32 %v843, %v189
    %v1164 = vadd.f32 %v847, %v174
    %v1165 = vadd.f32 %v847, %v179
    %v1166 = vadd.f32 %v847, %v184
    %v1167 = vadd.f32 %v847, %v189
    %v1168 = vadd.f32 %v851, %v174
    %v1169 = vadd.f32 %v851, %v179
    %v1170 = vadd.f32 %v851, %v184
    %v1171 = vadd.f32 %v851, %v189
    %v1172 = vadd.f32 %v855, %v194
    %v1173 = vadd.f32 %v855, %v199
    %v1174 = vadd.f32 %v855, %v204
    %v1175 = vadd.f32 %v855, %v209
    %v1176 = vadd.f32 %v859, %v194
    %v1177 = vadd.f32 %v859, %v199
    %v1178 = vadd.f32 %v859, %v204
    %v1179 = vadd.f32 %v859, %v209
    %v1180 = vadd.f32 %v863, %v194
    %v1181 = vadd.f32 %v863, %v199
    %v1182 = vadd.f32 %v863, %v204
    %v1183 = vadd.f32 %v863, %v209
    %v1184 = vadd.f32 %v867, %v194
    %v1185 = vadd.f32 %v867, %v199
    %v1186 = vadd.f32 %v867, %v204
    %v1187 = vadd.f32 %v867, %v209
    %v1188 = vadd.f32 %v871, %v194
    %v1189 = vadd.f32 %v871, %v199
    %v1190 = vadd.f32 %v871, %v204
    %v1191 = vadd.f32 %v871, %v209
    %v1192 = vadd.f32 %v875, %v194
    %v1193 = vadd.f32 %v875, %v199
    %v1194 = vadd.f32 %v875, %v204
    %v1195 = vadd.f32 %v875, %v209
    %v1196 = vadd.f32 %v879, %v194
    %v1197 = vadd.f32 %v879, %v199
    %v1198 = vadd.f32 %v879, %v204
    %v1199 = vadd.f32 %v879, %v209
    %v1200 = vadd.f32 %v883, %v194
    %v1201 = vadd.f32 %v883, %v199
    %v1202 = vadd.f32 %v883, %v204
    %v1203 = vadd.f32 %v883, %v209
    %v1204 = vadd.f32 %v887, %v194
    %v1205 = vadd.f32 %v887, %v199
    %v1206 = vadd.f32 %v887, %v204
    %v1207 = vadd.f32 %v887, %v209
    %v1208 = vadd.f32 %v891, %v194
    %v1209 = vadd.f32 %v891, %v199
    %v1210 = vadd.f32 %v891, %v204
    %v1211 = vadd.f32 %v891, %v209
    %v1212 = vadd.f32 %v895, %v194
    %v1213 = vadd.f32 %v895, %v199
    %v1214 = vadd.f32 %v895, %v204
    %v1215 = vadd.f32 %v895, %v209
    %v1216 = vadd.f32 %v899, %v194
    %v1217 = vadd.f32 %v899, %v199
    %v1218 = vadd.f32 %v899, %v204
    %v1219 = vadd.f32 %v899, %v209
    %v1220 = vadd.f32 %v903, %v194
    %v1221 = vadd.f32 %v903, %v199
    %v1222 = vadd.f32 %v903, %v204
    %v1223 = vadd.f32 %v903, %v209
    %v1224 = vadd.f32 %v907, %v194
    %v1225 = vadd.f32 %v907, %v199
    %v1226 = vadd.f32 %v907, %v204
    %v1227 = vadd.f32 %v907, %v209
    %v1228 = vadd.f32 %v911, %v194
    %v1229 = vadd.f32 %v911, %v199
    %v1230 = vadd.f32 %v911, %v204
    %v1231 = vadd.f32 %v911, %v209
    %v1232 = vadd.f32 %v915, %v194
    %v1233 = vadd.f32 %v915, %v199
    %v1234 = vadd.f32 %v915, %v204
    %v1235 = vadd.f32 %v915, %v209
    %v1236 = vadd.f32 %v919, %v194
    %v1237 = vadd.f32 %v919, %v199
    %v1238 = vadd.f32 %v919, %v204
    %v1239 = vadd.f32 %v919, %v209
    %v1240 = vadd.f32 %v923, %v194
    %v1241 = vadd.f32 %v923, %v199
    %v1242 = vadd.f32 %v923, %v204
    %v1243 = vadd.f32 %v923, %v209
    %v1244 = vadd.f32 %v927, %v194
    %v1245 = vadd.f32 %v927, %v199
    %v1246 = vadd.f32 %v927, %v204
    %v1247 = vadd.f32 %v927, %v209
    %v1248 = vadd.f32 %v931, %v194
    %v1249 = vadd.f32 %v931, %v199
    %v1250 = vadd.f32 %v931, %v204
    %v1251 = vadd.f32 %v931, %v209
    %v1252 = vadd.f32 %v935, %v194
    %v1253 = vadd.f32 %v935, %v199
    %v1254 = vadd.f32 %v935, %v204
    %v1255 = vadd.f32 %v935, %v209
    %v1256 = vadd.f32 %v939, %v194
    %v1257 = vadd.f32 %v939, %v199
    %v1258 = vadd.f32 %v939, %v204
    %v1259 = vadd.f32 %v939, %v209
    %v1260 = vadd.f32 %v943, %v194
    %v1261 = vadd.f32 %v943, %v199
    %v1262 = vadd.f32 %v943, %v204
    %v1263 = vadd.f32 %v943, %v209
    %v1264 = vadd.f32 %v947, %v194
    %v1265 = vadd.f32 %v947, %v199
    %v1266 = vadd.f32 %v947, %v204
    %v1267 = vadd.f32 %v947, %v209
    %v1268 = vadd.f32 %v951, %v194
    %v1269 = vadd.f32 %v951, %v199
    %v1270 = vadd.f32 %v951, %v204
    %v1271 = vadd.f32 %v951, %v209
    %v1272 = vadd.f32 %v955, %v194
    %v1273 = vadd.f32 %v955, %v199
    %v1274 = vadd.f32 %v955, %v204
    %v1275 = vadd.f32 %v955, %v209
    %v1276 = vadd.f32 %v959, %v194
    %v1277 = vadd.f32 %v959, %v199
    %v1278 = vadd.f32 %v959, %v204
    %v1279 = vadd.f32 %v959, %v209
    %v1280 = vadd.f32 %v963, %v194
    %v1281 = vadd.f32 %v963, %v199
    %v1282 = vadd.f32 %v963, %v204
    %v1283 = vadd.f32 %v963, %v209
    %v1284 = vadd.f32 %v967, %v194
    %v1285 = vadd.f32 %v967, %v199
    %v1286 = vadd.f32 %v967, %v204
    %v1287 = vadd.f32 %v967, %v209
    %v1288 = vadd.f32 %v971, %v194
    %v1289 = vadd.f32 %v971, %v199
    %v1290 = vadd.f32 %v971, %v204
    %v1291 = vadd.f32 %v971, %v209
    %v1292 = vadd.f32 %v975, %v194
    %v1293 = vadd.f32 %v975, %v199
    %v1294 = vadd.f32 %v975, %v204
    %v1295 = vadd.f32 %v975, %v209
    %v1296 = vadd.f32 %v979, %v194
    %v1297 = vadd.f32 %v979, %v199
    %v1298 = vadd.f32 %v979, %v204
    %v1299 = vadd.f32 %v979, %v209
    %v1300 = vmax.f32 %v1044, 0.0
    %v1301 = vmax.f32 %v1045, 0.0
    %v1302 = vmax.f32 %v1046, 0.0
    %v1303 = vmax.f32 %v1047, 0.0
    %v1304 = vmax.f32 %v1048, 0.0
    %v1305 = vmax.f32 %v1049, 0.0
    %v1306 = vmax.f32 %v1050, 0.0
    %v1307 = vmax.f32 %v1051, 0.0
    %v1308 = vmax.f32 %v1052, 0.0
    %v1309 = vmax.f32 %v1053, 0.0
    %v1310 = vmax.f32 %v1054, 0.0
    %v1311 = vmax.f32 %v1055, 0.0
    %v1312 = vmax.f32 %v1056, 0.0
    %v1313 = vmax.f32 %v1057, 0.0
    %v1314 = vmax.f32 %v1058, 0.0
    %v1315 = vmax.f32 %v1059, 0.0
    %v1316 = vmax.f32 %v1060, 0.0
    %v1317 = vmax.f32 %v1061, 0.0
    %v1318 = vmax.f32 %v1062, 0.0
    %v1319 = vmax.f32 %v1063, 0.0
    %v1320 = vmax.f32 %v1064, 0.0
    %v1321 = vmax.f32 %v1065, 0.0
    %v1322 = vmax.f32 %v1066, 0.0
    %v1323 = vmax.f32 %v1067, 0.0
    %v1324 = vmax.f32 %v1068, 0.0
    %v1325 = vmax.f32 %v1069, 0.0
    %v1326 = vmax.f32 %v1070, 0.0
    %v1327 = vmax.f32 %v1071, 0.0
    %v1328 = vmax.f32 %v1072, 0.0
    %v1329 = vmax.f32 %v1073, 0.0
    %v1330 = vmax.f32 %v1074, 0.0
    %v1331 = vmax.f32 %v1075, 0.0
    %v1332 = vmax.f32 %v1076, 0.0
    %v1333 = vmax.f32 %v1077, 0.0
    %v1334 = vmax.f32 %v1078, 0.0
    %v1335 = vmax.f32 %v1079, 0.0
    %v1336 = vmax.f32 %v1080, 0.0
    %v1337 = vmax.f32 %v1081, 0.0
    %v1338 = vmax.f32 %v1082, 0.0
    %v1339 = vmax.f32 %v1083, 0.0
    %v1340 = vmax.f32 %v1084, 0.0
    %v1341 = vmax.f32 %v1085, 0.0
    %v1342 = vmax.f32 %v1086, 0.0
    %v1343 = vmax.f32 %v1087, 0.0
    %v1344 = vmax.f32 %v1088, 0.0
    %v1345 = vmax.f32 %v1089, 0.0
    %v1346 = vmax.f32 %v1090, 0.0
    %v1347 = vmax.f32 %v1091, 0.0
    %v1348 = vmax.f32 %v1092, 0.0
    %v1349 = vmax.f32 %v1093, 0.0
    %v1350 = vmax.f32 %v1094, 0.0
    %v1351 = vmax.f32 %v1095, 0.0
    %v1352 = vmax.f32 %v1096, 0.0
    %v1353 = vmax.f32 %v1097, 0.0
    %v1354 = vmax.f32 %v1098, 0.0
    %v1355 = vmax.f32 %v1099, 0.0
    %v1356 = vmax.f32 %v1100, 0.0
    %v1357 = vmax.f32 %v1101, 0.0
    %v1358 = vmax.f32 %v1102, 0.0
    %v1359 = vmax.f32 %v1103, 0.0
    %v1360 = vmax.f32 %v1104, 0.0
    %v1361 = vmax.f32 %v1105, 0.0
    %v1362 = vmax.f32 %v1106, 0.0
    %v1363 = vmax.f32 %v1107, 0.0
    %v1364 = vmax.f32 %v1108, 0.0
    %v1365 = vmax.f32 %v1109, 0.0
    %v1366 = vmax.f32 %v1110, 0.0
    %v1367 = vmax.f32 %v1111, 0.0
    %v1368 = vmax.f32 %v1112, 0.0
    %v1369 = vmax.f32 %v1113, 0.0
    %v1370 = vmax.f32 %v1114, 0.0
    %v1371 = vmax.f32 %v1115, 0.0
    %v1372 = vmax.f32 %v1116, 0.0
    %v1373 = vmax.f32 %v1117, 0.0
    %v1374 = vmax.f32 %v1118, 0.0
    %v1375 = vmax.f32 %v1119, 0.0
    %v1376 = vmax.f32 %v1120, 0.0
    %v1377 = vmax.f32 %v1121, 0.0
    %v1378 = vmax.f32 %v1122, 0.0
    %v1379 = vmax.f32 %v1123, 0.0
    %v1380 = vmax.f32 %v1124, 0.0
    %v1381 = vmax.f32 %v1125, 0.0
    %v1382 = vmax.f32 %v1126, 0.0
    %v1383 = vmax.f32 %v1127, 0.0
    %v1384 = vmax.f32 %v1128, 0.0
    %v1385 = vmax.f32 %v1129, 0.0
    %v1386 = vmax.f32 %v1130, 0.0
    %v1387 = vmax.f32 %v1131, 0.0
    %v1388 = vmax.f32 %v1132, 0.0
    %v1389 = vmax.f32 %v1133, 0.0
    %v1390 = vmax.f32 %v1134, 0.0
    %v1391 = vmax.f32 %v1135, 0.0
    %v1392 = vmax.f32 %v1136, 0.0
    %v1393 = vmax.f32 %v1137, 0.0
    %v1394 = vmax.f32 %v1138, 0.0
    %v1395 = vmax.f32 %v1139, 0.0
    %v1396 = vmax.f32 %v1140, 0.0
    %v1397 = vmax.f32 %v1141, 0.0
    %v1398 = vmax.f32 %v1142, 0.0
    %v1399 = vmax.f32 %v1143, 0.0
    %v1400 = vmax.f32 %v1144, 0.0
    %v1401 = vmax.f32 %v1145, 0.0
    %v1402 = vmax.f32 %v1146, 0.0
    %v1403 = vmax.f32 %v1147, 0.0
    %v1404 = vmax.f32 %v1148, 0.0
    %v1405 = vmax.f32 %v1149, 0.0
    %v1406 = vmax.f32 %v1150, 0.0
    %v1407 = vmax.f32 %v1151, 0.0
    %v1408 = vmax.f32 %v1152, 0.0
    %v1409 = vmax.f32 %v1153, 0.0
    %v1410 = vmax.f32 %v1154, 0.0
    %v1411 = vmax.f32 %v1155, 0.0
    %v1412 = vmax.f32 %v1156, 0.0
    %v1413 = vmax.f32 %v1157, 0.0
    %v1414 = vmax.f32 %v1158, 0.0
    %v1415 = vmax.f32 %v1159, 0.0
    %v1416 = vmax.f32 %v1160, 0.0
    %v1417 = vmax.f32 %v1161, 0.0
    %v1418 = vmax.f32 %v1162, 0.0
    %v1419 = vmax.f32 %v1163, 0.0
    %v1420 = vmax.f32 %v1164, 0.0
    %v1421 = vmax.f32 %v1165, 0.0
    %v1422 = vmax.f32 %v1166, 0.0
    %v1423 = vmax.f32 %v1167, 0.0
    %v1424 = vmax.f32 %v1168, 0.0
    %v1425 = vmax.f32 %v1169, 0.0
    %v1426 = vmax.f32 %v1170, 0.0
    %v1427 = vmax.f32 %v1171, 0.0
    %v1428 = vmax.f32 %v1172, 0.0
    %v1429 = vmax.f32 %v1173, 0.0
    %v1430 = vmax.f32 %v1174, 0.0
    %v1431 = vmax.f32 %v1175, 0.0
    %v1432 = vmax.f32 %v1176, 0.0
    %v1433 = vmax.f32 %v1177, 0.0
    %v1434 = vmax.f32 %v1178, 0.0
    %v1435 = vmax.f32 %v1179, 0.0
    %v1436 = vmax.f32 %v1180, 0.0
    %v1437 = vmax.f32 %v1181, 0.0
    %v1438 = vmax.f32 %v1182, 0.0
    %v1439 = vmax.f32 %v1183, 0.0
    %v1440 = vmax.f32 %v1184, 0.0
    %v1441 = vmax.f32 %v1185, 0.0
    %v1442 = vmax.f32 %v1186, 0.0
    %v1443 = vmax.f32 %v1187, 0.0
    %v1444 = vmax.f32 %v1188, 0.0
    %v1445 = vmax.f32 %v1189, 0.0
    %v1446 = vmax.f32 %v1190, 0.0
    %v1447 = vmax.f32 %v1191, 0.0
    %v1448 = vmax.f32 %v1192, 0.0
    %v1449 = vmax.f32 %v1193, 0.0
    %v1450 = vmax.f32 %v1194, 0.0
    %v1451 = vmax.f32 %v1195, 0.0
    %v1452 = vmax.f32 %v1196, 0.0
    %v1453 = vmax.f32 %v1197, 0.0
    %v1454 = vmax.f32 %v1198, 0.0
    %v1455 = vmax.f32 %v1199, 0.0
    %v1456 = vmax.f32 %v1200, 0.0
    %v1457 = vmax.f32 %v1201, 0.0
    %v1458 = vmax.f32 %v1202, 0.0
    %v1459 = vmax.f32 %v1203, 0.0
    %v1460 = vmax.f32 %v1204, 0.0
    %v1461 = vmax.f32 %v1205, 0.0
    %v1462 = vmax.f32 %v1206, 0.0
    %v1463 = vmax.f32 %v1207, 0.0
    %v1464 = vmax.f32 %v1208, 0.0
    %v1465 = vmax.f32 %v1209, 0.0
    %v1466 = vmax.f32 %v1210, 0.0
    %v1467 = vmax.f32 %v1211, 0.0
    %v1468 = vmax.f32 %v1212, 0.0
    %v1469 = vmax.f32 %v1213, 0.0
    %v1470 = vmax.f32 %v1214, 0.0
    %v1471 = vmax.f32 %v1215, 0.0
    %v1472 = vmax.f32 %v1216, 0.0
    %v1473 = vmax.f32 %v1217, 0.0
    %v1474 = vmax.f32 %v1218, 0.0
    %v1475 = vmax.f32 %v1219, 0.0
    %v1476 = vmax.f32 %v1220, 0.0
    %v1477 = vmax.f32 %v1221, 0.0
    %v1478 = vmax.f32 %v1222, 0.0
    %v1479 = vmax.f32 %v1223, 0.0
    %v1480 = vmax.f32 %v1224, 0.0
    %v1481 = vmax.f32 %v1225, 0.0
    %v1482 = vmax.f32 %v1226, 0.0
    %v1483 = vmax.f32 %v1227, 0.0
    %v1484 = vmax.f32 %v1228, 0.0
    %v1485 = vmax.f32 %v1229, 0.0
    %v1486 = vmax.f32 %v1230, 0.0
    %v1487 = vmax.f32 %v1231, 0.0
    %v1488 = vmax.f32 %v1232, 0.0
    %v1489 = vmax.f32 %v1233, 0.0
    %v1490 = vmax.f32 %v1234, 0.0
    %v1491 = vmax.f32 %v1235, 0.0
    %v1492 = vmax.f32 %v1236, 0.0
    %v1493 = vmax.f32 %v1237, 0.0
    %v1494 = vmax.f32 %v1238, 0.0
    %v1495 = vmax.f32 %v1239, 0.0
    %v1496 = vmax.f32 %v1240, 0.0
    %v1497 = vmax.f32 %v1241, 0.0
    %v1498 = vmax.f32 %v1242, 0.0
    %v1499 = vmax.f32 %v1243, 0.0
    %v1500 = vmax.f32 %v1244, 0.0
    %v1501 = vmax.f32 %v1245, 0.0
    %v1502 = vmax.f32 %v1246, 0.0
    %v1503 = vmax.f32 %v1247, 0.0
    %v1504 = vmax.f32 %v1248, 0.0
    %v1505 = vmax.f32 %v1249, 0.0
    %v1506 = vmax.f32 %v1250, 0.0
    %v1507 = vmax.f32 %v1251, 0.0
    %v1508 = vmax.f32 %v1252, 0.0
    %v1509 = vmax.f32 %v1253, 0.0
    %v1510 = vmax.f32 %v1254, 0.0
    %v1511 = vmax.f32 %v1255, 0.0
    %v1512 = vmax.f32 %v1256, 0.0
    %v1513 = vmax.f32 %v1257, 0.0
    %v1514 = vmax.f32 %v1258, 0.0
    %v1515 = vmax.f32 %v1259, 0.0
    %v1516 = vmax.f32 %v1260, 0.0
    %v1517 = vmax.f32 %v1261, 0.0
    %v1518 = vmax.f32 %v1262, 0.0
    %v1519 = vmax.f32 %v1263, 0.0
    %v1520 = vmax.f32 %v1264, 0.0
    %v1521 = vmax.f32 %v1265, 0.0
    %v1522 = vmax.f32 %v1266, 0.0
    %v1523 = vmax.f32 %v1267, 0.0
    %v1524 = vmax.f32 %v1268, 0.0
    %v1525 = vmax.f32 %v1269, 0.0
    %v1526 = vmax.f32 %v1270, 0.0
    %v1527 = vmax.f32 %v1271, 0.0
    %v1528 = vmax.f32 %v1272, 0.0
    %v1529 = vmax.f32 %v1273, 0.0
    %v1530 = vmax.f32 %v1274, 0.0
    %v1531 = vmax.f32 %v1275, 0.0
    %v1532 = vmax.f32 %v1276, 0.0
    %v1533 = vmax.f32 %v1277, 0.0
    %v1534 = vmax.f32 %v1278, 0.0
    %v1535 = vmax.f32 %v1279, 0.0
    %v1536 = vmax.f32 %v1280, 0.0
    %v1537 = vmax.f32 %v1281, 0.0
    %v1538 = vmax.f32 %v1282, 0.0
    %v1539 = vmax.f32 %v1283, 0.0
    %v1540 = vmax.f32 %v1284, 0.0
    %v1541 = vmax.f32 %v1285, 0.0
    %v1542 = vmax.f32 %v1286, 0.0
    %v1543 = vmax.f32 %v1287, 0.0
    %v1544 = vmax.f32 %v1288, 0.0
    %v1545 = vmax.f32 %v1289, 0.0
    %v1546 = vmax.f32 %v1290, 0.0
    %v1547 = vmax.f32 %v1291, 0.0
    %v1548 = vmax.f32 %v1292, 0.0
    %v1549 = vmax.f32 %v1293, 0.0
    %v1550 = vmax.f32 %v1294, 0.0
    %v1551 = vmax.f32 %v1295, 0.0
    %v1552 = vmax.f32 %v1296, 0.0
    %v1553 = vmax.f32 %v1297, 0.0
    %v1554 = vmax.f32 %v1298, 0.0
    %v1555 = vmax.f32 %v1299, 0.0
    %v1556 = vld [vmem:[%s4] sm:$0x1]
    %v1558 = vlaneseq
    %v1559 = vshrl.u32 %v1558, 7
    %v1560 = vsub.s32 0, %v1559
    %v1561 = vrot.slane %v1556, %v1560
    %v1563 = vmul.f32 %v1300, %v1561
    %v1564 = vmul.f32 %v1301, %v1561
    %v1565 = vmul.f32 %v1302, %v1561
    %v1566 = vmul.f32 %v1303, %v1561
    %v1567 = vmul.f32 %v1304, %v1561
    %v1568 = vmul.f32 %v1305, %v1561
    %v1569 = vmul.f32 %v1306, %v1561
    %v1570 = vmul.f32 %v1307, %v1561
    %v1571 = vmul.f32 %v1308, %v1561
    %v1572 = vmul.f32 %v1309, %v1561
    %v1573 = vmul.f32 %v1310, %v1561
    %v1574 = vmul.f32 %v1311, %v1561
    %v1575 = vmul.f32 %v1312, %v1561
    %v1576 = vmul.f32 %v1313, %v1561
    %v1577 = vmul.f32 %v1314, %v1561
    %v1578 = vmul.f32 %v1315, %v1561
    %v1579 = vmul.f32 %v1316, %v1561
    %v1580 = vmul.f32 %v1317, %v1561
    %v1581 = vmul.f32 %v1318, %v1561
    %v1582 = vmul.f32 %v1319, %v1561
    %v1583 = vmul.f32 %v1320, %v1561
    %v1584 = vmul.f32 %v1321, %v1561
    %v1585 = vmul.f32 %v1322, %v1561
    %v1586 = vmul.f32 %v1323, %v1561
    %v1587 = vmul.f32 %v1324, %v1561
    %v1588 = vmul.f32 %v1325, %v1561
    %v1589 = vmul.f32 %v1326, %v1561
    %v1590 = vmul.f32 %v1327, %v1561
    %v1591 = vmul.f32 %v1328, %v1561
    %v1592 = vmul.f32 %v1329, %v1561
    %v1593 = vmul.f32 %v1330, %v1561
    %v1594 = vmul.f32 %v1331, %v1561
    %v1595 = vmul.f32 %v1332, %v1561
    %v1596 = vmul.f32 %v1333, %v1561
    %v1597 = vmul.f32 %v1334, %v1561
    %v1598 = vmul.f32 %v1335, %v1561
    %v1599 = vmul.f32 %v1336, %v1561
    %v1600 = vmul.f32 %v1337, %v1561
    %v1601 = vmul.f32 %v1338, %v1561
    %v1602 = vmul.f32 %v1339, %v1561
    %v1603 = vmul.f32 %v1340, %v1561
    %v1604 = vmul.f32 %v1341, %v1561
    %v1605 = vmul.f32 %v1342, %v1561
    %v1606 = vmul.f32 %v1343, %v1561
    %v1607 = vmul.f32 %v1344, %v1561
    %v1608 = vmul.f32 %v1345, %v1561
    %v1609 = vmul.f32 %v1346, %v1561
    %v1610 = vmul.f32 %v1347, %v1561
    %v1611 = vmul.f32 %v1348, %v1561
    %v1612 = vmul.f32 %v1349, %v1561
    %v1613 = vmul.f32 %v1350, %v1561
    %v1614 = vmul.f32 %v1351, %v1561
    %v1615 = vmul.f32 %v1352, %v1561
    %v1616 = vmul.f32 %v1353, %v1561
    %v1617 = vmul.f32 %v1354, %v1561
    %v1618 = vmul.f32 %v1355, %v1561
    %v1619 = vmul.f32 %v1356, %v1561
    %v1620 = vmul.f32 %v1357, %v1561
    %v1621 = vmul.f32 %v1358, %v1561
    %v1622 = vmul.f32 %v1359, %v1561
    %v1623 = vmul.f32 %v1360, %v1561
    %v1624 = vmul.f32 %v1361, %v1561
    %v1625 = vmul.f32 %v1362, %v1561
    %v1626 = vmul.f32 %v1363, %v1561
    %v1627 = vmul.f32 %v1364, %v1561
    %v1628 = vmul.f32 %v1365, %v1561
    %v1629 = vmul.f32 %v1366, %v1561
    %v1630 = vmul.f32 %v1367, %v1561
    %v1631 = vmul.f32 %v1368, %v1561
    %v1632 = vmul.f32 %v1369, %v1561
    %v1633 = vmul.f32 %v1370, %v1561
    %v1634 = vmul.f32 %v1371, %v1561
    %v1635 = vmul.f32 %v1372, %v1561
    %v1636 = vmul.f32 %v1373, %v1561
    %v1637 = vmul.f32 %v1374, %v1561
    %v1638 = vmul.f32 %v1375, %v1561
    %v1639 = vmul.f32 %v1376, %v1561
    %v1640 = vmul.f32 %v1377, %v1561
    %v1641 = vmul.f32 %v1378, %v1561
    %v1642 = vmul.f32 %v1379, %v1561
    %v1643 = vmul.f32 %v1380, %v1561
    %v1644 = vmul.f32 %v1381, %v1561
    %v1645 = vmul.f32 %v1382, %v1561
    %v1646 = vmul.f32 %v1383, %v1561
    %v1647 = vmul.f32 %v1384, %v1561
    %v1648 = vmul.f32 %v1385, %v1561
    %v1649 = vmul.f32 %v1386, %v1561
    %v1650 = vmul.f32 %v1387, %v1561
    %v1651 = vmul.f32 %v1388, %v1561
    %v1652 = vmul.f32 %v1389, %v1561
    %v1653 = vmul.f32 %v1390, %v1561
    %v1654 = vmul.f32 %v1391, %v1561
    %v1655 = vmul.f32 %v1392, %v1561
    %v1656 = vmul.f32 %v1393, %v1561
    %v1657 = vmul.f32 %v1394, %v1561
    %v1658 = vmul.f32 %v1395, %v1561
    %v1659 = vmul.f32 %v1396, %v1561
    %v1660 = vmul.f32 %v1397, %v1561
    %v1661 = vmul.f32 %v1398, %v1561
    %v1662 = vmul.f32 %v1399, %v1561
    %v1663 = vmul.f32 %v1400, %v1561
    %v1664 = vmul.f32 %v1401, %v1561
    %v1665 = vmul.f32 %v1402, %v1561
    %v1666 = vmul.f32 %v1403, %v1561
    %v1667 = vmul.f32 %v1404, %v1561
    %v1668 = vmul.f32 %v1405, %v1561
    %v1669 = vmul.f32 %v1406, %v1561
    %v1670 = vmul.f32 %v1407, %v1561
    %v1671 = vmul.f32 %v1408, %v1561
    %v1672 = vmul.f32 %v1409, %v1561
    %v1673 = vmul.f32 %v1410, %v1561
    %v1674 = vmul.f32 %v1411, %v1561
    %v1675 = vmul.f32 %v1412, %v1561
    %v1676 = vmul.f32 %v1413, %v1561
    %v1677 = vmul.f32 %v1414, %v1561
    %v1678 = vmul.f32 %v1415, %v1561
    %v1679 = vmul.f32 %v1416, %v1561
    %v1680 = vmul.f32 %v1417, %v1561
    %v1681 = vmul.f32 %v1418, %v1561
    %v1682 = vmul.f32 %v1419, %v1561
    %v1683 = vmul.f32 %v1420, %v1561
    %v1684 = vmul.f32 %v1421, %v1561
    %v1685 = vmul.f32 %v1422, %v1561
    %v1686 = vmul.f32 %v1423, %v1561
    %v1687 = vmul.f32 %v1424, %v1561
    %v1688 = vmul.f32 %v1425, %v1561
    %v1689 = vmul.f32 %v1426, %v1561
    %v1690 = vmul.f32 %v1427, %v1561
    %v1691 = vmul.f32 %v1428, %v1561
    %v1692 = vmul.f32 %v1429, %v1561
    %v1693 = vmul.f32 %v1430, %v1561
    %v1694 = vmul.f32 %v1431, %v1561
    %v1695 = vmul.f32 %v1432, %v1561
    %v1696 = vmul.f32 %v1433, %v1561
    %v1697 = vmul.f32 %v1434, %v1561
    %v1698 = vmul.f32 %v1435, %v1561
    %v1699 = vmul.f32 %v1436, %v1561
    %v1700 = vmul.f32 %v1437, %v1561
    %v1701 = vmul.f32 %v1438, %v1561
    %v1702 = vmul.f32 %v1439, %v1561
    %v1703 = vmul.f32 %v1440, %v1561
    %v1704 = vmul.f32 %v1441, %v1561
    %v1705 = vmul.f32 %v1442, %v1561
    %v1706 = vmul.f32 %v1443, %v1561
    %v1707 = vmul.f32 %v1444, %v1561
    %v1708 = vmul.f32 %v1445, %v1561
    %v1709 = vmul.f32 %v1446, %v1561
    %v1710 = vmul.f32 %v1447, %v1561
    %v1711 = vmul.f32 %v1448, %v1561
    %v1712 = vmul.f32 %v1449, %v1561
    %v1713 = vmul.f32 %v1450, %v1561
    %v1714 = vmul.f32 %v1451, %v1561
    %v1715 = vmul.f32 %v1452, %v1561
    %v1716 = vmul.f32 %v1453, %v1561
    %v1717 = vmul.f32 %v1454, %v1561
    %v1718 = vmul.f32 %v1455, %v1561
    %v1719 = vmul.f32 %v1456, %v1561
    %v1720 = vmul.f32 %v1457, %v1561
    %v1721 = vmul.f32 %v1458, %v1561
    %v1722 = vmul.f32 %v1459, %v1561
    %v1723 = vmul.f32 %v1460, %v1561
    %v1724 = vmul.f32 %v1461, %v1561
    %v1725 = vmul.f32 %v1462, %v1561
    %v1726 = vmul.f32 %v1463, %v1561
    %v1727 = vmul.f32 %v1464, %v1561
    %v1728 = vmul.f32 %v1465, %v1561
    %v1729 = vmul.f32 %v1466, %v1561
    %v1730 = vmul.f32 %v1467, %v1561
    %v1731 = vmul.f32 %v1468, %v1561
    %v1732 = vmul.f32 %v1469, %v1561
    %v1733 = vmul.f32 %v1470, %v1561
    %v1734 = vmul.f32 %v1471, %v1561
    %v1735 = vmul.f32 %v1472, %v1561
    %v1736 = vmul.f32 %v1473, %v1561
    %v1737 = vmul.f32 %v1474, %v1561
    %v1738 = vmul.f32 %v1475, %v1561
    %v1739 = vmul.f32 %v1476, %v1561
    %v1740 = vmul.f32 %v1477, %v1561
    %v1741 = vmul.f32 %v1478, %v1561
    %v1742 = vmul.f32 %v1479, %v1561
    %v1743 = vmul.f32 %v1480, %v1561
    %v1744 = vmul.f32 %v1481, %v1561
    %v1745 = vmul.f32 %v1482, %v1561
    %v1746 = vmul.f32 %v1483, %v1561
    %v1747 = vmul.f32 %v1484, %v1561
    %v1748 = vmul.f32 %v1485, %v1561
    %v1749 = vmul.f32 %v1486, %v1561
    %v1750 = vmul.f32 %v1487, %v1561
    %v1751 = vmul.f32 %v1488, %v1561
    %v1752 = vmul.f32 %v1489, %v1561
    %v1753 = vmul.f32 %v1490, %v1561
    %v1754 = vmul.f32 %v1491, %v1561
    %v1755 = vmul.f32 %v1492, %v1561
    %v1756 = vmul.f32 %v1493, %v1561
    %v1757 = vmul.f32 %v1494, %v1561
    %v1758 = vmul.f32 %v1495, %v1561
    %v1759 = vmul.f32 %v1496, %v1561
    %v1760 = vmul.f32 %v1497, %v1561
    %v1761 = vmul.f32 %v1498, %v1561
    %v1762 = vmul.f32 %v1499, %v1561
    %v1763 = vmul.f32 %v1500, %v1561
    %v1764 = vmul.f32 %v1501, %v1561
    %v1765 = vmul.f32 %v1502, %v1561
    %v1766 = vmul.f32 %v1503, %v1561
    %v1767 = vmul.f32 %v1504, %v1561
    %v1768 = vmul.f32 %v1505, %v1561
    %v1769 = vmul.f32 %v1506, %v1561
    %v1770 = vmul.f32 %v1507, %v1561
    %v1771 = vmul.f32 %v1508, %v1561
    %v1772 = vmul.f32 %v1509, %v1561
    %v1773 = vmul.f32 %v1510, %v1561
    %v1774 = vmul.f32 %v1511, %v1561
    %v1775 = vmul.f32 %v1512, %v1561
    %v1776 = vmul.f32 %v1513, %v1561
    %v1777 = vmul.f32 %v1514, %v1561
    %v1778 = vmul.f32 %v1515, %v1561
    %v1779 = vmul.f32 %v1516, %v1561
    %v1780 = vmul.f32 %v1517, %v1561
    %v1781 = vmul.f32 %v1518, %v1561
    %v1782 = vmul.f32 %v1519, %v1561
    %v1783 = vmul.f32 %v1520, %v1561
    %v1784 = vmul.f32 %v1521, %v1561
    %v1785 = vmul.f32 %v1522, %v1561
    %v1786 = vmul.f32 %v1523, %v1561
    %v1787 = vmul.f32 %v1524, %v1561
    %v1788 = vmul.f32 %v1525, %v1561
    %v1789 = vmul.f32 %v1526, %v1561
    %v1790 = vmul.f32 %v1527, %v1561
    %v1791 = vmul.f32 %v1528, %v1561
    %v1792 = vmul.f32 %v1529, %v1561
    %v1793 = vmul.f32 %v1530, %v1561
    %v1794 = vmul.f32 %v1531, %v1561
    %v1795 = vmul.f32 %v1532, %v1561
    %v1796 = vmul.f32 %v1533, %v1561
    %v1797 = vmul.f32 %v1534, %v1561
    %v1798 = vmul.f32 %v1535, %v1561
    %v1799 = vmul.f32 %v1536, %v1561
    %v1800 = vmul.f32 %v1537, %v1561
    %v1801 = vmul.f32 %v1538, %v1561
    %v1802 = vmul.f32 %v1539, %v1561
    %v1803 = vmul.f32 %v1540, %v1561
    %v1804 = vmul.f32 %v1541, %v1561
    %v1805 = vmul.f32 %v1542, %v1561
    %v1806 = vmul.f32 %v1543, %v1561
    %v1807 = vmul.f32 %v1544, %v1561
    %v1808 = vmul.f32 %v1545, %v1561
    %v1809 = vmul.f32 %v1546, %v1561
    %v1810 = vmul.f32 %v1547, %v1561
    %v1811 = vmul.f32 %v1548, %v1561
    %v1812 = vmul.f32 %v1549, %v1561
    %v1813 = vmul.f32 %v1550, %v1561
    %v1814 = vmul.f32 %v1551, %v1561
    %v1815 = vmul.f32 %v1552, %v1561
    %v1816 = vmul.f32 %v1553, %v1561
    %v1817 = vmul.f32 %v1554, %v1561
    %v1818 = vmul.f32 %v1555, %v1561
    %v1819 = vsel %vm82, %v1563, 0.0
    %1820 = vadd.xlane.f32.xlu0 %v1819
    %v1821 = vpop.xlane.xlu0 %1820
    %v1822 = vsel %vm82, %v1564, 0.0
    %1823 = vadd.xlane.f32.xlu0 %v1822
    %v1824 = vpop.xlane.xlu0 %1823
    %v1825 = vsel %vm82, %v1565, 0.0
    %1826 = vadd.xlane.f32.xlu0 %v1825
    %v1827 = vpop.xlane.xlu0 %1826
    %v1828 = vsel %vm82, %v1566, 0.0
    %1829 = vadd.xlane.f32.xlu0 %v1828
    %v1830 = vpop.xlane.xlu0 %1829
    %v1831 = vsel %vm82, %v1567, 0.0
    %1832 = vadd.xlane.f32.xlu0 %v1831
    %v1833 = vpop.xlane.xlu0 %1832
    %v1834 = vsel %vm82, %v1568, 0.0
    %1835 = vadd.xlane.f32.xlu0 %v1834
    %v1836 = vpop.xlane.xlu0 %1835
    %v1837 = vsel %vm82, %v1569, 0.0
    %1838 = vadd.xlane.f32.xlu0 %v1837
    %v1839 = vpop.xlane.xlu0 %1838
    %v1840 = vsel %vm82, %v1570, 0.0
    %1841 = vadd.xlane.f32.xlu0 %v1840
    %v1842 = vpop.xlane.xlu0 %1841
    %v1843 = vsel %vm82, %v1571, 0.0
    %1844 = vadd.xlane.f32.xlu0 %v1843
    %v1845 = vpop.xlane.xlu0 %1844
    %v1846 = vsel %vm82, %v1572, 0.0
    %1847 = vadd.xlane.f32.xlu0 %v1846
    %v1848 = vpop.xlane.xlu0 %1847
    %v1849 = vsel %vm82, %v1573, 0.0
    %1850 = vadd.xlane.f32.xlu0 %v1849
    %v1851 = vpop.xlane.xlu0 %1850
    %v1852 = vsel %vm82, %v1574, 0.0
    %1853 = vadd.xlane.f32.xlu0 %v1852
    %v1854 = vpop.xlane.xlu0 %1853
    %v1855 = vsel %vm82, %v1575, 0.0
    %1856 = vadd.xlane.f32.xlu0 %v1855
    %v1857 = vpop.xlane.xlu0 %1856
    %v1858 = vsel %vm82, %v1576, 0.0
    %1859 = vadd.xlane.f32.xlu0 %v1858
    %v1860 = vpop.xlane.xlu0 %1859
    %v1861 = vsel %vm82, %v1577, 0.0
    %1862 = vadd.xlane.f32.xlu0 %v1861
    %v1863 = vpop.xlane.xlu0 %1862
    %v1864 = vsel %vm82, %v1578, 0.0
    %1865 = vadd.xlane.f32.xlu0 %v1864
    %v1866 = vpop.xlane.xlu0 %1865
    %v1867 = vsel %vm82, %v1579, 0.0
    %1868 = vadd.xlane.f32.xlu0 %v1867
    %v1869 = vpop.xlane.xlu0 %1868
    %v1870 = vsel %vm82, %v1580, 0.0
    %1871 = vadd.xlane.f32.xlu0 %v1870
    %v1872 = vpop.xlane.xlu0 %1871
    %v1873 = vsel %vm82, %v1581, 0.0
    %1874 = vadd.xlane.f32.xlu0 %v1873
    %v1875 = vpop.xlane.xlu0 %1874
    %v1876 = vsel %vm82, %v1582, 0.0
    %1877 = vadd.xlane.f32.xlu0 %v1876
    %v1878 = vpop.xlane.xlu0 %1877
    %v1879 = vsel %vm82, %v1583, 0.0
    %1880 = vadd.xlane.f32.xlu0 %v1879
    %v1881 = vpop.xlane.xlu0 %1880
    %v1882 = vsel %vm82, %v1584, 0.0
    %1883 = vadd.xlane.f32.xlu0 %v1882
    %v1884 = vpop.xlane.xlu0 %1883
    %v1885 = vsel %vm82, %v1585, 0.0
    %1886 = vadd.xlane.f32.xlu0 %v1885
    %v1887 = vpop.xlane.xlu0 %1886
    %v1888 = vsel %vm82, %v1586, 0.0
    %1889 = vadd.xlane.f32.xlu0 %v1888
    %v1890 = vpop.xlane.xlu0 %1889
    %v1891 = vsel %vm82, %v1587, 0.0
    %1892 = vadd.xlane.f32.xlu0 %v1891
    %v1893 = vpop.xlane.xlu0 %1892
    %v1894 = vsel %vm82, %v1588, 0.0
    %1895 = vadd.xlane.f32.xlu0 %v1894
    %v1896 = vpop.xlane.xlu0 %1895
    %v1897 = vsel %vm82, %v1589, 0.0
    %1898 = vadd.xlane.f32.xlu0 %v1897
    %v1899 = vpop.xlane.xlu0 %1898
    %v1900 = vsel %vm82, %v1590, 0.0
    %1901 = vadd.xlane.f32.xlu0 %v1900
    %v1902 = vpop.xlane.xlu0 %1901
    %v1903 = vsel %vm82, %v1591, 0.0
    %1904 = vadd.xlane.f32.xlu0 %v1903
    %v1905 = vpop.xlane.xlu0 %1904
    %v1906 = vsel %vm82, %v1592, 0.0
    %1907 = vadd.xlane.f32.xlu0 %v1906
    %v1908 = vpop.xlane.xlu0 %1907
    %v1909 = vsel %vm82, %v1593, 0.0
    %1910 = vadd.xlane.f32.xlu0 %v1909
    %v1911 = vpop.xlane.xlu0 %1910
    %v1912 = vsel %vm82, %v1594, 0.0
    %1913 = vadd.xlane.f32.xlu0 %v1912
    %v1914 = vpop.xlane.xlu0 %1913
    %v1915 = vsel %vm82, %v1595, 0.0
    %1916 = vadd.xlane.f32.xlu0 %v1915
    %v1917 = vpop.xlane.xlu0 %1916
    %v1918 = vsel %vm82, %v1596, 0.0
    %1919 = vadd.xlane.f32.xlu0 %v1918
    %v1920 = vpop.xlane.xlu0 %1919
    %v1921 = vsel %vm82, %v1597, 0.0
    %1922 = vadd.xlane.f32.xlu0 %v1921
    %v1923 = vpop.xlane.xlu0 %1922
    %v1924 = vsel %vm82, %v1598, 0.0
    %1925 = vadd.xlane.f32.xlu0 %v1924
    %v1926 = vpop.xlane.xlu0 %1925
    %v1927 = vsel %vm82, %v1599, 0.0
    %1928 = vadd.xlane.f32.xlu0 %v1927
    %v1929 = vpop.xlane.xlu0 %1928
    %v1930 = vsel %vm82, %v1600, 0.0
    %1931 = vadd.xlane.f32.xlu0 %v1930
    %v1932 = vpop.xlane.xlu0 %1931
    %v1933 = vsel %vm82, %v1601, 0.0
    %1934 = vadd.xlane.f32.xlu0 %v1933
    %v1935 = vpop.xlane.xlu0 %1934
    %v1936 = vsel %vm82, %v1602, 0.0
    %1937 = vadd.xlane.f32.xlu0 %v1936
    %v1938 = vpop.xlane.xlu0 %1937
    %v1939 = vsel %vm82, %v1603, 0.0
    %1940 = vadd.xlane.f32.xlu0 %v1939
    %v1941 = vpop.xlane.xlu0 %1940
    %v1942 = vsel %vm82, %v1604, 0.0
    %1943 = vadd.xlane.f32.xlu0 %v1942
    %v1944 = vpop.xlane.xlu0 %1943
    %v1945 = vsel %vm82, %v1605, 0.0
    %1946 = vadd.xlane.f32.xlu0 %v1945
    %v1947 = vpop.xlane.xlu0 %1946
    %v1948 = vsel %vm82, %v1606, 0.0
    %1949 = vadd.xlane.f32.xlu0 %v1948
    %v1950 = vpop.xlane.xlu0 %1949
    %v1951 = vsel %vm82, %v1607, 0.0
    %1952 = vadd.xlane.f32.xlu0 %v1951
    %v1953 = vpop.xlane.xlu0 %1952
    %v1954 = vsel %vm82, %v1608, 0.0
    %1955 = vadd.xlane.f32.xlu0 %v1954
    %v1956 = vpop.xlane.xlu0 %1955
    %v1957 = vsel %vm82, %v1609, 0.0
    %1958 = vadd.xlane.f32.xlu0 %v1957
    %v1959 = vpop.xlane.xlu0 %1958
    %v1960 = vsel %vm82, %v1610, 0.0
    %1961 = vadd.xlane.f32.xlu0 %v1960
    %v1962 = vpop.xlane.xlu0 %1961
    %v1963 = vsel %vm82, %v1611, 0.0
    %1964 = vadd.xlane.f32.xlu0 %v1963
    %v1965 = vpop.xlane.xlu0 %1964
    %v1966 = vsel %vm82, %v1612, 0.0
    %1967 = vadd.xlane.f32.xlu0 %v1966
    %v1968 = vpop.xlane.xlu0 %1967
    %v1969 = vsel %vm82, %v1613, 0.0
    %1970 = vadd.xlane.f32.xlu0 %v1969
    %v1971 = vpop.xlane.xlu0 %1970
    %v1972 = vsel %vm82, %v1614, 0.0
    %1973 = vadd.xlane.f32.xlu0 %v1972
    %v1974 = vpop.xlane.xlu0 %1973
    %v1975 = vsel %vm82, %v1615, 0.0
    %1976 = vadd.xlane.f32.xlu0 %v1975
    %v1977 = vpop.xlane.xlu0 %1976
    %v1978 = vsel %vm82, %v1616, 0.0
    %1979 = vadd.xlane.f32.xlu0 %v1978
    %v1980 = vpop.xlane.xlu0 %1979
    %v1981 = vsel %vm82, %v1617, 0.0
    %1982 = vadd.xlane.f32.xlu0 %v1981
    %v1983 = vpop.xlane.xlu0 %1982
    %v1984 = vsel %vm82, %v1618, 0.0
    %1985 = vadd.xlane.f32.xlu0 %v1984
    %v1986 = vpop.xlane.xlu0 %1985
    %v1987 = vsel %vm82, %v1619, 0.0
    %1988 = vadd.xlane.f32.xlu0 %v1987
    %v1989 = vpop.xlane.xlu0 %1988
    %v1990 = vsel %vm82, %v1620, 0.0
    %1991 = vadd.xlane.f32.xlu0 %v1990
    %v1992 = vpop.xlane.xlu0 %1991
    %v1993 = vsel %vm82, %v1621, 0.0
    %1994 = vadd.xlane.f32.xlu0 %v1993
    %v1995 = vpop.xlane.xlu0 %1994
    %v1996 = vsel %vm82, %v1622, 0.0
    %1997 = vadd.xlane.f32.xlu0 %v1996
    %v1998 = vpop.xlane.xlu0 %1997
    %v1999 = vsel %vm82, %v1623, 0.0
    %2000 = vadd.xlane.f32.xlu0 %v1999
    %v2001 = vpop.xlane.xlu0 %2000
    %v2002 = vsel %vm82, %v1624, 0.0
    %2003 = vadd.xlane.f32.xlu0 %v2002
    %v2004 = vpop.xlane.xlu0 %2003
    %v2005 = vsel %vm82, %v1625, 0.0
    %2006 = vadd.xlane.f32.xlu0 %v2005
    %v2007 = vpop.xlane.xlu0 %2006
    %v2008 = vsel %vm82, %v1626, 0.0
    %2009 = vadd.xlane.f32.xlu0 %v2008
    %v2010 = vpop.xlane.xlu0 %2009
    %v2011 = vsel %vm82, %v1627, 0.0
    %2012 = vadd.xlane.f32.xlu0 %v2011
    %v2013 = vpop.xlane.xlu0 %2012
    %v2014 = vsel %vm82, %v1628, 0.0
    %2015 = vadd.xlane.f32.xlu0 %v2014
    %v2016 = vpop.xlane.xlu0 %2015
    %v2017 = vsel %vm82, %v1629, 0.0
    %2018 = vadd.xlane.f32.xlu0 %v2017
    %v2019 = vpop.xlane.xlu0 %2018
    %v2020 = vsel %vm82, %v1630, 0.0
    %2021 = vadd.xlane.f32.xlu0 %v2020
    %v2022 = vpop.xlane.xlu0 %2021
    %v2023 = vsel %vm82, %v1631, 0.0
    %2024 = vadd.xlane.f32.xlu0 %v2023
    %v2025 = vpop.xlane.xlu0 %2024
    %v2026 = vsel %vm82, %v1632, 0.0
    %2027 = vadd.xlane.f32.xlu0 %v2026
    %v2028 = vpop.xlane.xlu0 %2027
    %v2029 = vsel %vm82, %v1633, 0.0
    %2030 = vadd.xlane.f32.xlu0 %v2029
    %v2031 = vpop.xlane.xlu0 %2030
    %v2032 = vsel %vm82, %v1634, 0.0
    %2033 = vadd.xlane.f32.xlu0 %v2032
    %v2034 = vpop.xlane.xlu0 %2033
    %v2035 = vsel %vm82, %v1635, 0.0
    %2036 = vadd.xlane.f32.xlu0 %v2035
    %v2037 = vpop.xlane.xlu0 %2036
    %v2038 = vsel %vm82, %v1636, 0.0
    %2039 = vadd.xlane.f32.xlu0 %v2038
    %v2040 = vpop.xlane.xlu0 %2039
    %v2041 = vsel %vm82, %v1637, 0.0
    %2042 = vadd.xlane.f32.xlu0 %v2041
    %v2043 = vpop.xlane.xlu0 %2042
    %v2044 = vsel %vm82, %v1638, 0.0
    %2045 = vadd.xlane.f32.xlu0 %v2044
    %v2046 = vpop.xlane.xlu0 %2045
    %v2047 = vsel %vm82, %v1639, 0.0
    %2048 = vadd.xlane.f32.xlu0 %v2047
    %v2049 = vpop.xlane.xlu0 %2048
    %v2050 = vsel %vm82, %v1640, 0.0
    %2051 = vadd.xlane.f32.xlu0 %v2050
    %v2052 = vpop.xlane.xlu0 %2051
    %v2053 = vsel %vm82, %v1641, 0.0
    %2054 = vadd.xlane.f32.xlu0 %v2053
    %v2055 = vpop.xlane.xlu0 %2054
    %v2056 = vsel %vm82, %v1642, 0.0
    %2057 = vadd.xlane.f32.xlu0 %v2056
    %v2058 = vpop.xlane.xlu0 %2057
    %v2059 = vsel %vm82, %v1643, 0.0
    %2060 = vadd.xlane.f32.xlu0 %v2059
    %v2061 = vpop.xlane.xlu0 %2060
    %v2062 = vsel %vm82, %v1644, 0.0
    %2063 = vadd.xlane.f32.xlu0 %v2062
    %v2064 = vpop.xlane.xlu0 %2063
    %v2065 = vsel %vm82, %v1645, 0.0
    %2066 = vadd.xlane.f32.xlu0 %v2065
    %v2067 = vpop.xlane.xlu0 %2066
    %v2068 = vsel %vm82, %v1646, 0.0
    %2069 = vadd.xlane.f32.xlu0 %v2068
    %v2070 = vpop.xlane.xlu0 %2069
    %v2071 = vsel %vm82, %v1647, 0.0
    %2072 = vadd.xlane.f32.xlu0 %v2071
    %v2073 = vpop.xlane.xlu0 %2072
    %v2074 = vsel %vm82, %v1648, 0.0
    %2075 = vadd.xlane.f32.xlu0 %v2074
    %v2076 = vpop.xlane.xlu0 %2075
    %v2077 = vsel %vm82, %v1649, 0.0
    %2078 = vadd.xlane.f32.xlu0 %v2077
    %v2079 = vpop.xlane.xlu0 %2078
    %v2080 = vsel %vm82, %v1650, 0.0
    %2081 = vadd.xlane.f32.xlu0 %v2080
    %v2082 = vpop.xlane.xlu0 %2081
    %v2083 = vsel %vm82, %v1651, 0.0
    %2084 = vadd.xlane.f32.xlu0 %v2083
    %v2085 = vpop.xlane.xlu0 %2084
    %v2086 = vsel %vm82, %v1652, 0.0
    %2087 = vadd.xlane.f32.xlu0 %v2086
    %v2088 = vpop.xlane.xlu0 %2087
    %v2089 = vsel %vm82, %v1653, 0.0
    %2090 = vadd.xlane.f32.xlu0 %v2089
    %v2091 = vpop.xlane.xlu0 %2090
    %v2092 = vsel %vm82, %v1654, 0.0
    %2093 = vadd.xlane.f32.xlu0 %v2092
    %v2094 = vpop.xlane.xlu0 %2093
    %v2095 = vsel %vm82, %v1655, 0.0
    %2096 = vadd.xlane.f32.xlu0 %v2095
    %v2097 = vpop.xlane.xlu0 %2096
    %v2098 = vsel %vm82, %v1656, 0.0
    %2099 = vadd.xlane.f32.xlu0 %v2098
    %v2100 = vpop.xlane.xlu0 %2099
    %v2101 = vsel %vm82, %v1657, 0.0
    %2102 = vadd.xlane.f32.xlu0 %v2101
    %v2103 = vpop.xlane.xlu0 %2102
    %v2104 = vsel %vm82, %v1658, 0.0
    %2105 = vadd.xlane.f32.xlu0 %v2104
    %v2106 = vpop.xlane.xlu0 %2105
    %v2107 = vsel %vm82, %v1659, 0.0
    %2108 = vadd.xlane.f32.xlu0 %v2107
    %v2109 = vpop.xlane.xlu0 %2108
    %v2110 = vsel %vm82, %v1660, 0.0
    %2111 = vadd.xlane.f32.xlu0 %v2110
    %v2112 = vpop.xlane.xlu0 %2111
    %v2113 = vsel %vm82, %v1661, 0.0
    %2114 = vadd.xlane.f32.xlu0 %v2113
    %v2115 = vpop.xlane.xlu0 %2114
    %v2116 = vsel %vm82, %v1662, 0.0
    %2117 = vadd.xlane.f32.xlu0 %v2116
    %v2118 = vpop.xlane.xlu0 %2117
    %v2119 = vsel %vm82, %v1663, 0.0
    %2120 = vadd.xlane.f32.xlu0 %v2119
    %v2121 = vpop.xlane.xlu0 %2120
    %v2122 = vsel %vm82, %v1664, 0.0
    %2123 = vadd.xlane.f32.xlu0 %v2122
    %v2124 = vpop.xlane.xlu0 %2123
    %v2125 = vsel %vm82, %v1665, 0.0
    %2126 = vadd.xlane.f32.xlu0 %v2125
    %v2127 = vpop.xlane.xlu0 %2126
    %v2128 = vsel %vm82, %v1666, 0.0
    %2129 = vadd.xlane.f32.xlu0 %v2128
    %v2130 = vpop.xlane.xlu0 %2129
    %v2131 = vsel %vm82, %v1667, 0.0
    %2132 = vadd.xlane.f32.xlu0 %v2131
    %v2133 = vpop.xlane.xlu0 %2132
    %v2134 = vsel %vm82, %v1668, 0.0
    %2135 = vadd.xlane.f32.xlu0 %v2134
    %v2136 = vpop.xlane.xlu0 %2135
    %v2137 = vsel %vm82, %v1669, 0.0
    %2138 = vadd.xlane.f32.xlu0 %v2137
    %v2139 = vpop.xlane.xlu0 %2138
    %v2140 = vsel %vm82, %v1670, 0.0
    %2141 = vadd.xlane.f32.xlu0 %v2140
    %v2142 = vpop.xlane.xlu0 %2141
    %v2143 = vsel %vm82, %v1671, 0.0
    %2144 = vadd.xlane.f32.xlu0 %v2143
    %v2145 = vpop.xlane.xlu0 %2144
    %v2146 = vsel %vm82, %v1672, 0.0
    %2147 = vadd.xlane.f32.xlu0 %v2146
    %v2148 = vpop.xlane.xlu0 %2147
    %v2149 = vsel %vm82, %v1673, 0.0
    %2150 = vadd.xlane.f32.xlu0 %v2149
    %v2151 = vpop.xlane.xlu0 %2150
    %v2152 = vsel %vm82, %v1674, 0.0
    %2153 = vadd.xlane.f32.xlu0 %v2152
    %v2154 = vpop.xlane.xlu0 %2153
    %v2155 = vsel %vm82, %v1675, 0.0
    %2156 = vadd.xlane.f32.xlu0 %v2155
    %v2157 = vpop.xlane.xlu0 %2156
    %v2158 = vsel %vm82, %v1676, 0.0
    %2159 = vadd.xlane.f32.xlu0 %v2158
    %v2160 = vpop.xlane.xlu0 %2159
    %v2161 = vsel %vm82, %v1677, 0.0
    %2162 = vadd.xlane.f32.xlu0 %v2161
    %v2163 = vpop.xlane.xlu0 %2162
    %v2164 = vsel %vm82, %v1678, 0.0
    %2165 = vadd.xlane.f32.xlu0 %v2164
    %v2166 = vpop.xlane.xlu0 %2165
    %v2167 = vsel %vm82, %v1679, 0.0
    %2168 = vadd.xlane.f32.xlu0 %v2167
    %v2169 = vpop.xlane.xlu0 %2168
    %v2170 = vsel %vm82, %v1680, 0.0
    %2171 = vadd.xlane.f32.xlu0 %v2170
    %v2172 = vpop.xlane.xlu0 %2171
    %v2173 = vsel %vm82, %v1681, 0.0
    %2174 = vadd.xlane.f32.xlu0 %v2173
    %v2175 = vpop.xlane.xlu0 %2174
    %v2176 = vsel %vm82, %v1682, 0.0
    %2177 = vadd.xlane.f32.xlu0 %v2176
    %v2178 = vpop.xlane.xlu0 %2177
    %v2179 = vsel %vm82, %v1683, 0.0
    %2180 = vadd.xlane.f32.xlu0 %v2179
    %v2181 = vpop.xlane.xlu0 %2180
    %v2182 = vsel %vm82, %v1684, 0.0
    %2183 = vadd.xlane.f32.xlu0 %v2182
    %v2184 = vpop.xlane.xlu0 %2183
    %v2185 = vsel %vm82, %v1685, 0.0
    %2186 = vadd.xlane.f32.xlu0 %v2185
    %v2187 = vpop.xlane.xlu0 %2186
    %v2188 = vsel %vm82, %v1686, 0.0
    %2189 = vadd.xlane.f32.xlu0 %v2188
    %v2190 = vpop.xlane.xlu0 %2189
    %v2191 = vsel %vm82, %v1687, 0.0
    %2192 = vadd.xlane.f32.xlu0 %v2191
    %v2193 = vpop.xlane.xlu0 %2192
    %v2194 = vsel %vm82, %v1688, 0.0
    %2195 = vadd.xlane.f32.xlu0 %v2194
    %v2196 = vpop.xlane.xlu0 %2195
    %v2197 = vsel %vm82, %v1689, 0.0
    %2198 = vadd.xlane.f32.xlu0 %v2197
    %v2199 = vpop.xlane.xlu0 %2198
    %v2200 = vsel %vm82, %v1690, 0.0
    %2201 = vadd.xlane.f32.xlu0 %v2200
    %v2202 = vpop.xlane.xlu0 %2201
    %v2203 = vsel %vm82, %v1691, 0.0
    %2204 = vadd.xlane.f32.xlu0 %v2203
    %v2205 = vpop.xlane.xlu0 %2204
    %v2206 = vsel %vm82, %v1692, 0.0
    %2207 = vadd.xlane.f32.xlu0 %v2206
    %v2208 = vpop.xlane.xlu0 %2207
    %v2209 = vsel %vm82, %v1693, 0.0
    %2210 = vadd.xlane.f32.xlu0 %v2209
    %v2211 = vpop.xlane.xlu0 %2210
    %v2212 = vsel %vm82, %v1694, 0.0
    %2213 = vadd.xlane.f32.xlu0 %v2212
    %v2214 = vpop.xlane.xlu0 %2213
    %v2215 = vsel %vm82, %v1695, 0.0
    %2216 = vadd.xlane.f32.xlu0 %v2215
    %v2217 = vpop.xlane.xlu0 %2216
    %v2218 = vsel %vm82, %v1696, 0.0
    %2219 = vadd.xlane.f32.xlu0 %v2218
    %v2220 = vpop.xlane.xlu0 %2219
    %v2221 = vsel %vm82, %v1697, 0.0
    %2222 = vadd.xlane.f32.xlu0 %v2221
    %v2223 = vpop.xlane.xlu0 %2222
    %v2224 = vsel %vm82, %v1698, 0.0
    %2225 = vadd.xlane.f32.xlu0 %v2224
    %v2226 = vpop.xlane.xlu0 %2225
    %v2227 = vsel %vm82, %v1699, 0.0
    %2228 = vadd.xlane.f32.xlu0 %v2227
    %v2229 = vpop.xlane.xlu0 %2228
    %v2230 = vsel %vm82, %v1700, 0.0
    %2231 = vadd.xlane.f32.xlu0 %v2230
    %v2232 = vpop.xlane.xlu0 %2231
    %v2233 = vsel %vm82, %v1701, 0.0
    %2234 = vadd.xlane.f32.xlu0 %v2233
    %v2235 = vpop.xlane.xlu0 %2234
    %v2236 = vsel %vm82, %v1702, 0.0
    %2237 = vadd.xlane.f32.xlu0 %v2236
    %v2238 = vpop.xlane.xlu0 %2237
    %v2239 = vsel %vm82, %v1703, 0.0
    %2240 = vadd.xlane.f32.xlu0 %v2239
    %v2241 = vpop.xlane.xlu0 %2240
    %v2242 = vsel %vm82, %v1704, 0.0
    %2243 = vadd.xlane.f32.xlu0 %v2242
    %v2244 = vpop.xlane.xlu0 %2243
    %v2245 = vsel %vm82, %v1705, 0.0
    %2246 = vadd.xlane.f32.xlu0 %v2245
    %v2247 = vpop.xlane.xlu0 %2246
    %v2248 = vsel %vm82, %v1706, 0.0
    %2249 = vadd.xlane.f32.xlu0 %v2248
    %v2250 = vpop.xlane.xlu0 %2249
    %v2251 = vsel %vm82, %v1707, 0.0
    %2252 = vadd.xlane.f32.xlu0 %v2251
    %v2253 = vpop.xlane.xlu0 %2252
    %v2254 = vsel %vm82, %v1708, 0.0
    %2255 = vadd.xlane.f32.xlu0 %v2254
    %v2256 = vpop.xlane.xlu0 %2255
    %v2257 = vsel %vm82, %v1709, 0.0
    %2258 = vadd.xlane.f32.xlu0 %v2257
    %v2259 = vpop.xlane.xlu0 %2258
    %v2260 = vsel %vm82, %v1710, 0.0
    %2261 = vadd.xlane.f32.xlu0 %v2260
    %v2262 = vpop.xlane.xlu0 %2261
    %v2263 = vsel %vm82, %v1711, 0.0
    %2264 = vadd.xlane.f32.xlu0 %v2263
    %v2265 = vpop.xlane.xlu0 %2264
    %v2266 = vsel %vm82, %v1712, 0.0
    %2267 = vadd.xlane.f32.xlu0 %v2266
    %v2268 = vpop.xlane.xlu0 %2267
    %v2269 = vsel %vm82, %v1713, 0.0
    %2270 = vadd.xlane.f32.xlu0 %v2269
    %v2271 = vpop.xlane.xlu0 %2270
    %v2272 = vsel %vm82, %v1714, 0.0
    %2273 = vadd.xlane.f32.xlu0 %v2272
    %v2274 = vpop.xlane.xlu0 %2273
    %v2275 = vsel %vm82, %v1715, 0.0
    %2276 = vadd.xlane.f32.xlu0 %v2275
    %v2277 = vpop.xlane.xlu0 %2276
    %v2278 = vsel %vm82, %v1716, 0.0
    %2279 = vadd.xlane.f32.xlu0 %v2278
    %v2280 = vpop.xlane.xlu0 %2279
    %v2281 = vsel %vm82, %v1717, 0.0
    %2282 = vadd.xlane.f32.xlu0 %v2281
    %v2283 = vpop.xlane.xlu0 %2282
    %v2284 = vsel %vm82, %v1718, 0.0
    %2285 = vadd.xlane.f32.xlu0 %v2284
    %v2286 = vpop.xlane.xlu0 %2285
    %v2287 = vsel %vm82, %v1719, 0.0
    %2288 = vadd.xlane.f32.xlu0 %v2287
    %v2289 = vpop.xlane.xlu0 %2288
    %v2290 = vsel %vm82, %v1720, 0.0
    %2291 = vadd.xlane.f32.xlu0 %v2290
    %v2292 = vpop.xlane.xlu0 %2291
    %v2293 = vsel %vm82, %v1721, 0.0
    %2294 = vadd.xlane.f32.xlu0 %v2293
    %v2295 = vpop.xlane.xlu0 %2294
    %v2296 = vsel %vm82, %v1722, 0.0
    %2297 = vadd.xlane.f32.xlu0 %v2296
    %v2298 = vpop.xlane.xlu0 %2297
    %v2299 = vsel %vm82, %v1723, 0.0
    %2300 = vadd.xlane.f32.xlu0 %v2299
    %v2301 = vpop.xlane.xlu0 %2300
    %v2302 = vsel %vm82, %v1724, 0.0
    %2303 = vadd.xlane.f32.xlu0 %v2302
    %v2304 = vpop.xlane.xlu0 %2303
    %v2305 = vsel %vm82, %v1725, 0.0
    %2306 = vadd.xlane.f32.xlu0 %v2305
    %v2307 = vpop.xlane.xlu0 %2306
    %v2308 = vsel %vm82, %v1726, 0.0
    %2309 = vadd.xlane.f32.xlu0 %v2308
    %v2310 = vpop.xlane.xlu0 %2309
    %v2311 = vsel %vm82, %v1727, 0.0
    %2312 = vadd.xlane.f32.xlu0 %v2311
    %v2313 = vpop.xlane.xlu0 %2312
    %v2314 = vsel %vm82, %v1728, 0.0
    %2315 = vadd.xlane.f32.xlu0 %v2314
    %v2316 = vpop.xlane.xlu0 %2315
    %v2317 = vsel %vm82, %v1729, 0.0
    %2318 = vadd.xlane.f32.xlu0 %v2317
    %v2319 = vpop.xlane.xlu0 %2318
    %v2320 = vsel %vm82, %v1730, 0.0
    %2321 = vadd.xlane.f32.xlu0 %v2320
    %v2322 = vpop.xlane.xlu0 %2321
    %v2323 = vsel %vm82, %v1731, 0.0
    %2324 = vadd.xlane.f32.xlu0 %v2323
    %v2325 = vpop.xlane.xlu0 %2324
    %v2326 = vsel %vm82, %v1732, 0.0
    %2327 = vadd.xlane.f32.xlu0 %v2326
    %v2328 = vpop.xlane.xlu0 %2327
    %v2329 = vsel %vm82, %v1733, 0.0
    %2330 = vadd.xlane.f32.xlu0 %v2329
    %v2331 = vpop.xlane.xlu0 %2330
    %v2332 = vsel %vm82, %v1734, 0.0
    %2333 = vadd.xlane.f32.xlu0 %v2332
    %v2334 = vpop.xlane.xlu0 %2333
    %v2335 = vsel %vm82, %v1735, 0.0
    %2336 = vadd.xlane.f32.xlu0 %v2335
    %v2337 = vpop.xlane.xlu0 %2336
    %v2338 = vsel %vm82, %v1736, 0.0
    %2339 = vadd.xlane.f32.xlu0 %v2338
    %v2340 = vpop.xlane.xlu0 %2339
    %v2341 = vsel %vm82, %v1737, 0.0
    %2342 = vadd.xlane.f32.xlu0 %v2341
    %v2343 = vpop.xlane.xlu0 %2342
    %v2344 = vsel %vm82, %v1738, 0.0
    %2345 = vadd.xlane.f32.xlu0 %v2344
    %v2346 = vpop.xlane.xlu0 %2345
    %v2347 = vsel %vm82, %v1739, 0.0
    %2348 = vadd.xlane.f32.xlu0 %v2347
    %v2349 = vpop.xlane.xlu0 %2348
    %v2350 = vsel %vm82, %v1740, 0.0
    %2351 = vadd.xlane.f32.xlu0 %v2350
    %v2352 = vpop.xlane.xlu0 %2351
    %v2353 = vsel %vm82, %v1741, 0.0
    %2354 = vadd.xlane.f32.xlu0 %v2353
    %v2355 = vpop.xlane.xlu0 %2354
    %v2356 = vsel %vm82, %v1742, 0.0
    %2357 = vadd.xlane.f32.xlu0 %v2356
    %v2358 = vpop.xlane.xlu0 %2357
    %v2359 = vsel %vm82, %v1743, 0.0
    %2360 = vadd.xlane.f32.xlu0 %v2359
    %v2361 = vpop.xlane.xlu0 %2360
    %v2362 = vsel %vm82, %v1744, 0.0
    %2363 = vadd.xlane.f32.xlu0 %v2362
    %v2364 = vpop.xlane.xlu0 %2363
    %v2365 = vsel %vm82, %v1745, 0.0
    %2366 = vadd.xlane.f32.xlu0 %v2365
    %v2367 = vpop.xlane.xlu0 %2366
    %v2368 = vsel %vm82, %v1746, 0.0
    %2369 = vadd.xlane.f32.xlu0 %v2368
    %v2370 = vpop.xlane.xlu0 %2369
    %v2371 = vsel %vm82, %v1747, 0.0
    %2372 = vadd.xlane.f32.xlu0 %v2371
    %v2373 = vpop.xlane.xlu0 %2372
    %v2374 = vsel %vm82, %v1748, 0.0
    %2375 = vadd.xlane.f32.xlu0 %v2374
    %v2376 = vpop.xlane.xlu0 %2375
    %v2377 = vsel %vm82, %v1749, 0.0
    %2378 = vadd.xlane.f32.xlu0 %v2377
    %v2379 = vpop.xlane.xlu0 %2378
    %v2380 = vsel %vm82, %v1750, 0.0
    %2381 = vadd.xlane.f32.xlu0 %v2380
    %v2382 = vpop.xlane.xlu0 %2381
    %v2383 = vsel %vm82, %v1751, 0.0
    %2384 = vadd.xlane.f32.xlu0 %v2383
    %v2385 = vpop.xlane.xlu0 %2384
    %v2386 = vsel %vm82, %v1752, 0.0
    %2387 = vadd.xlane.f32.xlu0 %v2386
    %v2388 = vpop.xlane.xlu0 %2387
    %v2389 = vsel %vm82, %v1753, 0.0
    %2390 = vadd.xlane.f32.xlu0 %v2389
    %v2391 = vpop.xlane.xlu0 %2390
    %v2392 = vsel %vm82, %v1754, 0.0
    %2393 = vadd.xlane.f32.xlu0 %v2392
    %v2394 = vpop.xlane.xlu0 %2393
    %v2395 = vsel %vm82, %v1755, 0.0
    %2396 = vadd.xlane.f32.xlu0 %v2395
    %v2397 = vpop.xlane.xlu0 %2396
    %v2398 = vsel %vm82, %v1756, 0.0
    %2399 = vadd.xlane.f32.xlu0 %v2398
    %v2400 = vpop.xlane.xlu0 %2399
    %v2401 = vsel %vm82, %v1757, 0.0
    %2402 = vadd.xlane.f32.xlu0 %v2401
    %v2403 = vpop.xlane.xlu0 %2402
    %v2404 = vsel %vm82, %v1758, 0.0
    %2405 = vadd.xlane.f32.xlu0 %v2404
    %v2406 = vpop.xlane.xlu0 %2405
    %v2407 = vsel %vm82, %v1759, 0.0
    %2408 = vadd.xlane.f32.xlu0 %v2407
    %v2409 = vpop.xlane.xlu0 %2408
    %v2410 = vsel %vm82, %v1760, 0.0
    %2411 = vadd.xlane.f32.xlu0 %v2410
    %v2412 = vpop.xlane.xlu0 %2411
    %v2413 = vsel %vm82, %v1761, 0.0
    %2414 = vadd.xlane.f32.xlu0 %v2413
    %v2415 = vpop.xlane.xlu0 %2414
    %v2416 = vsel %vm82, %v1762, 0.0
    %2417 = vadd.xlane.f32.xlu0 %v2416
    %v2418 = vpop.xlane.xlu0 %2417
    %v2419 = vsel %vm82, %v1763, 0.0
    %2420 = vadd.xlane.f32.xlu0 %v2419
    %v2421 = vpop.xlane.xlu0 %2420
    %v2422 = vsel %vm82, %v1764, 0.0
    %2423 = vadd.xlane.f32.xlu0 %v2422
    %v2424 = vpop.xlane.xlu0 %2423
    %v2425 = vsel %vm82, %v1765, 0.0
    %2426 = vadd.xlane.f32.xlu0 %v2425
    %v2427 = vpop.xlane.xlu0 %2426
    %v2428 = vsel %vm82, %v1766, 0.0
    %2429 = vadd.xlane.f32.xlu0 %v2428
    %v2430 = vpop.xlane.xlu0 %2429
    %v2431 = vsel %vm82, %v1767, 0.0
    %2432 = vadd.xlane.f32.xlu0 %v2431
    %v2433 = vpop.xlane.xlu0 %2432
    %v2434 = vsel %vm82, %v1768, 0.0
    %2435 = vadd.xlane.f32.xlu0 %v2434
    %v2436 = vpop.xlane.xlu0 %2435
    %v2437 = vsel %vm82, %v1769, 0.0
    %2438 = vadd.xlane.f32.xlu0 %v2437
    %v2439 = vpop.xlane.xlu0 %2438
    %v2440 = vsel %vm82, %v1770, 0.0
    %2441 = vadd.xlane.f32.xlu0 %v2440
    %v2442 = vpop.xlane.xlu0 %2441
    %v2443 = vsel %vm82, %v1771, 0.0
    %2444 = vadd.xlane.f32.xlu0 %v2443
    %v2445 = vpop.xlane.xlu0 %2444
    %v2446 = vsel %vm82, %v1772, 0.0
    %2447 = vadd.xlane.f32.xlu0 %v2446
    %v2448 = vpop.xlane.xlu0 %2447
    %v2449 = vsel %vm82, %v1773, 0.0
    %2450 = vadd.xlane.f32.xlu0 %v2449
    %v2451 = vpop.xlane.xlu0 %2450
    %v2452 = vsel %vm82, %v1774, 0.0
    %2453 = vadd.xlane.f32.xlu0 %v2452
    %v2454 = vpop.xlane.xlu0 %2453
    %v2455 = vsel %vm82, %v1775, 0.0
    %2456 = vadd.xlane.f32.xlu0 %v2455
    %v2457 = vpop.xlane.xlu0 %2456
    %v2458 = vsel %vm82, %v1776, 0.0
    %2459 = vadd.xlane.f32.xlu0 %v2458
    %v2460 = vpop.xlane.xlu0 %2459
    %v2461 = vsel %vm82, %v1777, 0.0
    %2462 = vadd.xlane.f32.xlu0 %v2461
    %v2463 = vpop.xlane.xlu0 %2462
    %v2464 = vsel %vm82, %v1778, 0.0
    %2465 = vadd.xlane.f32.xlu0 %v2464
    %v2466 = vpop.xlane.xlu0 %2465
    %v2467 = vsel %vm82, %v1779, 0.0
    %2468 = vadd.xlane.f32.xlu0 %v2467
    %v2469 = vpop.xlane.xlu0 %2468
    %v2470 = vsel %vm82, %v1780, 0.0
    %2471 = vadd.xlane.f32.xlu0 %v2470
    %v2472 = vpop.xlane.xlu0 %2471
    %v2473 = vsel %vm82, %v1781, 0.0
    %2474 = vadd.xlane.f32.xlu0 %v2473
    %v2475 = vpop.xlane.xlu0 %2474
    %v2476 = vsel %vm82, %v1782, 0.0
    %2477 = vadd.xlane.f32.xlu0 %v2476
    %v2478 = vpop.xlane.xlu0 %2477
    %v2479 = vsel %vm82, %v1783, 0.0
    %2480 = vadd.xlane.f32.xlu0 %v2479
    %v2481 = vpop.xlane.xlu0 %2480
    %v2482 = vsel %vm82, %v1784, 0.0
    %2483 = vadd.xlane.f32.xlu0 %v2482
    %v2484 = vpop.xlane.xlu0 %2483
    %v2485 = vsel %vm82, %v1785, 0.0
    %2486 = vadd.xlane.f32.xlu0 %v2485
    %v2487 = vpop.xlane.xlu0 %2486
    %v2488 = vsel %vm82, %v1786, 0.0
    %2489 = vadd.xlane.f32.xlu0 %v2488
    %v2490 = vpop.xlane.xlu0 %2489
    %v2491 = vsel %vm82, %v1787, 0.0
    %2492 = vadd.xlane.f32.xlu0 %v2491
    %v2493 = vpop.xlane.xlu0 %2492
    %v2494 = vsel %vm82, %v1788, 0.0
    %2495 = vadd.xlane.f32.xlu0 %v2494
    %v2496 = vpop.xlane.xlu0 %2495
    %v2497 = vsel %vm82, %v1789, 0.0
    %2498 = vadd.xlane.f32.xlu0 %v2497
    %v2499 = vpop.xlane.xlu0 %2498
    %v2500 = vsel %vm82, %v1790, 0.0
    %2501 = vadd.xlane.f32.xlu0 %v2500
    %v2502 = vpop.xlane.xlu0 %2501
    %v2503 = vsel %vm82, %v1791, 0.0
    %2504 = vadd.xlane.f32.xlu0 %v2503
    %v2505 = vpop.xlane.xlu0 %2504
    %v2506 = vsel %vm82, %v1792, 0.0
    %2507 = vadd.xlane.f32.xlu0 %v2506
    %v2508 = vpop.xlane.xlu0 %2507
    %v2509 = vsel %vm82, %v1793, 0.0
    %2510 = vadd.xlane.f32.xlu0 %v2509
    %v2511 = vpop.xlane.xlu0 %2510
    %v2512 = vsel %vm82, %v1794, 0.0
    %2513 = vadd.xlane.f32.xlu0 %v2512
    %v2514 = vpop.xlane.xlu0 %2513
    %v2515 = vsel %vm82, %v1795, 0.0
    %2516 = vadd.xlane.f32.xlu0 %v2515
    %v2517 = vpop.xlane.xlu0 %2516
    %v2518 = vsel %vm82, %v1796, 0.0
    %2519 = vadd.xlane.f32.xlu0 %v2518
    %v2520 = vpop.xlane.xlu0 %2519
    %v2521 = vsel %vm82, %v1797, 0.0
    %2522 = vadd.xlane.f32.xlu0 %v2521
    %v2523 = vpop.xlane.xlu0 %2522
    %v2524 = vsel %vm82, %v1798, 0.0
    %2525 = vadd.xlane.f32.xlu0 %v2524
    %v2526 = vpop.xlane.xlu0 %2525
    %v2527 = vsel %vm82, %v1799, 0.0
    %2528 = vadd.xlane.f32.xlu0 %v2527
    %v2529 = vpop.xlane.xlu0 %2528
    %v2530 = vsel %vm82, %v1800, 0.0
    %2531 = vadd.xlane.f32.xlu0 %v2530
    %v2532 = vpop.xlane.xlu0 %2531
    %v2533 = vsel %vm82, %v1801, 0.0
    %2534 = vadd.xlane.f32.xlu0 %v2533
    %v2535 = vpop.xlane.xlu0 %2534
    %v2536 = vsel %vm82, %v1802, 0.0
    %2537 = vadd.xlane.f32.xlu0 %v2536
    %v2538 = vpop.xlane.xlu0 %2537
    %v2539 = vsel %vm82, %v1803, 0.0
    %2540 = vadd.xlane.f32.xlu0 %v2539
    %v2541 = vpop.xlane.xlu0 %2540
    %v2542 = vsel %vm82, %v1804, 0.0
    %2543 = vadd.xlane.f32.xlu0 %v2542
    %v2544 = vpop.xlane.xlu0 %2543
    %v2545 = vsel %vm82, %v1805, 0.0
    %2546 = vadd.xlane.f32.xlu0 %v2545
    %v2547 = vpop.xlane.xlu0 %2546
    %v2548 = vsel %vm82, %v1806, 0.0
    %2549 = vadd.xlane.f32.xlu0 %v2548
    %v2550 = vpop.xlane.xlu0 %2549
    %v2551 = vsel %vm82, %v1807, 0.0
    %2552 = vadd.xlane.f32.xlu0 %v2551
    %v2553 = vpop.xlane.xlu0 %2552
    %v2554 = vsel %vm82, %v1808, 0.0
    %2555 = vadd.xlane.f32.xlu0 %v2554
    %v2556 = vpop.xlane.xlu0 %2555
    %v2557 = vsel %vm82, %v1809, 0.0
    %2558 = vadd.xlane.f32.xlu0 %v2557
    %v2559 = vpop.xlane.xlu0 %2558
    %v2560 = vsel %vm82, %v1810, 0.0
    %2561 = vadd.xlane.f32.xlu0 %v2560
    %v2562 = vpop.xlane.xlu0 %2561
    %v2563 = vsel %vm82, %v1811, 0.0
    %2564 = vadd.xlane.f32.xlu0 %v2563
    %v2565 = vpop.xlane.xlu0 %2564
    %v2566 = vsel %vm82, %v1812, 0.0
    %2567 = vadd.xlane.f32.xlu0 %v2566
    %v2568 = vpop.xlane.xlu0 %2567
    %v2569 = vsel %vm82, %v1813, 0.0
    %2570 = vadd.xlane.f32.xlu0 %v2569
    %v2571 = vpop.xlane.xlu0 %2570
    %v2572 = vsel %vm82, %v1814, 0.0
    %2573 = vadd.xlane.f32.xlu0 %v2572
    %v2574 = vpop.xlane.xlu0 %2573
    %v2575 = vsel %vm82, %v1815, 0.0
    %2576 = vadd.xlane.f32.xlu0 %v2575
    %v2577 = vpop.xlane.xlu0 %2576
    %v2578 = vsel %vm82, %v1816, 0.0
    %2579 = vadd.xlane.f32.xlu0 %v2578
    %v2580 = vpop.xlane.xlu0 %2579
    %v2581 = vsel %vm82, %v1817, 0.0
    %2582 = vadd.xlane.f32.xlu0 %v2581
    %v2583 = vpop.xlane.xlu0 %2582
    %v2584 = vsel %vm82, %v1818, 0.0
    %2585 = vadd.xlane.f32.xlu0 %v2584
    %v2586 = vpop.xlane.xlu0 %2585
    %s2587 = sld [smem:[#allocation2]]
    %v2588 = vstv %s2587
    %v2589 = vadd.f32 %v1821, %v2588
    %v2590 = vadd.f32 %v1824, %v2588
    %v2591 = vadd.f32 %v1827, %v2588
    %v2592 = vadd.f32 %v1830, %v2588
    %v2593 = vadd.f32 %v1833, %v2588
    %v2594 = vadd.f32 %v1836, %v2588
    %v2595 = vadd.f32 %v1839, %v2588
    %v2596 = vadd.f32 %v1842, %v2588
    %v2597 = vadd.f32 %v1845, %v2588
    %v2598 = vadd.f32 %v1848, %v2588
    %v2599 = vadd.f32 %v1851, %v2588
    %v2600 = vadd.f32 %v1854, %v2588
    %v2601 = vadd.f32 %v1857, %v2588
    %v2602 = vadd.f32 %v1860, %v2588
    %v2603 = vadd.f32 %v1863, %v2588
    %v2604 = vadd.f32 %v1866, %v2588
    %v2605 = vadd.f32 %v1869, %v2588
    %v2606 = vadd.f32 %v1872, %v2588
    %v2607 = vadd.f32 %v1875, %v2588
    %v2608 = vadd.f32 %v1878, %v2588
    %v2609 = vadd.f32 %v1881, %v2588
    %v2610 = vadd.f32 %v1884, %v2588
    %v2611 = vadd.f32 %v1887, %v2588
    %v2612 = vadd.f32 %v1890, %v2588
    %v2613 = vadd.f32 %v1893, %v2588
    %v2614 = vadd.f32 %v1896, %v2588
    %v2615 = vadd.f32 %v1899, %v2588
    %v2616 = vadd.f32 %v1902, %v2588
    %v2617 = vadd.f32 %v1905, %v2588
    %v2618 = vadd.f32 %v1908, %v2588
    %v2619 = vadd.f32 %v1911, %v2588
    %v2620 = vadd.f32 %v1914, %v2588
    %v2621 = vadd.f32 %v1917, %v2588
    %v2622 = vadd.f32 %v1920, %v2588
    %v2623 = vadd.f32 %v1923, %v2588
    %v2624 = vadd.f32 %v1926, %v2588
    %v2625 = vadd.f32 %v1929, %v2588
    %v2626 = vadd.f32 %v1932, %v2588
    %v2627 = vadd.f32 %v1935, %v2588
    %v2628 = vadd.f32 %v1938, %v2588
    %v2629 = vadd.f32 %v1941, %v2588
    %v2630 = vadd.f32 %v1944, %v2588
    %v2631 = vadd.f32 %v1947, %v2588
    %v2632 = vadd.f32 %v1950, %v2588
    %v2633 = vadd.f32 %v1953, %v2588
    %v2634 = vadd.f32 %v1956, %v2588
    %v2635 = vadd.f32 %v1959, %v2588
    %v2636 = vadd.f32 %v1962, %v2588
    %v2637 = vadd.f32 %v1965, %v2588
    %v2638 = vadd.f32 %v1968, %v2588
    %v2639 = vadd.f32 %v1971, %v2588
    %v2640 = vadd.f32 %v1974, %v2588
    %v2641 = vadd.f32 %v1977, %v2588
    %v2642 = vadd.f32 %v1980, %v2588
    %v2643 = vadd.f32 %v1983, %v2588
    %v2644 = vadd.f32 %v1986, %v2588
    %v2645 = vadd.f32 %v1989, %v2588
    %v2646 = vadd.f32 %v1992, %v2588
    %v2647 = vadd.f32 %v1995, %v2588
    %v2648 = vadd.f32 %v1998, %v2588
    %v2649 = vadd.f32 %v2001, %v2588
    %v2650 = vadd.f32 %v2004, %v2588
    %v2651 = vadd.f32 %v2007, %v2588
    %v2652 = vadd.f32 %v2010, %v2588
    %v2653 = vadd.f32 %v2013, %v2588
    %v2654 = vadd.f32 %v2016, %v2588
    %v2655 = vadd.f32 %v2019, %v2588
    %v2656 = vadd.f32 %v2022, %v2588
    %v2657 = vadd.f32 %v2025, %v2588
    %v2658 = vadd.f32 %v2028, %v2588
    %v2659 = vadd.f32 %v2031, %v2588
    %v2660 = vadd.f32 %v2034, %v2588
    %v2661 = vadd.f32 %v2037, %v2588
    %v2662 = vadd.f32 %v2040, %v2588
    %v2663 = vadd.f32 %v2043, %v2588
    %v2664 = vadd.f32 %v2046, %v2588
    %v2665 = vadd.f32 %v2049, %v2588
    %v2666 = vadd.f32 %v2052, %v2588
    %v2667 = vadd.f32 %v2055, %v2588
    %v2668 = vadd.f32 %v2058, %v2588
    %v2669 = vadd.f32 %v2061, %v2588
    %v2670 = vadd.f32 %v2064, %v2588
    %v2671 = vadd.f32 %v2067, %v2588
    %v2672 = vadd.f32 %v2070, %v2588
    %v2673 = vadd.f32 %v2073, %v2588
    %v2674 = vadd.f32 %v2076, %v2588
    %v2675 = vadd.f32 %v2079, %v2588
    %v2676 = vadd.f32 %v2082, %v2588
    %v2677 = vadd.f32 %v2085, %v2588
    %v2678 = vadd.f32 %v2088, %v2588
    %v2679 = vadd.f32 %v2091, %v2588
    %v2680 = vadd.f32 %v2094, %v2588
    %v2681 = vadd.f32 %v2097, %v2588
    %v2682 = vadd.f32 %v2100, %v2588
    %v2683 = vadd.f32 %v2103, %v2588
    %v2684 = vadd.f32 %v2106, %v2588
    %v2685 = vadd.f32 %v2109, %v2588
    %v2686 = vadd.f32 %v2112, %v2588
    %v2687 = vadd.f32 %v2115, %v2588
    %v2688 = vadd.f32 %v2118, %v2588
    %v2689 = vadd.f32 %v2121, %v2588
    %v2690 = vadd.f32 %v2124, %v2588
    %v2691 = vadd.f32 %v2127, %v2588
    %v2692 = vadd.f32 %v2130, %v2588
    %v2693 = vadd.f32 %v2133, %v2588
    %v2694 = vadd.f32 %v2136, %v2588
    %v2695 = vadd.f32 %v2139, %v2588
    %v2696 = vadd.f32 %v2142, %v2588
    %v2697 = vadd.f32 %v2145, %v2588
    %v2698 = vadd.f32 %v2148, %v2588
    %v2699 = vadd.f32 %v2151, %v2588
    %v2700 = vadd.f32 %v2154, %v2588
    %v2701 = vadd.f32 %v2157, %v2588
    %v2702 = vadd.f32 %v2160, %v2588
    %v2703 = vadd.f32 %v2163, %v2588
    %v2704 = vadd.f32 %v2166, %v2588
    %v2705 = vadd.f32 %v2169, %v2588
    %v2706 = vadd.f32 %v2172, %v2588
    %v2707 = vadd.f32 %v2175, %v2588
    %v2708 = vadd.f32 %v2178, %v2588
    %v2709 = vadd.f32 %v2181, %v2588
    %v2710 = vadd.f32 %v2184, %v2588
    %v2711 = vadd.f32 %v2187, %v2588
    %v2712 = vadd.f32 %v2190, %v2588
    %v2713 = vadd.f32 %v2193, %v2588
    %v2714 = vadd.f32 %v2196, %v2588
    %v2715 = vadd.f32 %v2199, %v2588
    %v2716 = vadd.f32 %v2202, %v2588
    %v2717 = vadd.f32 %v2205, %v2588
    %v2718 = vadd.f32 %v2208, %v2588
    %v2719 = vadd.f32 %v2211, %v2588
    %v2720 = vadd.f32 %v2214, %v2588
    %v2721 = vadd.f32 %v2217, %v2588
    %v2722 = vadd.f32 %v2220, %v2588
    %v2723 = vadd.f32 %v2223, %v2588
    %v2724 = vadd.f32 %v2226, %v2588
    %v2725 = vadd.f32 %v2229, %v2588
    %v2726 = vadd.f32 %v2232, %v2588
    %v2727 = vadd.f32 %v2235, %v2588
    %v2728 = vadd.f32 %v2238, %v2588
    %v2729 = vadd.f32 %v2241, %v2588
    %v2730 = vadd.f32 %v2244, %v2588
    %v2731 = vadd.f32 %v2247, %v2588
    %v2732 = vadd.f32 %v2250, %v2588
    %v2733 = vadd.f32 %v2253, %v2588
    %v2734 = vadd.f32 %v2256, %v2588
    %v2735 = vadd.f32 %v2259, %v2588
    %v2736 = vadd.f32 %v2262, %v2588
    %v2737 = vadd.f32 %v2265, %v2588
    %v2738 = vadd.f32 %v2268, %v2588
    %v2739 = vadd.f32 %v2271, %v2588
    %v2740 = vadd.f32 %v2274, %v2588
    %v2741 = vadd.f32 %v2277, %v2588
    %v2742 = vadd.f32 %v2280, %v2588
    %v2743 = vadd.f32 %v2283, %v2588
    %v2744 = vadd.f32 %v2286, %v2588
    %v2745 = vadd.f32 %v2289, %v2588
    %v2746 = vadd.f32 %v2292, %v2588
    %v2747 = vadd.f32 %v2295, %v2588
    %v2748 = vadd.f32 %v2298, %v2588
    %v2749 = vadd.f32 %v2301, %v2588
    %v2750 = vadd.f32 %v2304, %v2588
    %v2751 = vadd.f32 %v2307, %v2588
    %v2752 = vadd.f32 %v2310, %v2588
    %v2753 = vadd.f32 %v2313, %v2588
    %v2754 = vadd.f32 %v2316, %v2588
    %v2755 = vadd.f32 %v2319, %v2588
    %v2756 = vadd.f32 %v2322, %v2588
    %v2757 = vadd.f32 %v2325, %v2588
    %v2758 = vadd.f32 %v2328, %v2588
    %v2759 = vadd.f32 %v2331, %v2588
    %v2760 = vadd.f32 %v2334, %v2588
    %v2761 = vadd.f32 %v2337, %v2588
    %v2762 = vadd.f32 %v2340, %v2588
    %v2763 = vadd.f32 %v2343, %v2588
    %v2764 = vadd.f32 %v2346, %v2588
    %v2765 = vadd.f32 %v2349, %v2588
    %v2766 = vadd.f32 %v2352, %v2588
    %v2767 = vadd.f32 %v2355, %v2588
    %v2768 = vadd.f32 %v2358, %v2588
    %v2769 = vadd.f32 %v2361, %v2588
    %v2770 = vadd.f32 %v2364, %v2588
    %v2771 = vadd.f32 %v2367, %v2588
    %v2772 = vadd.f32 %v2370, %v2588
    %v2773 = vadd.f32 %v2373, %v2588
    %v2774 = vadd.f32 %v2376, %v2588
    %v2775 = vadd.f32 %v2379, %v2588
    %v2776 = vadd.f32 %v2382, %v2588
    %v2777 = vadd.f32 %v2385, %v2588
    %v2778 = vadd.f32 %v2388, %v2588
    %v2779 = vadd.f32 %v2391, %v2588
    %v2780 = vadd.f32 %v2394, %v2588
    %v2781 = vadd.f32 %v2397, %v2588
    %v2782 = vadd.f32 %v2400, %v2588
    %v2783 = vadd.f32 %v2403, %v2588
    %v2784 = vadd.f32 %v2406, %v2588
    %v2785 = vadd.f32 %v2409, %v2588
    %v2786 = vadd.f32 %v2412, %v2588
    %v2787 = vadd.f32 %v2415, %v2588
    %v2788 = vadd.f32 %v2418, %v2588
    %v2789 = vadd.f32 %v2421, %v2588
    %v2790 = vadd.f32 %v2424, %v2588
    %v2791 = vadd.f32 %v2427, %v2588
    %v2792 = vadd.f32 %v2430, %v2588
    %v2793 = vadd.f32 %v2433, %v2588
    %v2794 = vadd.f32 %v2436, %v2588
    %v2795 = vadd.f32 %v2439, %v2588
    %v2796 = vadd.f32 %v2442, %v2588
    %v2797 = vadd.f32 %v2445, %v2588
    %v2798 = vadd.f32 %v2448, %v2588
    %v2799 = vadd.f32 %v2451, %v2588
    %v2800 = vadd.f32 %v2454, %v2588
    %v2801 = vadd.f32 %v2457, %v2588
    %v2802 = vadd.f32 %v2460, %v2588
    %v2803 = vadd.f32 %v2463, %v2588
    %v2804 = vadd.f32 %v2466, %v2588
    %v2805 = vadd.f32 %v2469, %v2588
    %v2806 = vadd.f32 %v2472, %v2588
    %v2807 = vadd.f32 %v2475, %v2588
    %v2808 = vadd.f32 %v2478, %v2588
    %v2809 = vadd.f32 %v2481, %v2588
    %v2810 = vadd.f32 %v2484, %v2588
    %v2811 = vadd.f32 %v2487, %v2588
    %v2812 = vadd.f32 %v2490, %v2588
    %v2813 = vadd.f32 %v2493, %v2588
    %v2814 = vadd.f32 %v2496, %v2588
    %v2815 = vadd.f32 %v2499, %v2588
    %v2816 = vadd.f32 %v2502, %v2588
    %v2817 = vadd.f32 %v2505, %v2588
    %v2818 = vadd.f32 %v2508, %v2588
    %v2819 = vadd.f32 %v2511, %v2588
    %v2820 = vadd.f32 %v2514, %v2588
    %v2821 = vadd.f32 %v2517, %v2588
    %v2822 = vadd.f32 %v2520, %v2588
    %v2823 = vadd.f32 %v2523, %v2588
    %v2824 = vadd.f32 %v2526, %v2588
    %v2825 = vadd.f32 %v2529, %v2588
    %v2826 = vadd.f32 %v2532, %v2588
    %v2827 = vadd.f32 %v2535, %v2588
    %v2828 = vadd.f32 %v2538, %v2588
    %v2829 = vadd.f32 %v2541, %v2588
    %v2830 = vadd.f32 %v2544, %v2588
    %v2831 = vadd.f32 %v2547, %v2588
    %v2832 = vadd.f32 %v2550, %v2588
    %v2833 = vadd.f32 %v2553, %v2588
    %v2834 = vadd.f32 %v2556, %v2588
    %v2835 = vadd.f32 %v2559, %v2588
    %v2836 = vadd.f32 %v2562, %v2588
    %v2837 = vadd.f32 %v2565, %v2588
    %v2838 = vadd.f32 %v2568, %v2588
    %v2839 = vadd.f32 %v2571, %v2588
    %v2840 = vadd.f32 %v2574, %v2588
    %v2841 = vadd.f32 %v2577, %v2588
    %v2842 = vadd.f32 %v2580, %v2588
    %v2843 = vadd.f32 %v2583, %v2588
    %v2844 = vadd.f32 %v2586, %v2588
    %v2845 = vxor.u32 %v2589, 2147483648
    %v2846 = vxor.u32 %v2590, 2147483648
    %v2847 = vxor.u32 %v2591, 2147483648
    %v2848 = vxor.u32 %v2592, 2147483648
    %v2849 = vxor.u32 %v2593, 2147483648
    %v2850 = vxor.u32 %v2594, 2147483648
    %v2851 = vxor.u32 %v2595, 2147483648
    %v2852 = vxor.u32 %v2596, 2147483648
    %v2853 = vxor.u32 %v2597, 2147483648
    %v2854 = vxor.u32 %v2598, 2147483648
    %v2855 = vxor.u32 %v2599, 2147483648
    %v2856 = vxor.u32 %v2600, 2147483648
    %v2857 = vxor.u32 %v2601, 2147483648
    %v2858 = vxor.u32 %v2602, 2147483648
    %v2859 = vxor.u32 %v2603, 2147483648
    %v2860 = vxor.u32 %v2604, 2147483648
    %v2861 = vxor.u32 %v2605, 2147483648
    %v2862 = vxor.u32 %v2606, 2147483648
    %v2863 = vxor.u32 %v2607, 2147483648
    %v2864 = vxor.u32 %v2608, 2147483648
    %v2865 = vxor.u32 %v2609, 2147483648
    %v2866 = vxor.u32 %v2610, 2147483648
    %v2867 = vxor.u32 %v2611, 2147483648
    %v2868 = vxor.u32 %v2612, 2147483648
    %v2869 = vxor.u32 %v2613, 2147483648
    %v2870 = vxor.u32 %v2614, 2147483648
    %v2871 = vxor.u32 %v2615, 2147483648
    %v2872 = vxor.u32 %v2616, 2147483648
    %v2873 = vxor.u32 %v2617, 2147483648
    %v2874 = vxor.u32 %v2618, 2147483648
    %v2875 = vxor.u32 %v2619, 2147483648
    %v2876 = vxor.u32 %v2620, 2147483648
    %v2877 = vxor.u32 %v2621, 2147483648
    %v2878 = vxor.u32 %v2622, 2147483648
    %v2879 = vxor.u32 %v2623, 2147483648
    %v2880 = vxor.u32 %v2624, 2147483648
    %v2881 = vxor.u32 %v2625, 2147483648
    %v2882 = vxor.u32 %v2626, 2147483648
    %v2883 = vxor.u32 %v2627, 2147483648
    %v2884 = vxor.u32 %v2628, 2147483648
    %v2885 = vxor.u32 %v2629, 2147483648
    %v2886 = vxor.u32 %v2630, 2147483648
    %v2887 = vxor.u32 %v2631, 2147483648
    %v2888 = vxor.u32 %v2632, 2147483648
    %v2889 = vxor.u32 %v2633, 2147483648
    %v2890 = vxor.u32 %v2634, 2147483648
    %v2891 = vxor.u32 %v2635, 2147483648
    %v2892 = vxor.u32 %v2636, 2147483648
    %v2893 = vxor.u32 %v2637, 2147483648
    %v2894 = vxor.u32 %v2638, 2147483648
    %v2895 = vxor.u32 %v2639, 2147483648
    %v2896 = vxor.u32 %v2640, 2147483648
    %v2897 = vxor.u32 %v2641, 2147483648
    %v2898 = vxor.u32 %v2642, 2147483648
    %v2899 = vxor.u32 %v2643, 2147483648
    %v2900 = vxor.u32 %v2644, 2147483648
    %v2901 = vxor.u32 %v2645, 2147483648
    %v2902 = vxor.u32 %v2646, 2147483648
    %v2903 = vxor.u32 %v2647, 2147483648
    %v2904 = vxor.u32 %v2648, 2147483648
    %v2905 = vxor.u32 %v2649, 2147483648
    %v2906 = vxor.u32 %v2650, 2147483648
    %v2907 = vxor.u32 %v2651, 2147483648
    %v2908 = vxor.u32 %v2652, 2147483648
    %v2909 = vxor.u32 %v2653, 2147483648
    %v2910 = vxor.u32 %v2654, 2147483648
    %v2911 = vxor.u32 %v2655, 2147483648
    %v2912 = vxor.u32 %v2656, 2147483648
    %v2913 = vxor.u32 %v2657, 2147483648
    %v2914 = vxor.u32 %v2658, 2147483648
    %v2915 = vxor.u32 %v2659, 2147483648
    %v2916 = vxor.u32 %v2660, 2147483648
    %v2917 = vxor.u32 %v2661, 2147483648
    %v2918 = vxor.u32 %v2662, 2147483648
    %v2919 = vxor.u32 %v2663, 2147483648
    %v2920 = vxor.u32 %v2664, 2147483648
    %v2921 = vxor.u32 %v2665, 2147483648
    %v2922 = vxor.u32 %v2666, 2147483648
    %v2923 = vxor.u32 %v2667, 2147483648
    %v2924 = vxor.u32 %v2668, 2147483648
    %v2925 = vxor.u32 %v2669, 2147483648
    %v2926 = vxor.u32 %v2670, 2147483648
    %v2927 = vxor.u32 %v2671, 2147483648
    %v2928 = vxor.u32 %v2672, 2147483648
    %v2929 = vxor.u32 %v2673, 2147483648
    %v2930 = vxor.u32 %v2674, 2147483648
    %v2931 = vxor.u32 %v2675, 2147483648
    %v2932 = vxor.u32 %v2676, 2147483648
    %v2933 = vxor.u32 %v2677, 2147483648
    %v2934 = vxor.u32 %v2678, 2147483648
    %v2935 = vxor.u32 %v2679, 2147483648
    %v2936 = vxor.u32 %v2680, 2147483648
    %v2937 = vxor.u32 %v2681, 2147483648
    %v2938 = vxor.u32 %v2682, 2147483648
    %v2939 = vxor.u32 %v2683, 2147483648
    %v2940 = vxor.u32 %v2684, 2147483648
    %v2941 = vxor.u32 %v2685, 2147483648
    %v2942 = vxor.u32 %v2686, 2147483648
    %v2943 = vxor.u32 %v2687, 2147483648
    %v2944 = vxor.u32 %v2688, 2147483648
    %v2945 = vxor.u32 %v2689, 2147483648
    %v2946 = vxor.u32 %v2690, 2147483648
    %v2947 = vxor.u32 %v2691, 2147483648
    %v2948 = vxor.u32 %v2692, 2147483648
    %v2949 = vxor.u32 %v2693, 2147483648
    %v2950 = vxor.u32 %v2694, 2147483648
    %v2951 = vxor.u32 %v2695, 2147483648
    %v2952 = vxor.u32 %v2696, 2147483648
    %v2953 = vxor.u32 %v2697, 2147483648
    %v2954 = vxor.u32 %v2698, 2147483648
    %v2955 = vxor.u32 %v2699, 2147483648
    %v2956 = vxor.u32 %v2700, 2147483648
    %v2957 = vxor.u32 %v2701, 2147483648
    %v2958 = vxor.u32 %v2702, 2147483648
    %v2959 = vxor.u32 %v2703, 2147483648
    %v2960 = vxor.u32 %v2704, 2147483648
    %v2961 = vxor.u32 %v2705, 2147483648
    %v2962 = vxor.u32 %v2706, 2147483648
    %v2963 = vxor.u32 %v2707, 2147483648
    %v2964 = vxor.u32 %v2708, 2147483648
    %v2965 = vxor.u32 %v2709, 2147483648
    %v2966 = vxor.u32 %v2710, 2147483648
    %v2967 = vxor.u32 %v2711, 2147483648
    %v2968 = vxor.u32 %v2712, 2147483648
    %v2969 = vxor.u32 %v2713, 2147483648
    %v2970 = vxor.u32 %v2714, 2147483648
    %v2971 = vxor.u32 %v2715, 2147483648
    %v2972 = vxor.u32 %v2716, 2147483648
    %v2973 = vxor.u32 %v2717, 2147483648
    %v2974 = vxor.u32 %v2718, 2147483648
    %v2975 = vxor.u32 %v2719, 2147483648
    %v2976 = vxor.u32 %v2720, 2147483648
    %v2977 = vxor.u32 %v2721, 2147483648
    %v2978 = vxor.u32 %v2722, 2147483648
    %v2979 = vxor.u32 %v2723, 2147483648
    %v2980 = vxor.u32 %v2724, 2147483648
    %v2981 = vxor.u32 %v2725, 2147483648
    %v2982 = vxor.u32 %v2726, 2147483648
    %v2983 = vxor.u32 %v2727, 2147483648
    %v2984 = vxor.u32 %v2728, 2147483648
    %v2985 = vxor.u32 %v2729, 2147483648
    %v2986 = vxor.u32 %v2730, 2147483648
    %v2987 = vxor.u32 %v2731, 2147483648
    %v2988 = vxor.u32 %v2732, 2147483648
    %v2989 = vxor.u32 %v2733, 2147483648
    %v2990 = vxor.u32 %v2734, 2147483648
    %v2991 = vxor.u32 %v2735, 2147483648
    %v2992 = vxor.u32 %v2736, 2147483648
    %v2993 = vxor.u32 %v2737, 2147483648
    %v2994 = vxor.u32 %v2738, 2147483648
    %v2995 = vxor.u32 %v2739, 2147483648
    %v2996 = vxor.u32 %v2740, 2147483648
    %v2997 = vxor.u32 %v2741, 2147483648
    %v2998 = vxor.u32 %v2742, 2147483648
    %v2999 = vxor.u32 %v2743, 2147483648
    %v3000 = vxor.u32 %v2744, 2147483648
    %v3001 = vxor.u32 %v2745, 2147483648
    %v3002 = vxor.u32 %v2746, 2147483648
    %v3003 = vxor.u32 %v2747, 2147483648
    %v3004 = vxor.u32 %v2748, 2147483648
    %v3005 = vxor.u32 %v2749, 2147483648
    %v3006 = vxor.u32 %v2750, 2147483648
    %v3007 = vxor.u32 %v2751, 2147483648
    %v3008 = vxor.u32 %v2752, 2147483648
    %v3009 = vxor.u32 %v2753, 2147483648
    %v3010 = vxor.u32 %v2754, 2147483648
    %v3011 = vxor.u32 %v2755, 2147483648
    %v3012 = vxor.u32 %v2756, 2147483648
    %v3013 = vxor.u32 %v2757, 2147483648
    %v3014 = vxor.u32 %v2758, 2147483648
    %v3015 = vxor.u32 %v2759, 2147483648
    %v3016 = vxor.u32 %v2760, 2147483648
    %v3017 = vxor.u32 %v2761, 2147483648
    %v3018 = vxor.u32 %v2762, 2147483648
    %v3019 = vxor.u32 %v2763, 2147483648
    %v3020 = vxor.u32 %v2764, 2147483648
    %v3021 = vxor.u32 %v2765, 2147483648
    %v3022 = vxor.u32 %v2766, 2147483648
    %v3023 = vxor.u32 %v2767, 2147483648
    %v3024 = vxor.u32 %v2768, 2147483648
    %v3025 = vxor.u32 %v2769, 2147483648
    %v3026 = vxor.u32 %v2770, 2147483648
    %v3027 = vxor.u32 %v2771, 2147483648
    %v3028 = vxor.u32 %v2772, 2147483648
    %v3029 = vxor.u32 %v2773, 2147483648
    %v3030 = vxor.u32 %v2774, 2147483648
    %v3031 = vxor.u32 %v2775, 2147483648
    %v3032 = vxor.u32 %v2776, 2147483648
    %v3033 = vxor.u32 %v2777, 2147483648
    %v3034 = vxor.u32 %v2778, 2147483648
    %v3035 = vxor.u32 %v2779, 2147483648
    %v3036 = vxor.u32 %v2780, 2147483648
    %v3037 = vxor.u32 %v2781, 2147483648
    %v3038 = vxor.u32 %v2782, 2147483648
    %v3039 = vxor.u32 %v2783, 2147483648
    %v3040 = vxor.u32 %v2784, 2147483648
    %v3041 = vxor.u32 %v2785, 2147483648
    %v3042 = vxor.u32 %v2786, 2147483648
    %v3043 = vxor.u32 %v2787, 2147483648
    %v3044 = vxor.u32 %v2788, 2147483648
    %v3045 = vxor.u32 %v2789, 2147483648
    %v3046 = vxor.u32 %v2790, 2147483648
    %v3047 = vxor.u32 %v2791, 2147483648
    %v3048 = vxor.u32 %v2792, 2147483648
    %v3049 = vxor.u32 %v2793, 2147483648
    %v3050 = vxor.u32 %v2794, 2147483648
    %v3051 = vxor.u32 %v2795, 2147483648
    %v3052 = vxor.u32 %v2796, 2147483648
    %v3053 = vxor.u32 %v2797, 2147483648
    %v3054 = vxor.u32 %v2798, 2147483648
    %v3055 = vxor.u32 %v2799, 2147483648
    %v3056 = vxor.u32 %v2800, 2147483648
    %v3057 = vxor.u32 %v2801, 2147483648
    %v3058 = vxor.u32 %v2802, 2147483648
    %v3059 = vxor.u32 %v2803, 2147483648
    %v3060 = vxor.u32 %v2804, 2147483648
    %v3061 = vxor.u32 %v2805, 2147483648
    %v3062 = vxor.u32 %v2806, 2147483648
    %v3063 = vxor.u32 %v2807, 2147483648
    %v3064 = vxor.u32 %v2808, 2147483648
    %v3065 = vxor.u32 %v2809, 2147483648
    %v3066 = vxor.u32 %v2810, 2147483648
    %v3067 = vxor.u32 %v2811, 2147483648
    %v3068 = vxor.u32 %v2812, 2147483648
    %v3069 = vxor.u32 %v2813, 2147483648
    %v3070 = vxor.u32 %v2814, 2147483648
    %v3071 = vxor.u32 %v2815, 2147483648
    %v3072 = vxor.u32 %v2816, 2147483648
    %v3073 = vxor.u32 %v2817, 2147483648
    %v3074 = vxor.u32 %v2818, 2147483648
    %v3075 = vxor.u32 %v2819, 2147483648
    %v3076 = vxor.u32 %v2820, 2147483648
    %v3077 = vxor.u32 %v2821, 2147483648
    %v3078 = vxor.u32 %v2822, 2147483648
    %v3079 = vxor.u32 %v2823, 2147483648
    %v3080 = vxor.u32 %v2824, 2147483648
    %v3081 = vxor.u32 %v2825, 2147483648
    %v3082 = vxor.u32 %v2826, 2147483648
    %v3083 = vxor.u32 %v2827, 2147483648
    %v3084 = vxor.u32 %v2828, 2147483648
    %v3085 = vxor.u32 %v2829, 2147483648
    %v3086 = vxor.u32 %v2830, 2147483648
    %v3087 = vxor.u32 %v2831, 2147483648
    %v3088 = vxor.u32 %v2832, 2147483648
    %v3089 = vxor.u32 %v2833, 2147483648
    %v3090 = vxor.u32 %v2834, 2147483648
    %v3091 = vxor.u32 %v2835, 2147483648
    %v3092 = vxor.u32 %v2836, 2147483648
    %v3093 = vxor.u32 %v2837, 2147483648
    %v3094 = vxor.u32 %v2838, 2147483648
    %v3095 = vxor.u32 %v2839, 2147483648
    %v3096 = vxor.u32 %v2840, 2147483648
    %v3097 = vxor.u32 %v2841, 2147483648
    %v3098 = vxor.u32 %v2842, 2147483648
    %v3099 = vxor.u32 %v2843, 2147483648
    %v3100 = vxor.u32 %v2844, 2147483648
    %v3101 = vmul.f32 %v2845, 1.442695
    %v3102 = vpow.pop %v3101
    %v3103 = vmul.f32 %v2846, 1.442695
    %v3104 = vpow.pop %v3103
    %v3105 = vmul.f32 %v2847, 1.442695
    %v3106 = vpow.pop %v3105
    %v3107 = vmul.f32 %v2848, 1.442695
    %v3108 = vpow.pop %v3107
    %v3109 = vmul.f32 %v2849, 1.442695
    %v3110 = vpow.pop %v3109
    %v3111 = vmul.f32 %v2850, 1.442695
    %v3112 = vpow.pop %v3111
    %v3113 = vmul.f32 %v2851, 1.442695
    %v3114 = vpow.pop %v3113
    %v3115 = vmul.f32 %v2852, 1.442695
    %v3116 = vpow.pop %v3115
    %v3117 = vmul.f32 %v2853, 1.442695
    %v3118 = vpow.pop %v3117
    %v3119 = vmul.f32 %v2854, 1.442695
    %v3120 = vpow.pop %v3119
    %v3121 = vmul.f32 %v2855, 1.442695
    %v3122 = vpow.pop %v3121
    %v3123 = vmul.f32 %v2856, 1.442695
    %v3124 = vpow.pop %v3123
    %v3125 = vmul.f32 %v2857, 1.442695
    %v3126 = vpow.pop %v3125
    %v3127 = vmul.f32 %v2858, 1.442695
    %v3128 = vpow.pop %v3127
    %v3129 = vmul.f32 %v2859, 1.442695
    %v3130 = vpow.pop %v3129
    %v3131 = vmul.f32 %v2860, 1.442695
    %v3132 = vpow.pop %v3131
    %v3133 = vmul.f32 %v2861, 1.442695
    %v3134 = vpow.pop %v3133
    %v3135 = vmul.f32 %v2862, 1.442695
    %v3136 = vpow.pop %v3135
    %v3137 = vmul.f32 %v2863, 1.442695
    %v3138 = vpow.pop %v3137
    %v3139 = vmul.f32 %v2864, 1.442695
    %v3140 = vpow.pop %v3139
    %v3141 = vmul.f32 %v2865, 1.442695
    %v3142 = vpow.pop %v3141
    %v3143 = vmul.f32 %v2866, 1.442695
    %v3144 = vpow.pop %v3143
    %v3145 = vmul.f32 %v2867, 1.442695
    %v3146 = vpow.pop %v3145
    %v3147 = vmul.f32 %v2868, 1.442695
    %v3148 = vpow.pop %v3147
    %v3149 = vmul.f32 %v2869, 1.442695
    %v3150 = vpow.pop %v3149
    %v3151 = vmul.f32 %v2870, 1.442695
    %v3152 = vpow.pop %v3151
    %v3153 = vmul.f32 %v2871, 1.442695
    %v3154 = vpow.pop %v3153
    %v3155 = vmul.f32 %v2872, 1.442695
    %v3156 = vpow.pop %v3155
    %v3157 = vmul.f32 %v2873, 1.442695
    %v3158 = vpow.pop %v3157
    %v3159 = vmul.f32 %v2874, 1.442695
    %v3160 = vpow.pop %v3159
    %v3161 = vmul.f32 %v2875, 1.442695
    %v3162 = vpow.pop %v3161
    %v3163 = vmul.f32 %v2876, 1.442695
    %v3164 = vpow.pop %v3163
    %v3165 = vmul.f32 %v2877, 1.442695
    %v3166 = vpow.pop %v3165
    %v3167 = vmul.f32 %v2878, 1.442695
    %v3168 = vpow.pop %v3167
    %v3169 = vmul.f32 %v2879, 1.442695
    %v3170 = vpow.pop %v3169
    %v3171 = vmul.f32 %v2880, 1.442695
    %v3172 = vpow.pop %v3171
    %v3173 = vmul.f32 %v2881, 1.442695
    %v3174 = vpow.pop %v3173
    %v3175 = vmul.f32 %v2882, 1.442695
    %v3176 = vpow.pop %v3175
    %v3177 = vmul.f32 %v2883, 1.442695
    %v3178 = vpow.pop %v3177
    %v3179 = vmul.f32 %v2884, 1.442695
    %v3180 = vpow.pop %v3179
    %v3181 = vmul.f32 %v2885, 1.442695
    %v3182 = vpow.pop %v3181
    %v3183 = vmul.f32 %v2886, 1.442695
    %v3184 = vpow.pop %v3183
    %v3185 = vmul.f32 %v2887, 1.442695
    %v3186 = vpow.pop %v3185
    %v3187 = vmul.f32 %v2888, 1.442695
    %v3188 = vpow.pop %v3187
    %v3189 = vmul.f32 %v2889, 1.442695
    %v3190 = vpow.pop %v3189
    %v3191 = vmul.f32 %v2890, 1.442695
    %v3192 = vpow.pop %v3191
    %v3193 = vmul.f32 %v2891, 1.442695
    %v3194 = vpow.pop %v3193
    %v3195 = vmul.f32 %v2892, 1.442695
    %v3196 = vpow.pop %v3195
    %v3197 = vmul.f32 %v2893, 1.442695
    %v3198 = vpow.pop %v3197
    %v3199 = vmul.f32 %v2894, 1.442695
    %v3200 = vpow.pop %v3199
    %v3201 = vmul.f32 %v2895, 1.442695
    %v3202 = vpow.pop %v3201
    %v3203 = vmul.f32 %v2896, 1.442695
    %v3204 = vpow.pop %v3203
    %v3205 = vmul.f32 %v2897, 1.442695
    %v3206 = vpow.pop %v3205
    %v3207 = vmul.f32 %v2898, 1.442695
    %v3208 = vpow.pop %v3207
    %v3209 = vmul.f32 %v2899, 1.442695
    %v3210 = vpow.pop %v3209
    %v3211 = vmul.f32 %v2900, 1.442695
    %v3212 = vpow.pop %v3211
    %v3213 = vmul.f32 %v2901, 1.442695
    %v3214 = vpow.pop %v3213
    %v3215 = vmul.f32 %v2902, 1.442695
    %v3216 = vpow.pop %v3215
    %v3217 = vmul.f32 %v2903, 1.442695
    %v3218 = vpow.pop %v3217
    %v3219 = vmul.f32 %v2904, 1.442695
    %v3220 = vpow.pop %v3219
    %v3221 = vmul.f32 %v2905, 1.442695
    %v3222 = vpow.pop %v3221
    %v3223 = vmul.f32 %v2906, 1.442695
    %v3224 = vpow.pop %v3223
    %v3225 = vmul.f32 %v2907, 1.442695
    %v3226 = vpow.pop %v3225
    %v3227 = vmul.f32 %v2908, 1.442695
    %v3228 = vpow.pop %v3227
    %v3229 = vmul.f32 %v2909, 1.442695
    %v3230 = vpow.pop %v3229
    %v3231 = vmul.f32 %v2910, 1.442695
    %v3232 = vpow.pop %v3231
    %v3233 = vmul.f32 %v2911, 1.442695
    %v3234 = vpow.pop %v3233
    %v3235 = vmul.f32 %v2912, 1.442695
    %v3236 = vpow.pop %v3235
    %v3237 = vmul.f32 %v2913, 1.442695
    %v3238 = vpow.pop %v3237
    %v3239 = vmul.f32 %v2914, 1.442695
    %v3240 = vpow.pop %v3239
    %v3241 = vmul.f32 %v2915, 1.442695
    %v3242 = vpow.pop %v3241
    %v3243 = vmul.f32 %v2916, 1.442695
    %v3244 = vpow.pop %v3243
    %v3245 = vmul.f32 %v2917, 1.442695
    %v3246 = vpow.pop %v3245
    %v3247 = vmul.f32 %v2918, 1.442695
    %v3248 = vpow.pop %v3247
    %v3249 = vmul.f32 %v2919, 1.442695
    %v3250 = vpow.pop %v3249
    %v3251 = vmul.f32 %v2920, 1.442695
    %v3252 = vpow.pop %v3251
    %v3253 = vmul.f32 %v2921, 1.442695
    %v3254 = vpow.pop %v3253
    %v3255 = vmul.f32 %v2922, 1.442695
    %v3256 = vpow.pop %v3255
    %v3257 = vmul.f32 %v2923, 1.442695
    %v3258 = vpow.pop %v3257
    %v3259 = vmul.f32 %v2924, 1.442695
    %v3260 = vpow.pop %v3259
    %v3261 = vmul.f32 %v2925, 1.442695
    %v3262 = vpow.pop %v3261
    %v3263 = vmul.f32 %v2926, 1.442695
    %v3264 = vpow.pop %v3263
    %v3265 = vmul.f32 %v2927, 1.442695
    %v3266 = vpow.pop %v3265
    %v3267 = vmul.f32 %v2928, 1.442695
    %v3268 = vpow.pop %v3267
    %v3269 = vmul.f32 %v2929, 1.442695
    %v3270 = vpow.pop %v3269
    %v3271 = vmul.f32 %v2930, 1.442695
    %v3272 = vpow.pop %v3271
    %v3273 = vmul.f32 %v2931, 1.442695
    %v3274 = vpow.pop %v3273
    %v3275 = vmul.f32 %v2932, 1.442695
    %v3276 = vpow.pop %v3275
    %v3277 = vmul.f32 %v2933, 1.442695
    %v3278 = vpow.pop %v3277
    %v3279 = vmul.f32 %v2934, 1.442695
    %v3280 = vpow.pop %v3279
    %v3281 = vmul.f32 %v2935, 1.442695
    %v3282 = vpow.pop %v3281
    %v3283 = vmul.f32 %v2936, 1.442695
    %v3284 = vpow.pop %v3283
    %v3285 = vmul.f32 %v2937, 1.442695
    %v3286 = vpow.pop %v3285
    %v3287 = vmul.f32 %v2938, 1.442695
    %v3288 = vpow.pop %v3287
    %v3289 = vmul.f32 %v2939, 1.442695
    %v3290 = vpow.pop %v3289
    %v3291 = vmul.f32 %v2940, 1.442695
    %v3292 = vpow.pop %v3291
    %v3293 = vmul.f32 %v2941, 1.442695
    %v3294 = vpow.pop %v3293
    %v3295 = vmul.f32 %v2942, 1.442695
    %v3296 = vpow.pop %v3295
    %v3297 = vmul.f32 %v2943, 1.442695
    %v3298 = vpow.pop %v3297
    %v3299 = vmul.f32 %v2944, 1.442695
    %v3300 = vpow.pop %v3299
    %v3301 = vmul.f32 %v2945, 1.442695
    %v3302 = vpow.pop %v3301
    %v3303 = vmul.f32 %v2946, 1.442695
    %v3304 = vpow.pop %v3303
    %v3305 = vmul.f32 %v2947, 1.442695
    %v3306 = vpow.pop %v3305
    %v3307 = vmul.f32 %v2948, 1.442695
    %v3308 = vpow.pop %v3307
    %v3309 = vmul.f32 %v2949, 1.442695
    %v3310 = vpow.pop %v3309
    %v3311 = vmul.f32 %v2950, 1.442695
    %v3312 = vpow.pop %v3311
    %v3313 = vmul.f32 %v2951, 1.442695
    %v3314 = vpow.pop %v3313
    %v3315 = vmul.f32 %v2952, 1.442695
    %v3316 = vpow.pop %v3315
    %v3317 = vmul.f32 %v2953, 1.442695
    %v3318 = vpow.pop %v3317
    %v3319 = vmul.f32 %v2954, 1.442695
    %v3320 = vpow.pop %v3319
    %v3321 = vmul.f32 %v2955, 1.442695
    %v3322 = vpow.pop %v3321
    %v3323 = vmul.f32 %v2956, 1.442695
    %v3324 = vpow.pop %v3323
    %v3325 = vmul.f32 %v2957, 1.442695
    %v3326 = vpow.pop %v3325
    %v3327 = vmul.f32 %v2958, 1.442695
    %v3328 = vpow.pop %v3327
    %v3329 = vmul.f32 %v2959, 1.442695
    %v3330 = vpow.pop %v3329
    %v3331 = vmul.f32 %v2960, 1.442695
    %v3332 = vpow.pop %v3331
    %v3333 = vmul.f32 %v2961, 1.442695
    %v3334 = vpow.pop %v3333
    %v3335 = vmul.f32 %v2962, 1.442695
    %v3336 = vpow.pop %v3335
    %v3337 = vmul.f32 %v2963, 1.442695
    %v3338 = vpow.pop %v3337
    %v3339 = vmul.f32 %v2964, 1.442695
    %v3340 = vpow.pop %v3339
    %v3341 = vmul.f32 %v2965, 1.442695
    %v3342 = vpow.pop %v3341
    %v3343 = vmul.f32 %v2966, 1.442695
    %v3344 = vpow.pop %v3343
    %v3345 = vmul.f32 %v2967, 1.442695
    %v3346 = vpow.pop %v3345
    %v3347 = vmul.f32 %v2968, 1.442695
    %v3348 = vpow.pop %v3347
    %v3349 = vmul.f32 %v2969, 1.442695
    %v3350 = vpow.pop %v3349
    %v3351 = vmul.f32 %v2970, 1.442695
    %v3352 = vpow.pop %v3351
    %v3353 = vmul.f32 %v2971, 1.442695
    %v3354 = vpow.pop %v3353
    %v3355 = vmul.f32 %v2972, 1.442695
    %v3356 = vpow.pop %v3355
    %v3357 = vmul.f32 %v2973, 1.442695
    %v3358 = vpow.pop %v3357
    %v3359 = vmul.f32 %v2974, 1.442695
    %v3360 = vpow.pop %v3359
    %v3361 = vmul.f32 %v2975, 1.442695
    %v3362 = vpow.pop %v3361
    %v3363 = vmul.f32 %v2976, 1.442695
    %v3364 = vpow.pop %v3363
    %v3365 = vmul.f32 %v2977, 1.442695
    %v3366 = vpow.pop %v3365
    %v3367 = vmul.f32 %v2978, 1.442695
    %v3368 = vpow.pop %v3367
    %v3369 = vmul.f32 %v2979, 1.442695
    %v3370 = vpow.pop %v3369
    %v3371 = vmul.f32 %v2980, 1.442695
    %v3372 = vpow.pop %v3371
    %v3373 = vmul.f32 %v2981, 1.442695
    %v3374 = vpow.pop %v3373
    %v3375 = vmul.f32 %v2982, 1.442695
    %v3376 = vpow.pop %v3375
    %v3377 = vmul.f32 %v2983, 1.442695
    %v3378 = vpow.pop %v3377
    %v3379 = vmul.f32 %v2984, 1.442695
    %v3380 = vpow.pop %v3379
    %v3381 = vmul.f32 %v2985, 1.442695
    %v3382 = vpow.pop %v3381
    %v3383 = vmul.f32 %v2986, 1.442695
    %v3384 = vpow.pop %v3383
    %v3385 = vmul.f32 %v2987, 1.442695
    %v3386 = vpow.pop %v3385
    %v3387 = vmul.f32 %v2988, 1.442695
    %v3388 = vpow.pop %v3387
    %v3389 = vmul.f32 %v2989, 1.442695
    %v3390 = vpow.pop %v3389
    %v3391 = vmul.f32 %v2990, 1.442695
    %v3392 = vpow.pop %v3391
    %v3393 = vmul.f32 %v2991, 1.442695
    %v3394 = vpow.pop %v3393
    %v3395 = vmul.f32 %v2992, 1.442695
    %v3396 = vpow.pop %v3395
    %v3397 = vmul.f32 %v2993, 1.442695
    %v3398 = vpow.pop %v3397
    %v3399 = vmul.f32 %v2994, 1.442695
    %v3400 = vpow.pop %v3399
    %v3401 = vmul.f32 %v2995, 1.442695
    %v3402 = vpow.pop %v3401
    %v3403 = vmul.f32 %v2996, 1.442695
    %v3404 = vpow.pop %v3403
    %v3405 = vmul.f32 %v2997, 1.442695
    %v3406 = vpow.pop %v3405
    %v3407 = vmul.f32 %v2998, 1.442695
    %v3408 = vpow.pop %v3407
    %v3409 = vmul.f32 %v2999, 1.442695
    %v3410 = vpow.pop %v3409
    %v3411 = vmul.f32 %v3000, 1.442695
    %v3412 = vpow.pop %v3411
    %v3413 = vmul.f32 %v3001, 1.442695
    %v3414 = vpow.pop %v3413
    %v3415 = vmul.f32 %v3002, 1.442695
    %v3416 = vpow.pop %v3415
    %v3417 = vmul.f32 %v3003, 1.442695
    %v3418 = vpow.pop %v3417
    %v3419 = vmul.f32 %v3004, 1.442695
    %v3420 = vpow.pop %v3419
    %v3421 = vmul.f32 %v3005, 1.442695
    %v3422 = vpow.pop %v3421
    %v3423 = vmul.f32 %v3006, 1.442695
    %v3424 = vpow.pop %v3423
    %v3425 = vmul.f32 %v3007, 1.442695
    %v3426 = vpow.pop %v3425
    %v3427 = vmul.f32 %v3008, 1.442695
    %v3428 = vpow.pop %v3427
    %v3429 = vmul.f32 %v3009, 1.442695
    %v3430 = vpow.pop %v3429
    %v3431 = vmul.f32 %v3010, 1.442695
    %v3432 = vpow.pop %v3431
    %v3433 = vmul.f32 %v3011, 1.442695
    %v3434 = vpow.pop %v3433
    %v3435 = vmul.f32 %v3012, 1.442695
    %v3436 = vpow.pop %v3435
    %v3437 = vmul.f32 %v3013, 1.442695
    %v3438 = vpow.pop %v3437
    %v3439 = vmul.f32 %v3014, 1.442695
    %v3440 = vpow.pop %v3439
    %v3441 = vmul.f32 %v3015, 1.442695
    %v3442 = vpow.pop %v3441
    %v3443 = vmul.f32 %v3016, 1.442695
    %v3444 = vpow.pop %v3443
    %v3445 = vmul.f32 %v3017, 1.442695
    %v3446 = vpow.pop %v3445
    %v3447 = vmul.f32 %v3018, 1.442695
    %v3448 = vpow.pop %v3447
    %v3449 = vmul.f32 %v3019, 1.442695
    %v3450 = vpow.pop %v3449
    %v3451 = vmul.f32 %v3020, 1.442695
    %v3452 = vpow.pop %v3451
    %v3453 = vmul.f32 %v3021, 1.442695
    %v3454 = vpow.pop %v3453
    %v3455 = vmul.f32 %v3022, 1.442695
    %v3456 = vpow.pop %v3455
    %v3457 = vmul.f32 %v3023, 1.442695
    %v3458 = vpow.pop %v3457
    %v3459 = vmul.f32 %v3024, 1.442695
    %v3460 = vpow.pop %v3459
    %v3461 = vmul.f32 %v3025, 1.442695
    %v3462 = vpow.pop %v3461
    %v3463 = vmul.f32 %v3026, 1.442695
    %v3464 = vpow.pop %v3463
    %v3465 = vmul.f32 %v3027, 1.442695
    %v3466 = vpow.pop %v3465
    %v3467 = vmul.f32 %v3028, 1.442695
    %v3468 = vpow.pop %v3467
    %v3469 = vmul.f32 %v3029, 1.442695
    %v3470 = vpow.pop %v3469
    %v3471 = vmul.f32 %v3030, 1.442695
    %v3472 = vpow.pop %v3471
    %v3473 = vmul.f32 %v3031, 1.442695
    %v3474 = vpow.pop %v3473
    %v3475 = vmul.f32 %v3032, 1.442695
    %v3476 = vpow.pop %v3475
    %v3477 = vmul.f32 %v3033, 1.442695
    %v3478 = vpow.pop %v3477
    %v3479 = vmul.f32 %v3034, 1.442695
    %v3480 = vpow.pop %v3479
    %v3481 = vmul.f32 %v3035, 1.442695
    %v3482 = vpow.pop %v3481
    %v3483 = vmul.f32 %v3036, 1.442695
    %v3484 = vpow.pop %v3483
    %v3485 = vmul.f32 %v3037, 1.442695
    %v3486 = vpow.pop %v3485
    %v3487 = vmul.f32 %v3038, 1.442695
    %v3488 = vpow.pop %v3487
    %v3489 = vmul.f32 %v3039, 1.442695
    %v3490 = vpow.pop %v3489
    %v3491 = vmul.f32 %v3040, 1.442695
    %v3492 = vpow.pop %v3491
    %v3493 = vmul.f32 %v3041, 1.442695
    %v3494 = vpow.pop %v3493
    %v3495 = vmul.f32 %v3042, 1.442695
    %v3496 = vpow.pop %v3495
    %v3497 = vmul.f32 %v3043, 1.442695
    %v3498 = vpow.pop %v3497
    %v3499 = vmul.f32 %v3044, 1.442695
    %v3500 = vpow.pop %v3499
    %v3501 = vmul.f32 %v3045, 1.442695
    %v3502 = vpow.pop %v3501
    %v3503 = vmul.f32 %v3046, 1.442695
    %v3504 = vpow.pop %v3503
    %v3505 = vmul.f32 %v3047, 1.442695
    %v3506 = vpow.pop %v3505
    %v3507 = vmul.f32 %v3048, 1.442695
    %v3508 = vpow.pop %v3507
    %v3509 = vmul.f32 %v3049, 1.442695
    %v3510 = vpow.pop %v3509
    %v3511 = vmul.f32 %v3050, 1.442695
    %v3512 = vpow.pop %v3511
    %v3513 = vmul.f32 %v3051, 1.442695
    %v3514 = vpow.pop %v3513
    %v3515 = vmul.f32 %v3052, 1.442695
    %v3516 = vpow.pop %v3515
    %v3517 = vmul.f32 %v3053, 1.442695
    %v3518 = vpow.pop %v3517
    %v3519 = vmul.f32 %v3054, 1.442695
    %v3520 = vpow.pop %v3519
    %v3521 = vmul.f32 %v3055, 1.442695
    %v3522 = vpow.pop %v3521
    %v3523 = vmul.f32 %v3056, 1.442695
    %v3524 = vpow.pop %v3523
    %v3525 = vmul.f32 %v3057, 1.442695
    %v3526 = vpow.pop %v3525
    %v3527 = vmul.f32 %v3058, 1.442695
    %v3528 = vpow.pop %v3527
    %v3529 = vmul.f32 %v3059, 1.442695
    %v3530 = vpow.pop %v3529
    %v3531 = vmul.f32 %v3060, 1.442695
    %v3532 = vpow.pop %v3531
    %v3533 = vmul.f32 %v3061, 1.442695
    %v3534 = vpow.pop %v3533
    %v3535 = vmul.f32 %v3062, 1.442695
    %v3536 = vpow.pop %v3535
    %v3537 = vmul.f32 %v3063, 1.442695
    %v3538 = vpow.pop %v3537
    %v3539 = vmul.f32 %v3064, 1.442695
    %v3540 = vpow.pop %v3539
    %v3541 = vmul.f32 %v3065, 1.442695
    %v3542 = vpow.pop %v3541
    %v3543 = vmul.f32 %v3066, 1.442695
    %v3544 = vpow.pop %v3543
    %v3545 = vmul.f32 %v3067, 1.442695
    %v3546 = vpow.pop %v3545
    %v3547 = vmul.f32 %v3068, 1.442695
    %v3548 = vpow.pop %v3547
    %v3549 = vmul.f32 %v3069, 1.442695
    %v3550 = vpow.pop %v3549
    %v3551 = vmul.f32 %v3070, 1.442695
    %v3552 = vpow.pop %v3551
    %v3553 = vmul.f32 %v3071, 1.442695
    %v3554 = vpow.pop %v3553
    %v3555 = vmul.f32 %v3072, 1.442695
    %v3556 = vpow.pop %v3555
    %v3557 = vmul.f32 %v3073, 1.442695
    %v3558 = vpow.pop %v3557
    %v3559 = vmul.f32 %v3074, 1.442695
    %v3560 = vpow.pop %v3559
    %v3561 = vmul.f32 %v3075, 1.442695
    %v3562 = vpow.pop %v3561
    %v3563 = vmul.f32 %v3076, 1.442695
    %v3564 = vpow.pop %v3563
    %v3565 = vmul.f32 %v3077, 1.442695
    %v3566 = vpow.pop %v3565
    %v3567 = vmul.f32 %v3078, 1.442695
    %v3568 = vpow.pop %v3567
    %v3569 = vmul.f32 %v3079, 1.442695
    %v3570 = vpow.pop %v3569
    %v3571 = vmul.f32 %v3080, 1.442695
    %v3572 = vpow.pop %v3571
    %v3573 = vmul.f32 %v3081, 1.442695
    %v3574 = vpow.pop %v3573
    %v3575 = vmul.f32 %v3082, 1.442695
    %v3576 = vpow.pop %v3575
    %v3577 = vmul.f32 %v3083, 1.442695
    %v3578 = vpow.pop %v3577
    %v3579 = vmul.f32 %v3084, 1.442695
    %v3580 = vpow.pop %v3579
    %v3581 = vmul.f32 %v3085, 1.442695
    %v3582 = vpow.pop %v3581
    %v3583 = vmul.f32 %v3086, 1.442695
    %v3584 = vpow.pop %v3583
    %v3585 = vmul.f32 %v3087, 1.442695
    %v3586 = vpow.pop %v3585
    %v3587 = vmul.f32 %v3088, 1.442695
    %v3588 = vpow.pop %v3587
    %v3589 = vmul.f32 %v3089, 1.442695
    %v3590 = vpow.pop %v3589
    %v3591 = vmul.f32 %v3090, 1.442695
    %v3592 = vpow.pop %v3591
    %v3593 = vmul.f32 %v3091, 1.442695
    %v3594 = vpow.pop %v3593
    %v3595 = vmul.f32 %v3092, 1.442695
    %v3596 = vpow.pop %v3595
    %v3597 = vmul.f32 %v3093, 1.442695
    %v3598 = vpow.pop %v3597
    %v3599 = vmul.f32 %v3094, 1.442695
    %v3600 = vpow.pop %v3599
    %v3601 = vmul.f32 %v3095, 1.442695
    %v3602 = vpow.pop %v3601
    %v3603 = vmul.f32 %v3096, 1.442695
    %v3604 = vpow.pop %v3603
    %v3605 = vmul.f32 %v3097, 1.442695
    %v3606 = vpow.pop %v3605
    %v3607 = vmul.f32 %v3098, 1.442695
    %v3608 = vpow.pop %v3607
    %v3609 = vmul.f32 %v3099, 1.442695
    %v3610 = vpow.pop %v3609
    %v3611 = vmul.f32 %v3100, 1.442695
    %v3612 = vpow.pop %v3611
    %v3613 = vadd.f32 %v3102, 1.0
    %v3614 = vadd.f32 %v3104, 1.0
    %v3615 = vadd.f32 %v3106, 1.0
    %v3616 = vadd.f32 %v3108, 1.0
    %v3617 = vadd.f32 %v3110, 1.0
    %v3618 = vadd.f32 %v3112, 1.0
    %v3619 = vadd.f32 %v3114, 1.0
    %v3620 = vadd.f32 %v3116, 1.0
    %v3621 = vadd.f32 %v3118, 1.0
    %v3622 = vadd.f32 %v3120, 1.0
    %v3623 = vadd.f32 %v3122, 1.0
    %v3624 = vadd.f32 %v3124, 1.0
    %v3625 = vadd.f32 %v3126, 1.0
    %v3626 = vadd.f32 %v3128, 1.0
    %v3627 = vadd.f32 %v3130, 1.0
    %v3628 = vadd.f32 %v3132, 1.0
    %v3629 = vadd.f32 %v3134, 1.0
    %v3630 = vadd.f32 %v3136, 1.0
    %v3631 = vadd.f32 %v3138, 1.0
    %v3632 = vadd.f32 %v3140, 1.0
    %v3633 = vadd.f32 %v3142, 1.0
    %v3634 = vadd.f32 %v3144, 1.0
    %v3635 = vadd.f32 %v3146, 1.0
    %v3636 = vadd.f32 %v3148, 1.0
    %v3637 = vadd.f32 %v3150, 1.0
    %v3638 = vadd.f32 %v3152, 1.0
    %v3639 = vadd.f32 %v3154, 1.0
    %v3640 = vadd.f32 %v3156, 1.0
    %v3641 = vadd.f32 %v3158, 1.0
    %v3642 = vadd.f32 %v3160, 1.0
    %v3643 = vadd.f32 %v3162, 1.0
    %v3644 = vadd.f32 %v3164, 1.0
    %v3645 = vadd.f32 %v3166, 1.0
    %v3646 = vadd.f32 %v3168, 1.0
    %v3647 = vadd.f32 %v3170, 1.0
    %v3648 = vadd.f32 %v3172, 1.0
    %v3649 = vadd.f32 %v3174, 1.0
    %v3650 = vadd.f32 %v3176, 1.0
    %v3651 = vadd.f32 %v3178, 1.0
    %v3652 = vadd.f32 %v3180, 1.0
    %v3653 = vadd.f32 %v3182, 1.0
    %v3654 = vadd.f32 %v3184, 1.0
    %v3655 = vadd.f32 %v3186, 1.0
    %v3656 = vadd.f32 %v3188, 1.0
    %v3657 = vadd.f32 %v3190, 1.0
    %v3658 = vadd.f32 %v3192, 1.0
    %v3659 = vadd.f32 %v3194, 1.0
    %v3660 = vadd.f32 %v3196, 1.0
    %v3661 = vadd.f32 %v3198, 1.0
    %v3662 = vadd.f32 %v3200, 1.0
    %v3663 = vadd.f32 %v3202, 1.0
    %v3664 = vadd.f32 %v3204, 1.0
    %v3665 = vadd.f32 %v3206, 1.0
    %v3666 = vadd.f32 %v3208, 1.0
    %v3667 = vadd.f32 %v3210, 1.0
    %v3668 = vadd.f32 %v3212, 1.0
    %v3669 = vadd.f32 %v3214, 1.0
    %v3670 = vadd.f32 %v3216, 1.0
    %v3671 = vadd.f32 %v3218, 1.0
    %v3672 = vadd.f32 %v3220, 1.0
    %v3673 = vadd.f32 %v3222, 1.0
    %v3674 = vadd.f32 %v3224, 1.0
    %v3675 = vadd.f32 %v3226, 1.0
    %v3676 = vadd.f32 %v3228, 1.0
    %v3677 = vadd.f32 %v3230, 1.0
    %v3678 = vadd.f32 %v3232, 1.0
    %v3679 = vadd.f32 %v3234, 1.0
    %v3680 = vadd.f32 %v3236, 1.0
    %v3681 = vadd.f32 %v3238, 1.0
    %v3682 = vadd.f32 %v3240, 1.0
    %v3683 = vadd.f32 %v3242, 1.0
    %v3684 = vadd.f32 %v3244, 1.0
    %v3685 = vadd.f32 %v3246, 1.0
    %v3686 = vadd.f32 %v3248, 1.0
    %v3687 = vadd.f32 %v3250, 1.0
    %v3688 = vadd.f32 %v3252, 1.0
    %v3689 = vadd.f32 %v3254, 1.0
    %v3690 = vadd.f32 %v3256, 1.0
    %v3691 = vadd.f32 %v3258, 1.0
    %v3692 = vadd.f32 %v3260, 1.0
    %v3693 = vadd.f32 %v3262, 1.0
    %v3694 = vadd.f32 %v3264, 1.0
    %v3695 = vadd.f32 %v3266, 1.0
    %v3696 = vadd.f32 %v3268, 1.0
    %v3697 = vadd.f32 %v3270, 1.0
    %v3698 = vadd.f32 %v3272, 1.0
    %v3699 = vadd.f32 %v3274, 1.0
    %v3700 = vadd.f32 %v3276, 1.0
    %v3701 = vadd.f32 %v3278, 1.0
    %v3702 = vadd.f32 %v3280, 1.0
    %v3703 = vadd.f32 %v3282, 1.0
    %v3704 = vadd.f32 %v3284, 1.0
    %v3705 = vadd.f32 %v3286, 1.0
    %v3706 = vadd.f32 %v3288, 1.0
    %v3707 = vadd.f32 %v3290, 1.0
    %v3708 = vadd.f32 %v3292, 1.0
    %v3709 = vadd.f32 %v3294, 1.0
    %v3710 = vadd.f32 %v3296, 1.0
    %v3711 = vadd.f32 %v3298, 1.0
    %v3712 = vadd.f32 %v3300, 1.0
    %v3713 = vadd.f32 %v3302, 1.0
    %v3714 = vadd.f32 %v3304, 1.0
    %v3715 = vadd.f32 %v3306, 1.0
    %v3716 = vadd.f32 %v3308, 1.0
    %v3717 = vadd.f32 %v3310, 1.0
    %v3718 = vadd.f32 %v3312, 1.0
    %v3719 = vadd.f32 %v3314, 1.0
    %v3720 = vadd.f32 %v3316, 1.0
    %v3721 = vadd.f32 %v3318, 1.0
    %v3722 = vadd.f32 %v3320, 1.0
    %v3723 = vadd.f32 %v3322, 1.0
    %v3724 = vadd.f32 %v3324, 1.0
    %v3725 = vadd.f32 %v3326, 1.0
    %v3726 = vadd.f32 %v3328, 1.0
    %v3727 = vadd.f32 %v3330, 1.0
    %v3728 = vadd.f32 %v3332, 1.0
    %v3729 = vadd.f32 %v3334, 1.0
    %v3730 = vadd.f32 %v3336, 1.0
    %v3731 = vadd.f32 %v3338, 1.0
    %v3732 = vadd.f32 %v3340, 1.0
    %v3733 = vadd.f32 %v3342, 1.0
    %v3734 = vadd.f32 %v3344, 1.0
    %v3735 = vadd.f32 %v3346, 1.0
    %v3736 = vadd.f32 %v3348, 1.0
    %v3737 = vadd.f32 %v3350, 1.0
    %v3738 = vadd.f32 %v3352, 1.0
    %v3739 = vadd.f32 %v3354, 1.0
    %v3740 = vadd.f32 %v3356, 1.0
    %v3741 = vadd.f32 %v3358, 1.0
    %v3742 = vadd.f32 %v3360, 1.0
    %v3743 = vadd.f32 %v3362, 1.0
    %v3744 = vadd.f32 %v3364, 1.0
    %v3745 = vadd.f32 %v3366, 1.0
    %v3746 = vadd.f32 %v3368, 1.0
    %v3747 = vadd.f32 %v3370, 1.0
    %v3748 = vadd.f32 %v3372, 1.0
    %v3749 = vadd.f32 %v3374, 1.0
    %v3750 = vadd.f32 %v3376, 1.0
    %v3751 = vadd.f32 %v3378, 1.0
    %v3752 = vadd.f32 %v3380, 1.0
    %v3753 = vadd.f32 %v3382, 1.0
    %v3754 = vadd.f32 %v3384, 1.0
    %v3755 = vadd.f32 %v3386, 1.0
    %v3756 = vadd.f32 %v3388, 1.0
    %v3757 = vadd.f32 %v3390, 1.0
    %v3758 = vadd.f32 %v3392, 1.0
    %v3759 = vadd.f32 %v3394, 1.0
    %v3760 = vadd.f32 %v3396, 1.0
    %v3761 = vadd.f32 %v3398, 1.0
    %v3762 = vadd.f32 %v3400, 1.0
    %v3763 = vadd.f32 %v3402, 1.0
    %v3764 = vadd.f32 %v3404, 1.0
    %v3765 = vadd.f32 %v3406, 1.0
    %v3766 = vadd.f32 %v3408, 1.0
    %v3767 = vadd.f32 %v3410, 1.0
    %v3768 = vadd.f32 %v3412, 1.0
    %v3769 = vadd.f32 %v3414, 1.0
    %v3770 = vadd.f32 %v3416, 1.0
    %v3771 = vadd.f32 %v3418, 1.0
    %v3772 = vadd.f32 %v3420, 1.0
    %v3773 = vadd.f32 %v3422, 1.0
    %v3774 = vadd.f32 %v3424, 1.0
    %v3775 = vadd.f32 %v3426, 1.0
    %v3776 = vadd.f32 %v3428, 1.0
    %v3777 = vadd.f32 %v3430, 1.0
    %v3778 = vadd.f32 %v3432, 1.0
    %v3779 = vadd.f32 %v3434, 1.0
    %v3780 = vadd.f32 %v3436, 1.0
    %v3781 = vadd.f32 %v3438, 1.0
    %v3782 = vadd.f32 %v3440, 1.0
    %v3783 = vadd.f32 %v3442, 1.0
    %v3784 = vadd.f32 %v3444, 1.0
    %v3785 = vadd.f32 %v3446, 1.0
    %v3786 = vadd.f32 %v3448, 1.0
    %v3787 = vadd.f32 %v3450, 1.0
    %v3788 = vadd.f32 %v3452, 1.0
    %v3789 = vadd.f32 %v3454, 1.0
    %v3790 = vadd.f32 %v3456, 1.0
    %v3791 = vadd.f32 %v3458, 1.0
    %v3792 = vadd.f32 %v3460, 1.0
    %v3793 = vadd.f32 %v3462, 1.0
    %v3794 = vadd.f32 %v3464, 1.0
    %v3795 = vadd.f32 %v3466, 1.0
    %v3796 = vadd.f32 %v3468, 1.0
    %v3797 = vadd.f32 %v3470, 1.0
    %v3798 = vadd.f32 %v3472, 1.0
    %v3799 = vadd.f32 %v3474, 1.0
    %v3800 = vadd.f32 %v3476, 1.0
    %v3801 = vadd.f32 %v3478, 1.0
    %v3802 = vadd.f32 %v3480, 1.0
    %v3803 = vadd.f32 %v3482, 1.0
    %v3804 = vadd.f32 %v3484, 1.0
    %v3805 = vadd.f32 %v3486, 1.0
    %v3806 = vadd.f32 %v3488, 1.0
    %v3807 = vadd.f32 %v3490, 1.0
    %v3808 = vadd.f32 %v3492, 1.0
    %v3809 = vadd.f32 %v3494, 1.0
    %v3810 = vadd.f32 %v3496, 1.0
    %v3811 = vadd.f32 %v3498, 1.0
    %v3812 = vadd.f32 %v3500, 1.0
    %v3813 = vadd.f32 %v3502, 1.0
    %v3814 = vadd.f32 %v3504, 1.0
    %v3815 = vadd.f32 %v3506, 1.0
    %v3816 = vadd.f32 %v3508, 1.0
    %v3817 = vadd.f32 %v3510, 1.0
    %v3818 = vadd.f32 %v3512, 1.0
    %v3819 = vadd.f32 %v3514, 1.0
    %v3820 = vadd.f32 %v3516, 1.0
    %v3821 = vadd.f32 %v3518, 1.0
    %v3822 = vadd.f32 %v3520, 1.0
    %v3823 = vadd.f32 %v3522, 1.0
    %v3824 = vadd.f32 %v3524, 1.0
    %v3825 = vadd.f32 %v3526, 1.0
    %v3826 = vadd.f32 %v3528, 1.0
    %v3827 = vadd.f32 %v3530, 1.0
    %v3828 = vadd.f32 %v3532, 1.0
    %v3829 = vadd.f32 %v3534, 1.0
    %v3830 = vadd.f32 %v3536, 1.0
    %v3831 = vadd.f32 %v3538, 1.0
    %v3832 = vadd.f32 %v3540, 1.0
    %v3833 = vadd.f32 %v3542, 1.0
    %v3834 = vadd.f32 %v3544, 1.0
    %v3835 = vadd.f32 %v3546, 1.0
    %v3836 = vadd.f32 %v3548, 1.0
    %v3837 = vadd.f32 %v3550, 1.0
    %v3838 = vadd.f32 %v3552, 1.0
    %v3839 = vadd.f32 %v3554, 1.0
    %v3840 = vadd.f32 %v3556, 1.0
    %v3841 = vadd.f32 %v3558, 1.0
    %v3842 = vadd.f32 %v3560, 1.0
    %v3843 = vadd.f32 %v3562, 1.0
    %v3844 = vadd.f32 %v3564, 1.0
    %v3845 = vadd.f32 %v3566, 1.0
    %v3846 = vadd.f32 %v3568, 1.0
    %v3847 = vadd.f32 %v3570, 1.0
    %v3848 = vadd.f32 %v3572, 1.0
    %v3849 = vadd.f32 %v3574, 1.0
    %v3850 = vadd.f32 %v3576, 1.0
    %v3851 = vadd.f32 %v3578, 1.0
    %v3852 = vadd.f32 %v3580, 1.0
    %v3853 = vadd.f32 %v3582, 1.0
    %v3854 = vadd.f32 %v3584, 1.0
    %v3855 = vadd.f32 %v3586, 1.0
    %v3856 = vadd.f32 %v3588, 1.0
    %v3857 = vadd.f32 %v3590, 1.0
    %v3858 = vadd.f32 %v3592, 1.0
    %v3859 = vadd.f32 %v3594, 1.0
    %v3860 = vadd.f32 %v3596, 1.0
    %v3861 = vadd.f32 %v3598, 1.0
    %v3862 = vadd.f32 %v3600, 1.0
    %v3863 = vadd.f32 %v3602, 1.0
    %v3864 = vadd.f32 %v3604, 1.0
    %v3865 = vadd.f32 %v3606, 1.0
    %v3866 = vadd.f32 %v3608, 1.0
    %v3867 = vadd.f32 %v3610, 1.0
    %v3868 = vadd.f32 %v3612, 1.0
    %v3869 = vrcp.pop %v3613
    %v3870 = vmul.f32 1.0, %v3869
    %v3871 = vrcp.pop %v3614
    %v3872 = vmul.f32 1.0, %v3871
    %v3873 = vrcp.pop %v3615
    %v3874 = vmul.f32 1.0, %v3873
    %v3875 = vrcp.pop %v3616
    %v3876 = vmul.f32 1.0, %v3875
    %v3877 = vrcp.pop %v3617
    %v3878 = vmul.f32 1.0, %v3877
    %v3879 = vrcp.pop %v3618
    %v3880 = vmul.f32 1.0, %v3879
    %v3881 = vrcp.pop %v3619
    %v3882 = vmul.f32 1.0, %v3881
    %v3883 = vrcp.pop %v3620
    %v3884 = vmul.f32 1.0, %v3883
    %v3885 = vrcp.pop %v3621
    %v3886 = vmul.f32 1.0, %v3885
    %v3887 = vrcp.pop %v3622
    %v3888 = vmul.f32 1.0, %v3887
    %v3889 = vrcp.pop %v3623
    %v3890 = vmul.f32 1.0, %v3889
    %v3891 = vrcp.pop %v3624
    %v3892 = vmul.f32 1.0, %v3891
    %v3893 = vrcp.pop %v3625
    %v3894 = vmul.f32 1.0, %v3893
    %v3895 = vrcp.pop %v3626
    %v3896 = vmul.f32 1.0, %v3895
    %v3897 = vrcp.pop %v3627
    %v3898 = vmul.f32 1.0, %v3897
    %v3899 = vrcp.pop %v3628
    %v3900 = vmul.f32 1.0, %v3899
    %v3901 = vrcp.pop %v3629
    %v3902 = vmul.f32 1.0, %v3901
    %v3903 = vrcp.pop %v3630
    %v3904 = vmul.f32 1.0, %v3903
    %v3905 = vrcp.pop %v3631
    %v3906 = vmul.f32 1.0, %v3905
    %v3907 = vrcp.pop %v3632
    %v3908 = vmul.f32 1.0, %v3907
    %v3909 = vrcp.pop %v3633
    %v3910 = vmul.f32 1.0, %v3909
    %v3911 = vrcp.pop %v3634
    %v3912 = vmul.f32 1.0, %v3911
    %v3913 = vrcp.pop %v3635
    %v3914 = vmul.f32 1.0, %v3913
    %v3915 = vrcp.pop %v3636
    %v3916 = vmul.f32 1.0, %v3915
    %v3917 = vrcp.pop %v3637
    %v3918 = vmul.f32 1.0, %v3917
    %v3919 = vrcp.pop %v3638
    %v3920 = vmul.f32 1.0, %v3919
    %v3921 = vrcp.pop %v3639
    %v3922 = vmul.f32 1.0, %v3921
    %v3923 = vrcp.pop %v3640
    %v3924 = vmul.f32 1.0, %v3923
    %v3925 = vrcp.pop %v3641
    %v3926 = vmul.f32 1.0, %v3925
    %v3927 = vrcp.pop %v3642
    %v3928 = vmul.f32 1.0, %v3927
    %v3929 = vrcp.pop %v3643
    %v3930 = vmul.f32 1.0, %v3929
    %v3931 = vrcp.pop %v3644
    %v3932 = vmul.f32 1.0, %v3931
    %v3933 = vrcp.pop %v3645
    %v3934 = vmul.f32 1.0, %v3933
    %v3935 = vrcp.pop %v3646
    %v3936 = vmul.f32 1.0, %v3935
    %v3937 = vrcp.pop %v3647
    %v3938 = vmul.f32 1.0, %v3937
    %v3939 = vrcp.pop %v3648
    %v3940 = vmul.f32 1.0, %v3939
    %v3941 = vrcp.pop %v3649
    %v3942 = vmul.f32 1.0, %v3941
    %v3943 = vrcp.pop %v3650
    %v3944 = vmul.f32 1.0, %v3943
    %v3945 = vrcp.pop %v3651
    %v3946 = vmul.f32 1.0, %v3945
    %v3947 = vrcp.pop %v3652
    %v3948 = vmul.f32 1.0, %v3947
    %v3949 = vrcp.pop %v3653
    %v3950 = vmul.f32 1.0, %v3949
    %v3951 = vrcp.pop %v3654
    %v3952 = vmul.f32 1.0, %v3951
    %v3953 = vrcp.pop %v3655
    %v3954 = vmul.f32 1.0, %v3953
    %v3955 = vrcp.pop %v3656
    %v3956 = vmul.f32 1.0, %v3955
    %v3957 = vrcp.pop %v3657
    %v3958 = vmul.f32 1.0, %v3957
    %v3959 = vrcp.pop %v3658
    %v3960 = vmul.f32 1.0, %v3959
    %v3961 = vrcp.pop %v3659
    %v3962 = vmul.f32 1.0, %v3961
    %v3963 = vrcp.pop %v3660
    %v3964 = vmul.f32 1.0, %v3963
    %v3965 = vrcp.pop %v3661
    %v3966 = vmul.f32 1.0, %v3965
    %v3967 = vrcp.pop %v3662
    %v3968 = vmul.f32 1.0, %v3967
    %v3969 = vrcp.pop %v3663
    %v3970 = vmul.f32 1.0, %v3969
    %v3971 = vrcp.pop %v3664
    %v3972 = vmul.f32 1.0, %v3971
    %v3973 = vrcp.pop %v3665
    %v3974 = vmul.f32 1.0, %v3973
    %v3975 = vrcp.pop %v3666
    %v3976 = vmul.f32 1.0, %v3975
    %v3977 = vrcp.pop %v3667
    %v3978 = vmul.f32 1.0, %v3977
    %v3979 = vrcp.pop %v3668
    %v3980 = vmul.f32 1.0, %v3979
    %v3981 = vrcp.pop %v3669
    %v3982 = vmul.f32 1.0, %v3981
    %v3983 = vrcp.pop %v3670
    %v3984 = vmul.f32 1.0, %v3983
    %v3985 = vrcp.pop %v3671
    %v3986 = vmul.f32 1.0, %v3985
    %v3987 = vrcp.pop %v3672
    %v3988 = vmul.f32 1.0, %v3987
    %v3989 = vrcp.pop %v3673
    %v3990 = vmul.f32 1.0, %v3989
    %v3991 = vrcp.pop %v3674
    %v3992 = vmul.f32 1.0, %v3991
    %v3993 = vrcp.pop %v3675
    %v3994 = vmul.f32 1.0, %v3993
    %v3995 = vrcp.pop %v3676
    %v3996 = vmul.f32 1.0, %v3995
    %v3997 = vrcp.pop %v3677
    %v3998 = vmul.f32 1.0, %v3997
    %v3999 = vrcp.pop %v3678
    %v4000 = vmul.f32 1.0, %v3999
    %v4001 = vrcp.pop %v3679
    %v4002 = vmul.f32 1.0, %v4001
    %v4003 = vrcp.pop %v3680
    %v4004 = vmul.f32 1.0, %v4003
    %v4005 = vrcp.pop %v3681
    %v4006 = vmul.f32 1.0, %v4005
    %v4007 = vrcp.pop %v3682
    %v4008 = vmul.f32 1.0, %v4007
    %v4009 = vrcp.pop %v3683
    %v4010 = vmul.f32 1.0, %v4009
    %v4011 = vrcp.pop %v3684
    %v4012 = vmul.f32 1.0, %v4011
    %v4013 = vrcp.pop %v3685
    %v4014 = vmul.f32 1.0, %v4013
    %v4015 = vrcp.pop %v3686
    %v4016 = vmul.f32 1.0, %v4015
    %v4017 = vrcp.pop %v3687
    %v4018 = vmul.f32 1.0, %v4017
    %v4019 = vrcp.pop %v3688
    %v4020 = vmul.f32 1.0, %v4019
    %v4021 = vrcp.pop %v3689
    %v4022 = vmul.f32 1.0, %v4021
    %v4023 = vrcp.pop %v3690
    %v4024 = vmul.f32 1.0, %v4023
    %v4025 = vrcp.pop %v3691
    %v4026 = vmul.f32 1.0, %v4025
    %v4027 = vrcp.pop %v3692
    %v4028 = vmul.f32 1.0, %v4027
    %v4029 = vrcp.pop %v3693
    %v4030 = vmul.f32 1.0, %v4029
    %v4031 = vrcp.pop %v3694
    %v4032 = vmul.f32 1.0, %v4031
    %v4033 = vrcp.pop %v3695
    %v4034 = vmul.f32 1.0, %v4033
    %v4035 = vrcp.pop %v3696
    %v4036 = vmul.f32 1.0, %v4035
    %v4037 = vrcp.pop %v3697
    %v4038 = vmul.f32 1.0, %v4037
    %v4039 = vrcp.pop %v3698
    %v4040 = vmul.f32 1.0, %v4039
    %v4041 = vrcp.pop %v3699
    %v4042 = vmul.f32 1.0, %v4041
    %v4043 = vrcp.pop %v3700
    %v4044 = vmul.f32 1.0, %v4043
    %v4045 = vrcp.pop %v3701
    %v4046 = vmul.f32 1.0, %v4045
    %v4047 = vrcp.pop %v3702
    %v4048 = vmul.f32 1.0, %v4047
    %v4049 = vrcp.pop %v3703
    %v4050 = vmul.f32 1.0, %v4049
    %v4051 = vrcp.pop %v3704
    %v4052 = vmul.f32 1.0, %v4051
    %v4053 = vrcp.pop %v3705
    %v4054 = vmul.f32 1.0, %v4053
    %v4055 = vrcp.pop %v3706
    %v4056 = vmul.f32 1.0, %v4055
    %v4057 = vrcp.pop %v3707
    %v4058 = vmul.f32 1.0, %v4057
    %v4059 = vrcp.pop %v3708
    %v4060 = vmul.f32 1.0, %v4059
    %v4061 = vrcp.pop %v3709
    %v4062 = vmul.f32 1.0, %v4061
    %v4063 = vrcp.pop %v3710
    %v4064 = vmul.f32 1.0, %v4063
    %v4065 = vrcp.pop %v3711
    %v4066 = vmul.f32 1.0, %v4065
    %v4067 = vrcp.pop %v3712
    %v4068 = vmul.f32 1.0, %v4067
    %v4069 = vrcp.pop %v3713
    %v4070 = vmul.f32 1.0, %v4069
    %v4071 = vrcp.pop %v3714
    %v4072 = vmul.f32 1.0, %v4071
    %v4073 = vrcp.pop %v3715
    %v4074 = vmul.f32 1.0, %v4073
    %v4075 = vrcp.pop %v3716
    %v4076 = vmul.f32 1.0, %v4075
    %v4077 = vrcp.pop %v3717
    %v4078 = vmul.f32 1.0, %v4077
    %v4079 = vrcp.pop %v3718
    %v4080 = vmul.f32 1.0, %v4079
    %v4081 = vrcp.pop %v3719
    %v4082 = vmul.f32 1.0, %v4081
    %v4083 = vrcp.pop %v3720
    %v4084 = vmul.f32 1.0, %v4083
    %v4085 = vrcp.pop %v3721
    %v4086 = vmul.f32 1.0, %v4085
    %v4087 = vrcp.pop %v3722
    %v4088 = vmul.f32 1.0, %v4087
    %v4089 = vrcp.pop %v3723
    %v4090 = vmul.f32 1.0, %v4089
    %v4091 = vrcp.pop %v3724
    %v4092 = vmul.f32 1.0, %v4091
    %v4093 = vrcp.pop %v3725
    %v4094 = vmul.f32 1.0, %v4093
    %v4095 = vrcp.pop %v3726
    %v4096 = vmul.f32 1.0, %v4095
    %v4097 = vrcp.pop %v3727
    %v4098 = vmul.f32 1.0, %v4097
    %v4099 = vrcp.pop %v3728
    %v4100 = vmul.f32 1.0, %v4099
    %v4101 = vrcp.pop %v3729
    %v4102 = vmul.f32 1.0, %v4101
    %v4103 = vrcp.pop %v3730
    %v4104 = vmul.f32 1.0, %v4103
    %v4105 = vrcp.pop %v3731
    %v4106 = vmul.f32 1.0, %v4105
    %v4107 = vrcp.pop %v3732
    %v4108 = vmul.f32 1.0, %v4107
    %v4109 = vrcp.pop %v3733
    %v4110 = vmul.f32 1.0, %v4109
    %v4111 = vrcp.pop %v3734
    %v4112 = vmul.f32 1.0, %v4111
    %v4113 = vrcp.pop %v3735
    %v4114 = vmul.f32 1.0, %v4113
    %v4115 = vrcp.pop %v3736
    %v4116 = vmul.f32 1.0, %v4115
    %v4117 = vrcp.pop %v3737
    %v4118 = vmul.f32 1.0, %v4117
    %v4119 = vrcp.pop %v3738
    %v4120 = vmul.f32 1.0, %v4119
    %v4121 = vrcp.pop %v3739
    %v4122 = vmul.f32 1.0, %v4121
    %v4123 = vrcp.pop %v3740
    %v4124 = vmul.f32 1.0, %v4123
    %v4125 = vrcp.pop %v3741
    %v4126 = vmul.f32 1.0, %v4125
    %v4127 = vrcp.pop %v3742
    %v4128 = vmul.f32 1.0, %v4127
    %v4129 = vrcp.pop %v3743
    %v4130 = vmul.f32 1.0, %v4129
    %v4131 = vrcp.pop %v3744
    %v4132 = vmul.f32 1.0, %v4131
    %v4133 = vrcp.pop %v3745
    %v4134 = vmul.f32 1.0, %v4133
    %v4135 = vrcp.pop %v3746
    %v4136 = vmul.f32 1.0, %v4135
    %v4137 = vrcp.pop %v3747
    %v4138 = vmul.f32 1.0, %v4137
    %v4139 = vrcp.pop %v3748
    %v4140 = vmul.f32 1.0, %v4139
    %v4141 = vrcp.pop %v3749
    %v4142 = vmul.f32 1.0, %v4141
    %v4143 = vrcp.pop %v3750
    %v4144 = vmul.f32 1.0, %v4143
    %v4145 = vrcp.pop %v3751
    %v4146 = vmul.f32 1.0, %v4145
    %v4147 = vrcp.pop %v3752
    %v4148 = vmul.f32 1.0, %v4147
    %v4149 = vrcp.pop %v3753
    %v4150 = vmul.f32 1.0, %v4149
    %v4151 = vrcp.pop %v3754
    %v4152 = vmul.f32 1.0, %v4151
    %v4153 = vrcp.pop %v3755
    %v4154 = vmul.f32 1.0, %v4153
    %v4155 = vrcp.pop %v3756
    %v4156 = vmul.f32 1.0, %v4155
    %v4157 = vrcp.pop %v3757
    %v4158 = vmul.f32 1.0, %v4157
    %v4159 = vrcp.pop %v3758
    %v4160 = vmul.f32 1.0, %v4159
    %v4161 = vrcp.pop %v3759
    %v4162 = vmul.f32 1.0, %v4161
    %v4163 = vrcp.pop %v3760
    %v4164 = vmul.f32 1.0, %v4163
    %v4165 = vrcp.pop %v3761
    %v4166 = vmul.f32 1.0, %v4165
    %v4167 = vrcp.pop %v3762
    %v4168 = vmul.f32 1.0, %v4167
    %v4169 = vrcp.pop %v3763
    %v4170 = vmul.f32 1.0, %v4169
    %v4171 = vrcp.pop %v3764
    %v4172 = vmul.f32 1.0, %v4171
    %v4173 = vrcp.pop %v3765
    %v4174 = vmul.f32 1.0, %v4173
    %v4175 = vrcp.pop %v3766
    %v4176 = vmul.f32 1.0, %v4175
    %v4177 = vrcp.pop %v3767
    %v4178 = vmul.f32 1.0, %v4177
    %v4179 = vrcp.pop %v3768
    %v4180 = vmul.f32 1.0, %v4179
    %v4181 = vrcp.pop %v3769
    %v4182 = vmul.f32 1.0, %v4181
    %v4183 = vrcp.pop %v3770
    %v4184 = vmul.f32 1.0, %v4183
    %v4185 = vrcp.pop %v3771
    %v4186 = vmul.f32 1.0, %v4185
    %v4187 = vrcp.pop %v3772
    %v4188 = vmul.f32 1.0, %v4187
    %v4189 = vrcp.pop %v3773
    %v4190 = vmul.f32 1.0, %v4189
    %v4191 = vrcp.pop %v3774
    %v4192 = vmul.f32 1.0, %v4191
    %v4193 = vrcp.pop %v3775
    %v4194 = vmul.f32 1.0, %v4193
    %v4195 = vrcp.pop %v3776
    %v4196 = vmul.f32 1.0, %v4195
    %v4197 = vrcp.pop %v3777
    %v4198 = vmul.f32 1.0, %v4197
    %v4199 = vrcp.pop %v3778
    %v4200 = vmul.f32 1.0, %v4199
    %v4201 = vrcp.pop %v3779
    %v4202 = vmul.f32 1.0, %v4201
    %v4203 = vrcp.pop %v3780
    %v4204 = vmul.f32 1.0, %v4203
    %v4205 = vrcp.pop %v3781
    %v4206 = vmul.f32 1.0, %v4205
    %v4207 = vrcp.pop %v3782
    %v4208 = vmul.f32 1.0, %v4207
    %v4209 = vrcp.pop %v3783
    %v4210 = vmul.f32 1.0, %v4209
    %v4211 = vrcp.pop %v3784
    %v4212 = vmul.f32 1.0, %v4211
    %v4213 = vrcp.pop %v3785
    %v4214 = vmul.f32 1.0, %v4213
    %v4215 = vrcp.pop %v3786
    %v4216 = vmul.f32 1.0, %v4215
    %v4217 = vrcp.pop %v3787
    %v4218 = vmul.f32 1.0, %v4217
    %v4219 = vrcp.pop %v3788
    %v4220 = vmul.f32 1.0, %v4219
    %v4221 = vrcp.pop %v3789
    %v4222 = vmul.f32 1.0, %v4221
    %v4223 = vrcp.pop %v3790
    %v4224 = vmul.f32 1.0, %v4223
    %v4225 = vrcp.pop %v3791
    %v4226 = vmul.f32 1.0, %v4225
    %v4227 = vrcp.pop %v3792
    %v4228 = vmul.f32 1.0, %v4227
    %v4229 = vrcp.pop %v3793
    %v4230 = vmul.f32 1.0, %v4229
    %v4231 = vrcp.pop %v3794
    %v4232 = vmul.f32 1.0, %v4231
    %v4233 = vrcp.pop %v3795
    %v4234 = vmul.f32 1.0, %v4233
    %v4235 = vrcp.pop %v3796
    %v4236 = vmul.f32 1.0, %v4235
    %v4237 = vrcp.pop %v3797
    %v4238 = vmul.f32 1.0, %v4237
    %v4239 = vrcp.pop %v3798
    %v4240 = vmul.f32 1.0, %v4239
    %v4241 = vrcp.pop %v3799
    %v4242 = vmul.f32 1.0, %v4241
    %v4243 = vrcp.pop %v3800
    %v4244 = vmul.f32 1.0, %v4243
    %v4245 = vrcp.pop %v3801
    %v4246 = vmul.f32 1.0, %v4245
    %v4247 = vrcp.pop %v3802
    %v4248 = vmul.f32 1.0, %v4247
    %v4249 = vrcp.pop %v3803
    %v4250 = vmul.f32 1.0, %v4249
    %v4251 = vrcp.pop %v3804
    %v4252 = vmul.f32 1.0, %v4251
    %v4253 = vrcp.pop %v3805
    %v4254 = vmul.f32 1.0, %v4253
    %v4255 = vrcp.pop %v3806
    %v4256 = vmul.f32 1.0, %v4255
    %v4257 = vrcp.pop %v3807
    %v4258 = vmul.f32 1.0, %v4257
    %v4259 = vrcp.pop %v3808
    %v4260 = vmul.f32 1.0, %v4259
    %v4261 = vrcp.pop %v3809
    %v4262 = vmul.f32 1.0, %v4261
    %v4263 = vrcp.pop %v3810
    %v4264 = vmul.f32 1.0, %v4263
    %v4265 = vrcp.pop %v3811
    %v4266 = vmul.f32 1.0, %v4265
    %v4267 = vrcp.pop %v3812
    %v4268 = vmul.f32 1.0, %v4267
    %v4269 = vrcp.pop %v3813
    %v4270 = vmul.f32 1.0, %v4269
    %v4271 = vrcp.pop %v3814
    %v4272 = vmul.f32 1.0, %v4271
    %v4273 = vrcp.pop %v3815
    %v4274 = vmul.f32 1.0, %v4273
    %v4275 = vrcp.pop %v3816
    %v4276 = vmul.f32 1.0, %v4275
    %v4277 = vrcp.pop %v3817
    %v4278 = vmul.f32 1.0, %v4277
    %v4279 = vrcp.pop %v3818
    %v4280 = vmul.f32 1.0, %v4279
    %v4281 = vrcp.pop %v3819
    %v4282 = vmul.f32 1.0, %v4281
    %v4283 = vrcp.pop %v3820
    %v4284 = vmul.f32 1.0, %v4283
    %v4285 = vrcp.pop %v3821
    %v4286 = vmul.f32 1.0, %v4285
    %v4287 = vrcp.pop %v3822
    %v4288 = vmul.f32 1.0, %v4287
    %v4289 = vrcp.pop %v3823
    %v4290 = vmul.f32 1.0, %v4289
    %v4291 = vrcp.pop %v3824
    %v4292 = vmul.f32 1.0, %v4291
    %v4293 = vrcp.pop %v3825
    %v4294 = vmul.f32 1.0, %v4293
    %v4295 = vrcp.pop %v3826
    %v4296 = vmul.f32 1.0, %v4295
    %v4297 = vrcp.pop %v3827
    %v4298 = vmul.f32 1.0, %v4297
    %v4299 = vrcp.pop %v3828
    %v4300 = vmul.f32 1.0, %v4299
    %v4301 = vrcp.pop %v3829
    %v4302 = vmul.f32 1.0, %v4301
    %v4303 = vrcp.pop %v3830
    %v4304 = vmul.f32 1.0, %v4303
    %v4305 = vrcp.pop %v3831
    %v4306 = vmul.f32 1.0, %v4305
    %v4307 = vrcp.pop %v3832
    %v4308 = vmul.f32 1.0, %v4307
    %v4309 = vrcp.pop %v3833
    %v4310 = vmul.f32 1.0, %v4309
    %v4311 = vrcp.pop %v3834
    %v4312 = vmul.f32 1.0, %v4311
    %v4313 = vrcp.pop %v3835
    %v4314 = vmul.f32 1.0, %v4313
    %v4315 = vrcp.pop %v3836
    %v4316 = vmul.f32 1.0, %v4315
    %v4317 = vrcp.pop %v3837
    %v4318 = vmul.f32 1.0, %v4317
    %v4319 = vrcp.pop %v3838
    %v4320 = vmul.f32 1.0, %v4319
    %v4321 = vrcp.pop %v3839
    %v4322 = vmul.f32 1.0, %v4321
    %v4323 = vrcp.pop %v3840
    %v4324 = vmul.f32 1.0, %v4323
    %v4325 = vrcp.pop %v3841
    %v4326 = vmul.f32 1.0, %v4325
    %v4327 = vrcp.pop %v3842
    %v4328 = vmul.f32 1.0, %v4327
    %v4329 = vrcp.pop %v3843
    %v4330 = vmul.f32 1.0, %v4329
    %v4331 = vrcp.pop %v3844
    %v4332 = vmul.f32 1.0, %v4331
    %v4333 = vrcp.pop %v3845
    %v4334 = vmul.f32 1.0, %v4333
    %v4335 = vrcp.pop %v3846
    %v4336 = vmul.f32 1.0, %v4335
    %v4337 = vrcp.pop %v3847
    %v4338 = vmul.f32 1.0, %v4337
    %v4339 = vrcp.pop %v3848
    %v4340 = vmul.f32 1.0, %v4339
    %v4341 = vrcp.pop %v3849
    %v4342 = vmul.f32 1.0, %v4341
    %v4343 = vrcp.pop %v3850
    %v4344 = vmul.f32 1.0, %v4343
    %v4345 = vrcp.pop %v3851
    %v4346 = vmul.f32 1.0, %v4345
    %v4347 = vrcp.pop %v3852
    %v4348 = vmul.f32 1.0, %v4347
    %v4349 = vrcp.pop %v3853
    %v4350 = vmul.f32 1.0, %v4349
    %v4351 = vrcp.pop %v3854
    %v4352 = vmul.f32 1.0, %v4351
    %v4353 = vrcp.pop %v3855
    %v4354 = vmul.f32 1.0, %v4353
    %v4355 = vrcp.pop %v3856
    %v4356 = vmul.f32 1.0, %v4355
    %v4357 = vrcp.pop %v3857
    %v4358 = vmul.f32 1.0, %v4357
    %v4359 = vrcp.pop %v3858
    %v4360 = vmul.f32 1.0, %v4359
    %v4361 = vrcp.pop %v3859
    %v4362 = vmul.f32 1.0, %v4361
    %v4363 = vrcp.pop %v3860
    %v4364 = vmul.f32 1.0, %v4363
    %v4365 = vrcp.pop %v3861
    %v4366 = vmul.f32 1.0, %v4365
    %v4367 = vrcp.pop %v3862
    %v4368 = vmul.f32 1.0, %v4367
    %v4369 = vrcp.pop %v3863
    %v4370 = vmul.f32 1.0, %v4369
    %v4371 = vrcp.pop %v3864
    %v4372 = vmul.f32 1.0, %v4371
    %v4373 = vrcp.pop %v3865
    %v4374 = vmul.f32 1.0, %v4373
    %v4375 = vrcp.pop %v3866
    %v4376 = vmul.f32 1.0, %v4375
    %v4377 = vrcp.pop %v3867
    %v4378 = vmul.f32 1.0, %v4377
    %v4379 = vrcp.pop %v3868
    %v4380 = vmul.f32 1.0, %v4379
    %vm4381 = vcmp.ne.f32.partialorder %v66, 0.0
    %vm4382 = vcmp.ne.f32.partialorder %v67, 0.0
    %vm4383 = vcmp.ne.f32.partialorder %v68, 0.0
    %vm4384 = vcmp.ne.f32.partialorder %v69, 0.0
    %vm4385 = vcmp.ne.f32.partialorder %v70, 0.0
    %vm4386 = vcmp.ne.f32.partialorder %v71, 0.0
    %vm4387 = vcmp.ne.f32.partialorder %v72, 0.0
    %vm4388 = vcmp.ne.f32.partialorder %v73, 0.0
    %v4645 = vlaneseq
    %v4646 = vand.u32 %v4645, 127
    %v4647 = vlaneseq
    %v4648 = vshrl.u32 %v4647, 7
    %v4649 = vsub.s32 %v4646, %v4648
    %v4650 = vrot.slane %v3870, %v4649
    %v4651 = vadd.s32 %v4646, 4294967288
    %v4652 = vlaneseq
    %v4653 = vshrl.u32 %v4652, 7
    %v4654 = vsub.s32 %v4651, %v4653
    %v4655 = vrot.slane %v3872, %v4654
    %vm4656 = vcmask 130112
    %v4657 = vsel %vm4656, %v4655, %v4650
    %v4658 = vadd.s32 %v4646, 4294967280
    %v4659 = vlaneseq
    %v4660 = vshrl.u32 %v4659, 7
    %v4661 = vsub.s32 %v4658, %v4660
    %v4662 = vrot.slane %v3874, %v4661
    %vm4663 = vcmask 195712
    %v4664 = vsel %vm4663, %v4662, %v4657
    %v4665 = vadd.s32 %v4646, 4294967272
    %v4666 = vlaneseq
    %v4667 = vshrl.u32 %v4666, 7
    %v4668 = vsub.s32 %v4665, %v4667
    %v4669 = vrot.slane %v3876, %v4668
    %vm4670 = vcmask 261312
    %v4671 = vsel %vm4670, %v4669, %v4664
    %v4672 = vlaneseq
    %v4673 = vshrl.u32 %v4672, 7
    %v4674 = vsub.s32 %v4646, %v4673
    %v4675 = vrot.slane %v3878, %v4674
    %v4676 = vlaneseq
    %v4677 = vshrl.u32 %v4676, 7
    %v4678 = vsub.s32 %v4651, %v4677
    %v4679 = vrot.slane %v3880, %v4678
    %v4680 = vsel %vm4656, %v4679, %v4675
    %v4681 = vlaneseq
    %v4682 = vshrl.u32 %v4681, 7
    %v4683 = vsub.s32 %v4658, %v4682
    %v4684 = vrot.slane %v3882, %v4683
    %v4685 = vsel %vm4663, %v4684, %v4680
    %v4686 = vlaneseq
    %v4687 = vshrl.u32 %v4686, 7
    %v4688 = vsub.s32 %v4665, %v4687
    %v4689 = vrot.slane %v3884, %v4688
    %v4690 = vsel %vm4670, %v4689, %v4685
    %v4691 = vlaneseq
    %v4692 = vshrl.u32 %v4691, 7
    %v4693 = vsub.s32 %v4646, %v4692
    %v4694 = vrot.slane %v3886, %v4693
    %v4695 = vlaneseq
    %v4696 = vshrl.u32 %v4695, 7
    %v4697 = vsub.s32 %v4651, %v4696
    %v4698 = vrot.slane %v3888, %v4697
    %v4699 = vsel %vm4656, %v4698, %v4694
    %v4700 = vlaneseq
    %v4701 = vshrl.u32 %v4700, 7
    %v4702 = vsub.s32 %v4658, %v4701
    %v4703 = vrot.slane %v3890, %v4702
    %v4704 = vsel %vm4663, %v4703, %v4699
    %v4705 = vlaneseq
    %v4706 = vshrl.u32 %v4705, 7
    %v4707 = vsub.s32 %v4665, %v4706
    %v4708 = vrot.slane %v3892, %v4707
    %v4709 = vsel %vm4670, %v4708, %v4704
    %v4710 = vlaneseq
    %v4711 = vshrl.u32 %v4710, 7
    %v4712 = vsub.s32 %v4646, %v4711
    %v4713 = vrot.slane %v3894, %v4712
    %v4714 = vlaneseq
    %v4715 = vshrl.u32 %v4714, 7
    %v4716 = vsub.s32 %v4651, %v4715
    %v4717 = vrot.slane %v3896, %v4716
    %v4718 = vsel %vm4656, %v4717, %v4713
    %v4719 = vlaneseq
    %v4720 = vshrl.u32 %v4719, 7
    %v4721 = vsub.s32 %v4658, %v4720
    %v4722 = vrot.slane %v3898, %v4721
    %v4723 = vsel %vm4663, %v4722, %v4718
    %v4724 = vlaneseq
    %v4725 = vshrl.u32 %v4724, 7
    %v4726 = vsub.s32 %v4665, %v4725
    %v4727 = vrot.slane %v3900, %v4726
    %v4728 = vsel %vm4670, %v4727, %v4723
    %v4729 = vlaneseq
    %v4730 = vshrl.u32 %v4729, 7
    %v4731 = vsub.s32 %v4646, %v4730
    %v4732 = vrot.slane %v3902, %v4731
    %v4733 = vlaneseq
    %v4734 = vshrl.u32 %v4733, 7
    %v4735 = vsub.s32 %v4651, %v4734
    %v4736 = vrot.slane %v3904, %v4735
    %v4737 = vsel %vm4656, %v4736, %v4732
    %v4738 = vlaneseq
    %v4739 = vshrl.u32 %v4738, 7
    %v4740 = vsub.s32 %v4658, %v4739
    %v4741 = vrot.slane %v3906, %v4740
    %v4742 = vsel %vm4663, %v4741, %v4737
    %v4743 = vlaneseq
    %v4744 = vshrl.u32 %v4743, 7
    %v4745 = vsub.s32 %v4665, %v4744
    %v4746 = vrot.slane %v3908, %v4745
    %v4747 = vsel %vm4670, %v4746, %v4742
    %v4748 = vlaneseq
    %v4749 = vshrl.u32 %v4748, 7
    %v4750 = vsub.s32 %v4646, %v4749
    %v4751 = vrot.slane %v3910, %v4750
    %v4752 = vlaneseq
    %v4753 = vshrl.u32 %v4752, 7
    %v4754 = vsub.s32 %v4651, %v4753
    %v4755 = vrot.slane %v3912, %v4754
    %v4756 = vsel %vm4656, %v4755, %v4751
    %v4757 = vlaneseq
    %v4758 = vshrl.u32 %v4757, 7
    %v4759 = vsub.s32 %v4658, %v4758
    %v4760 = vrot.slane %v3914, %v4759
    %v4761 = vsel %vm4663, %v4760, %v4756
    %v4762 = vlaneseq
    %v4763 = vshrl.u32 %v4762, 7
    %v4764 = vsub.s32 %v4665, %v4763
    %v4765 = vrot.slane %v3916, %v4764
    %v4766 = vsel %vm4670, %v4765, %v4761
    %v4767 = vlaneseq
    %v4768 = vshrl.u32 %v4767, 7
    %v4769 = vsub.s32 %v4646, %v4768
    %v4770 = vrot.slane %v3918, %v4769
    %v4771 = vlaneseq
    %v4772 = vshrl.u32 %v4771, 7
    %v4773 = vsub.s32 %v4651, %v4772
    %v4774 = vrot.slane %v3920, %v4773
    %v4775 = vsel %vm4656, %v4774, %v4770
    %v4776 = vlaneseq
    %v4777 = vshrl.u32 %v4776, 7
    %v4778 = vsub.s32 %v4658, %v4777
    %v4779 = vrot.slane %v3922, %v4778
    %v4780 = vsel %vm4663, %v4779, %v4775
    %v4781 = vlaneseq
    %v4782 = vshrl.u32 %v4781, 7
    %v4783 = vsub.s32 %v4665, %v4782
    %v4784 = vrot.slane %v3924, %v4783
    %v4785 = vsel %vm4670, %v4784, %v4780
    %v4786 = vlaneseq
    %v4787 = vshrl.u32 %v4786, 7
    %v4788 = vsub.s32 %v4646, %v4787
    %v4789 = vrot.slane %v3926, %v4788
    %v4790 = vlaneseq
    %v4791 = vshrl.u32 %v4790, 7
    %v4792 = vsub.s32 %v4651, %v4791
    %v4793 = vrot.slane %v3928, %v4792
    %v4794 = vsel %vm4656, %v4793, %v4789
    %v4795 = vlaneseq
    %v4796 = vshrl.u32 %v4795, 7
    %v4797 = vsub.s32 %v4658, %v4796
    %v4798 = vrot.slane %v3930, %v4797
    %v4799 = vsel %vm4663, %v4798, %v4794
    %v4800 = vlaneseq
    %v4801 = vshrl.u32 %v4800, 7
    %v4802 = vsub.s32 %v4665, %v4801
    %v4803 = vrot.slane %v3932, %v4802
    %v4804 = vsel %vm4670, %v4803, %v4799
    %v4805 = vlaneseq
    %v4806 = vshrl.u32 %v4805, 7
    %v4807 = vsub.s32 %v4646, %v4806
    %v4808 = vrot.slane %v3934, %v4807
    %v4809 = vlaneseq
    %v4810 = vshrl.u32 %v4809, 7
    %v4811 = vsub.s32 %v4651, %v4810
    %v4812 = vrot.slane %v3936, %v4811
    %v4813 = vsel %vm4656, %v4812, %v4808
    %v4814 = vlaneseq
    %v4815 = vshrl.u32 %v4814, 7
    %v4816 = vsub.s32 %v4658, %v4815
    %v4817 = vrot.slane %v3938, %v4816
    %v4818 = vsel %vm4663, %v4817, %v4813
    %v4819 = vlaneseq
    %v4820 = vshrl.u32 %v4819, 7
    %v4821 = vsub.s32 %v4665, %v4820
    %v4822 = vrot.slane %v3940, %v4821
    %v4823 = vsel %vm4670, %v4822, %v4818
    %v4824 = vlaneseq
    %v4825 = vshrl.u32 %v4824, 7
    %v4826 = vsub.s32 %v4646, %v4825
    %v4827 = vrot.slane %v3942, %v4826
    %v4828 = vlaneseq
    %v4829 = vshrl.u32 %v4828, 7
    %v4830 = vsub.s32 %v4651, %v4829
    %v4831 = vrot.slane %v3944, %v4830
    %v4832 = vsel %vm4656, %v4831, %v4827
    %v4833 = vlaneseq
    %v4834 = vshrl.u32 %v4833, 7
    %v4835 = vsub.s32 %v4658, %v4834
    %v4836 = vrot.slane %v3946, %v4835
    %v4837 = vsel %vm4663, %v4836, %v4832
    %v4838 = vlaneseq
    %v4839 = vshrl.u32 %v4838, 7
    %v4840 = vsub.s32 %v4665, %v4839
    %v4841 = vrot.slane %v3948, %v4840
    %v4842 = vsel %vm4670, %v4841, %v4837
    %v4843 = vlaneseq
    %v4844 = vshrl.u32 %v4843, 7
    %v4845 = vsub.s32 %v4646, %v4844
    %v4846 = vrot.slane %v3950, %v4845
    %v4847 = vlaneseq
    %v4848 = vshrl.u32 %v4847, 7
    %v4849 = vsub.s32 %v4651, %v4848
    %v4850 = vrot.slane %v3952, %v4849
    %v4851 = vsel %vm4656, %v4850, %v4846
    %v4852 = vlaneseq
    %v4853 = vshrl.u32 %v4852, 7
    %v4854 = vsub.s32 %v4658, %v4853
    %v4855 = vrot.slane %v3954, %v4854
    %v4856 = vsel %vm4663, %v4855, %v4851
    %v4857 = vlaneseq
    %v4858 = vshrl.u32 %v4857, 7
    %v4859 = vsub.s32 %v4665, %v4858
    %v4860 = vrot.slane %v3956, %v4859
    %v4861 = vsel %vm4670, %v4860, %v4856
    %v4862 = vlaneseq
    %v4863 = vshrl.u32 %v4862, 7
    %v4864 = vsub.s32 %v4646, %v4863
    %v4865 = vrot.slane %v3958, %v4864
    %v4866 = vlaneseq
    %v4867 = vshrl.u32 %v4866, 7
    %v4868 = vsub.s32 %v4651, %v4867
    %v4869 = vrot.slane %v3960, %v4868
    %v4870 = vsel %vm4656, %v4869, %v4865
    %v4871 = vlaneseq
    %v4872 = vshrl.u32 %v4871, 7
    %v4873 = vsub.s32 %v4658, %v4872
    %v4874 = vrot.slane %v3962, %v4873
    %v4875 = vsel %vm4663, %v4874, %v4870
    %v4876 = vlaneseq
    %v4877 = vshrl.u32 %v4876, 7
    %v4878 = vsub.s32 %v4665, %v4877
    %v4879 = vrot.slane %v3964, %v4878
    %v4880 = vsel %vm4670, %v4879, %v4875
    %v4881 = vlaneseq
    %v4882 = vshrl.u32 %v4881, 7
    %v4883 = vsub.s32 %v4646, %v4882
    %v4884 = vrot.slane %v3966, %v4883
    %v4885 = vlaneseq
    %v4886 = vshrl.u32 %v4885, 7
    %v4887 = vsub.s32 %v4651, %v4886
    %v4888 = vrot.slane %v3968, %v4887
    %v4889 = vsel %vm4656, %v4888, %v4884
    %v4890 = vlaneseq
    %v4891 = vshrl.u32 %v4890, 7
    %v4892 = vsub.s32 %v4658, %v4891
    %v4893 = vrot.slane %v3970, %v4892
    %v4894 = vsel %vm4663, %v4893, %v4889
    %v4895 = vlaneseq
    %v4896 = vshrl.u32 %v4895, 7
    %v4897 = vsub.s32 %v4665, %v4896
    %v4898 = vrot.slane %v3972, %v4897
    %v4899 = vsel %vm4670, %v4898, %v4894
    %v4900 = vlaneseq
    %v4901 = vshrl.u32 %v4900, 7
    %v4902 = vsub.s32 %v4646, %v4901
    %v4903 = vrot.slane %v3974, %v4902
    %v4904 = vlaneseq
    %v4905 = vshrl.u32 %v4904, 7
    %v4906 = vsub.s32 %v4651, %v4905
    %v4907 = vrot.slane %v3976, %v4906
    %v4908 = vsel %vm4656, %v4907, %v4903
    %v4909 = vlaneseq
    %v4910 = vshrl.u32 %v4909, 7
    %v4911 = vsub.s32 %v4658, %v4910
    %v4912 = vrot.slane %v3978, %v4911
    %v4913 = vsel %vm4663, %v4912, %v4908
    %v4914 = vlaneseq
    %v4915 = vshrl.u32 %v4914, 7
    %v4916 = vsub.s32 %v4665, %v4915
    %v4917 = vrot.slane %v3980, %v4916
    %v4918 = vsel %vm4670, %v4917, %v4913
    %v4919 = vlaneseq
    %v4920 = vshrl.u32 %v4919, 7
    %v4921 = vsub.s32 %v4646, %v4920
    %v4922 = vrot.slane %v3982, %v4921
    %v4923 = vlaneseq
    %v4924 = vshrl.u32 %v4923, 7
    %v4925 = vsub.s32 %v4651, %v4924
    %v4926 = vrot.slane %v3984, %v4925
    %v4927 = vsel %vm4656, %v4926, %v4922
    %v4928 = vlaneseq
    %v4929 = vshrl.u32 %v4928, 7
    %v4930 = vsub.s32 %v4658, %v4929
    %v4931 = vrot.slane %v3986, %v4930
    %v4932 = vsel %vm4663, %v4931, %v4927
    %v4933 = vlaneseq
    %v4934 = vshrl.u32 %v4933, 7
    %v4935 = vsub.s32 %v4665, %v4934
    %v4936 = vrot.slane %v3988, %v4935
    %v4937 = vsel %vm4670, %v4936, %v4932
    %v4938 = vlaneseq
    %v4939 = vshrl.u32 %v4938, 7
    %v4940 = vsub.s32 %v4646, %v4939
    %v4941 = vrot.slane %v3990, %v4940
    %v4942 = vlaneseq
    %v4943 = vshrl.u32 %v4942, 7
    %v4944 = vsub.s32 %v4651, %v4943
    %v4945 = vrot.slane %v3992, %v4944
    %v4946 = vsel %vm4656, %v4945, %v4941
    %v4947 = vlaneseq
    %v4948 = vshrl.u32 %v4947, 7
    %v4949 = vsub.s32 %v4658, %v4948
    %v4950 = vrot.slane %v3994, %v4949
    %v4951 = vsel %vm4663, %v4950, %v4946
    %v4952 = vlaneseq
    %v4953 = vshrl.u32 %v4952, 7
    %v4954 = vsub.s32 %v4665, %v4953
    %v4955 = vrot.slane %v3996, %v4954
    %v4956 = vsel %vm4670, %v4955, %v4951
    %v4957 = vlaneseq
    %v4958 = vshrl.u32 %v4957, 7
    %v4959 = vsub.s32 %v4646, %v4958
    %v4960 = vrot.slane %v3998, %v4959
    %v4961 = vlaneseq
    %v4962 = vshrl.u32 %v4961, 7
    %v4963 = vsub.s32 %v4651, %v4962
    %v4964 = vrot.slane %v4000, %v4963
    %v4965 = vsel %vm4656, %v4964, %v4960
    %v4966 = vlaneseq
    %v4967 = vshrl.u32 %v4966, 7
    %v4968 = vsub.s32 %v4658, %v4967
    %v4969 = vrot.slane %v4002, %v4968
    %v4970 = vsel %vm4663, %v4969, %v4965
    %v4971 = vlaneseq
    %v4972 = vshrl.u32 %v4971, 7
    %v4973 = vsub.s32 %v4665, %v4972
    %v4974 = vrot.slane %v4004, %v4973
    %v4975 = vsel %vm4670, %v4974, %v4970
    %v4976 = vlaneseq
    %v4977 = vshrl.u32 %v4976, 7
    %v4978 = vsub.s32 %v4646, %v4977
    %v4979 = vrot.slane %v4006, %v4978
    %v4980 = vlaneseq
    %v4981 = vshrl.u32 %v4980, 7
    %v4982 = vsub.s32 %v4651, %v4981
    %v4983 = vrot.slane %v4008, %v4982
    %v4984 = vsel %vm4656, %v4983, %v4979
    %v4985 = vlaneseq
    %v4986 = vshrl.u32 %v4985, 7
    %v4987 = vsub.s32 %v4658, %v4986
    %v4988 = vrot.slane %v4010, %v4987
    %v4989 = vsel %vm4663, %v4988, %v4984
    %v4990 = vlaneseq
    %v4991 = vshrl.u32 %v4990, 7
    %v4992 = vsub.s32 %v4665, %v4991
    %v4993 = vrot.slane %v4012, %v4992
    %v4994 = vsel %vm4670, %v4993, %v4989
    %v4995 = vlaneseq
    %v4996 = vshrl.u32 %v4995, 7
    %v4997 = vsub.s32 %v4646, %v4996
    %v4998 = vrot.slane %v4014, %v4997
    %v4999 = vlaneseq
    %v5000 = vshrl.u32 %v4999, 7
    %v5001 = vsub.s32 %v4651, %v5000
    %v5002 = vrot.slane %v4016, %v5001
    %v5003 = vsel %vm4656, %v5002, %v4998
    %v5004 = vlaneseq
    %v5005 = vshrl.u32 %v5004, 7
    %v5006 = vsub.s32 %v4658, %v5005
    %v5007 = vrot.slane %v4018, %v5006
    %v5008 = vsel %vm4663, %v5007, %v5003
    %v5009 = vlaneseq
    %v5010 = vshrl.u32 %v5009, 7
    %v5011 = vsub.s32 %v4665, %v5010
    %v5012 = vrot.slane %v4020, %v5011
    %v5013 = vsel %vm4670, %v5012, %v5008
    %v5014 = vlaneseq
    %v5015 = vshrl.u32 %v5014, 7
    %v5016 = vsub.s32 %v4646, %v5015
    %v5017 = vrot.slane %v4022, %v5016
    %v5018 = vlaneseq
    %v5019 = vshrl.u32 %v5018, 7
    %v5020 = vsub.s32 %v4651, %v5019
    %v5021 = vrot.slane %v4024, %v5020
    %v5022 = vsel %vm4656, %v5021, %v5017
    %v5023 = vlaneseq
    %v5024 = vshrl.u32 %v5023, 7
    %v5025 = vsub.s32 %v4658, %v5024
    %v5026 = vrot.slane %v4026, %v5025
    %v5027 = vsel %vm4663, %v5026, %v5022
    %v5028 = vlaneseq
    %v5029 = vshrl.u32 %v5028, 7
    %v5030 = vsub.s32 %v4665, %v5029
    %v5031 = vrot.slane %v4028, %v5030
    %v5032 = vsel %vm4670, %v5031, %v5027
    %v5033 = vlaneseq
    %v5034 = vshrl.u32 %v5033, 7
    %v5035 = vsub.s32 %v4646, %v5034
    %v5036 = vrot.slane %v4030, %v5035
    %v5037 = vlaneseq
    %v5038 = vshrl.u32 %v5037, 7
    %v5039 = vsub.s32 %v4651, %v5038
    %v5040 = vrot.slane %v4032, %v5039
    %v5041 = vsel %vm4656, %v5040, %v5036
    %v5042 = vlaneseq
    %v5043 = vshrl.u32 %v5042, 7
    %v5044 = vsub.s32 %v4658, %v5043
    %v5045 = vrot.slane %v4034, %v5044
    %v5046 = vsel %vm4663, %v5045, %v5041
    %v5047 = vlaneseq
    %v5048 = vshrl.u32 %v5047, 7
    %v5049 = vsub.s32 %v4665, %v5048
    %v5050 = vrot.slane %v4036, %v5049
    %v5051 = vsel %vm4670, %v5050, %v5046
    %v5052 = vlaneseq
    %v5053 = vshrl.u32 %v5052, 7
    %v5054 = vsub.s32 %v4646, %v5053
    %v5055 = vrot.slane %v4038, %v5054
    %v5056 = vlaneseq
    %v5057 = vshrl.u32 %v5056, 7
    %v5058 = vsub.s32 %v4651, %v5057
    %v5059 = vrot.slane %v4040, %v5058
    %v5060 = vsel %vm4656, %v5059, %v5055
    %v5061 = vlaneseq
    %v5062 = vshrl.u32 %v5061, 7
    %v5063 = vsub.s32 %v4658, %v5062
    %v5064 = vrot.slane %v4042, %v5063
    %v5065 = vsel %vm4663, %v5064, %v5060
    %v5066 = vlaneseq
    %v5067 = vshrl.u32 %v5066, 7
    %v5068 = vsub.s32 %v4665, %v5067
    %v5069 = vrot.slane %v4044, %v5068
    %v5070 = vsel %vm4670, %v5069, %v5065
    %v5071 = vlaneseq
    %v5072 = vshrl.u32 %v5071, 7
    %v5073 = vsub.s32 %v4646, %v5072
    %v5074 = vrot.slane %v4046, %v5073
    %v5075 = vlaneseq
    %v5076 = vshrl.u32 %v5075, 7
    %v5077 = vsub.s32 %v4651, %v5076
    %v5078 = vrot.slane %v4048, %v5077
    %v5079 = vsel %vm4656, %v5078, %v5074
    %v5080 = vlaneseq
    %v5081 = vshrl.u32 %v5080, 7
    %v5082 = vsub.s32 %v4658, %v5081
    %v5083 = vrot.slane %v4050, %v5082
    %v5084 = vsel %vm4663, %v5083, %v5079
    %v5085 = vlaneseq
    %v5086 = vshrl.u32 %v5085, 7
    %v5087 = vsub.s32 %v4665, %v5086
    %v5088 = vrot.slane %v4052, %v5087
    %v5089 = vsel %vm4670, %v5088, %v5084
    %v5090 = vlaneseq
    %v5091 = vshrl.u32 %v5090, 7
    %v5092 = vsub.s32 %v4646, %v5091
    %v5093 = vrot.slane %v4054, %v5092
    %v5094 = vlaneseq
    %v5095 = vshrl.u32 %v5094, 7
    %v5096 = vsub.s32 %v4651, %v5095
    %v5097 = vrot.slane %v4056, %v5096
    %v5098 = vsel %vm4656, %v5097, %v5093
    %v5099 = vlaneseq
    %v5100 = vshrl.u32 %v5099, 7
    %v5101 = vsub.s32 %v4658, %v5100
    %v5102 = vrot.slane %v4058, %v5101
    %v5103 = vsel %vm4663, %v5102, %v5098
    %v5104 = vlaneseq
    %v5105 = vshrl.u32 %v5104, 7
    %v5106 = vsub.s32 %v4665, %v5105
    %v5107 = vrot.slane %v4060, %v5106
    %v5108 = vsel %vm4670, %v5107, %v5103
    %v5109 = vlaneseq
    %v5110 = vshrl.u32 %v5109, 7
    %v5111 = vsub.s32 %v4646, %v5110
    %v5112 = vrot.slane %v4062, %v5111
    %v5113 = vlaneseq
    %v5114 = vshrl.u32 %v5113, 7
    %v5115 = vsub.s32 %v4651, %v5114
    %v5116 = vrot.slane %v4064, %v5115
    %v5117 = vsel %vm4656, %v5116, %v5112
    %v5118 = vlaneseq
    %v5119 = vshrl.u32 %v5118, 7
    %v5120 = vsub.s32 %v4658, %v5119
    %v5121 = vrot.slane %v4066, %v5120
    %v5122 = vsel %vm4663, %v5121, %v5117
    %v5123 = vlaneseq
    %v5124 = vshrl.u32 %v5123, 7
    %v5125 = vsub.s32 %v4665, %v5124
    %v5126 = vrot.slane %v4068, %v5125
    %v5127 = vsel %vm4670, %v5126, %v5122
    %v5128 = vlaneseq
    %v5129 = vshrl.u32 %v5128, 7
    %v5130 = vsub.s32 %v4646, %v5129
    %v5131 = vrot.slane %v4070, %v5130
    %v5132 = vlaneseq
    %v5133 = vshrl.u32 %v5132, 7
    %v5134 = vsub.s32 %v4651, %v5133
    %v5135 = vrot.slane %v4072, %v5134
    %v5136 = vsel %vm4656, %v5135, %v5131
    %v5137 = vlaneseq
    %v5138 = vshrl.u32 %v5137, 7
    %v5139 = vsub.s32 %v4658, %v5138
    %v5140 = vrot.slane %v4074, %v5139
    %v5141 = vsel %vm4663, %v5140, %v5136
    %v5142 = vlaneseq
    %v5143 = vshrl.u32 %v5142, 7
    %v5144 = vsub.s32 %v4665, %v5143
    %v5145 = vrot.slane %v4076, %v5144
    %v5146 = vsel %vm4670, %v5145, %v5141
    %v5147 = vlaneseq
    %v5148 = vshrl.u32 %v5147, 7
    %v5149 = vsub.s32 %v4646, %v5148
    %v5150 = vrot.slane %v4078, %v5149
    %v5151 = vlaneseq
    %v5152 = vshrl.u32 %v5151, 7
    %v5153 = vsub.s32 %v4651, %v5152
    %v5154 = vrot.slane %v4080, %v5153
    %v5155 = vsel %vm4656, %v5154, %v5150
    %v5156 = vlaneseq
    %v5157 = vshrl.u32 %v5156, 7
    %v5158 = vsub.s32 %v4658, %v5157
    %v5159 = vrot.slane %v4082, %v5158
    %v5160 = vsel %vm4663, %v5159, %v5155
    %v5161 = vlaneseq
    %v5162 = vshrl.u32 %v5161, 7
    %v5163 = vsub.s32 %v4665, %v5162
    %v5164 = vrot.slane %v4084, %v5163
    %v5165 = vsel %vm4670, %v5164, %v5160
    %v5166 = vlaneseq
    %v5167 = vshrl.u32 %v5166, 7
    %v5168 = vsub.s32 %v4646, %v5167
    %v5169 = vrot.slane %v4086, %v5168
    %v5170 = vlaneseq
    %v5171 = vshrl.u32 %v5170, 7
    %v5172 = vsub.s32 %v4651, %v5171
    %v5173 = vrot.slane %v4088, %v5172
    %v5174 = vsel %vm4656, %v5173, %v5169
    %v5175 = vlaneseq
    %v5176 = vshrl.u32 %v5175, 7
    %v5177 = vsub.s32 %v4658, %v5176
    %v5178 = vrot.slane %v4090, %v5177
    %v5179 = vsel %vm4663, %v5178, %v5174
    %v5180 = vlaneseq
    %v5181 = vshrl.u32 %v5180, 7
    %v5182 = vsub.s32 %v4665, %v5181
    %v5183 = vrot.slane %v4092, %v5182
    %v5184 = vsel %vm4670, %v5183, %v5179
    %v5185 = vlaneseq
    %v5186 = vshrl.u32 %v5185, 7
    %v5187 = vsub.s32 %v4646, %v5186
    %v5188 = vrot.slane %v4094, %v5187
    %v5189 = vlaneseq
    %v5190 = vshrl.u32 %v5189, 7
    %v5191 = vsub.s32 %v4651, %v5190
    %v5192 = vrot.slane %v4096, %v5191
    %v5193 = vsel %vm4656, %v5192, %v5188
    %v5194 = vlaneseq
    %v5195 = vshrl.u32 %v5194, 7
    %v5196 = vsub.s32 %v4658, %v5195
    %v5197 = vrot.slane %v4098, %v5196
    %v5198 = vsel %vm4663, %v5197, %v5193
    %v5199 = vlaneseq
    %v5200 = vshrl.u32 %v5199, 7
    %v5201 = vsub.s32 %v4665, %v5200
    %v5202 = vrot.slane %v4100, %v5201
    %v5203 = vsel %vm4670, %v5202, %v5198
    %v5204 = vlaneseq
    %v5205 = vshrl.u32 %v5204, 7
    %v5206 = vsub.s32 %v4646, %v5205
    %v5207 = vrot.slane %v4102, %v5206
    %v5208 = vlaneseq
    %v5209 = vshrl.u32 %v5208, 7
    %v5210 = vsub.s32 %v4651, %v5209
    %v5211 = vrot.slane %v4104, %v5210
    %v5212 = vsel %vm4656, %v5211, %v5207
    %v5213 = vlaneseq
    %v5214 = vshrl.u32 %v5213, 7
    %v5215 = vsub.s32 %v4658, %v5214
    %v5216 = vrot.slane %v4106, %v5215
    %v5217 = vsel %vm4663, %v5216, %v5212
    %v5218 = vlaneseq
    %v5219 = vshrl.u32 %v5218, 7
    %v5220 = vsub.s32 %v4665, %v5219
    %v5221 = vrot.slane %v4108, %v5220
    %v5222 = vsel %vm4670, %v5221, %v5217
    %v5223 = vlaneseq
    %v5224 = vshrl.u32 %v5223, 7
    %v5225 = vsub.s32 %v4646, %v5224
    %v5226 = vrot.slane %v4110, %v5225
    %v5227 = vlaneseq
    %v5228 = vshrl.u32 %v5227, 7
    %v5229 = vsub.s32 %v4651, %v5228
    %v5230 = vrot.slane %v4112, %v5229
    %v5231 = vsel %vm4656, %v5230, %v5226
    %v5232 = vlaneseq
    %v5233 = vshrl.u32 %v5232, 7
    %v5234 = vsub.s32 %v4658, %v5233
    %v5235 = vrot.slane %v4114, %v5234
    %v5236 = vsel %vm4663, %v5235, %v5231
    %v5237 = vlaneseq
    %v5238 = vshrl.u32 %v5237, 7
    %v5239 = vsub.s32 %v4665, %v5238
    %v5240 = vrot.slane %v4116, %v5239
    %v5241 = vsel %vm4670, %v5240, %v5236
    %v5242 = vlaneseq
    %v5243 = vshrl.u32 %v5242, 7
    %v5244 = vsub.s32 %v4646, %v5243
    %v5245 = vrot.slane %v4118, %v5244
    %v5246 = vlaneseq
    %v5247 = vshrl.u32 %v5246, 7
    %v5248 = vsub.s32 %v4651, %v5247
    %v5249 = vrot.slane %v4120, %v5248
    %v5250 = vsel %vm4656, %v5249, %v5245
    %v5251 = vlaneseq
    %v5252 = vshrl.u32 %v5251, 7
    %v5253 = vsub.s32 %v4658, %v5252
    %v5254 = vrot.slane %v4122, %v5253
    %v5255 = vsel %vm4663, %v5254, %v5250
    %v5256 = vlaneseq
    %v5257 = vshrl.u32 %v5256, 7
    %v5258 = vsub.s32 %v4665, %v5257
    %v5259 = vrot.slane %v4124, %v5258
    %v5260 = vsel %vm4670, %v5259, %v5255
    %v5261 = vlaneseq
    %v5262 = vshrl.u32 %v5261, 7
    %v5263 = vsub.s32 %v4646, %v5262
    %v5264 = vrot.slane %v4126, %v5263
    %v5265 = vlaneseq
    %v5266 = vshrl.u32 %v5265, 7
    %v5267 = vsub.s32 %v4651, %v5266
    %v5268 = vrot.slane %v4128, %v5267
    %v5269 = vsel %vm4656, %v5268, %v5264
    %v5270 = vlaneseq
    %v5271 = vshrl.u32 %v5270, 7
    %v5272 = vsub.s32 %v4658, %v5271
    %v5273 = vrot.slane %v4130, %v5272
    %v5274 = vsel %vm4663, %v5273, %v5269
    %v5275 = vlaneseq
    %v5276 = vshrl.u32 %v5275, 7
    %v5277 = vsub.s32 %v4665, %v5276
    %v5278 = vrot.slane %v4132, %v5277
    %v5279 = vsel %vm4670, %v5278, %v5274
    %v5280 = vlaneseq
    %v5281 = vshrl.u32 %v5280, 7
    %v5282 = vsub.s32 %v4646, %v5281
    %v5283 = vrot.slane %v4134, %v5282
    %v5284 = vlaneseq
    %v5285 = vshrl.u32 %v5284, 7
    %v5286 = vsub.s32 %v4651, %v5285
    %v5287 = vrot.slane %v4136, %v5286
    %v5288 = vsel %vm4656, %v5287, %v5283
    %v5289 = vlaneseq
    %v5290 = vshrl.u32 %v5289, 7
    %v5291 = vsub.s32 %v4658, %v5290
    %v5292 = vrot.slane %v4138, %v5291
    %v5293 = vsel %vm4663, %v5292, %v5288
    %v5294 = vlaneseq
    %v5295 = vshrl.u32 %v5294, 7
    %v5296 = vsub.s32 %v4665, %v5295
    %v5297 = vrot.slane %v4140, %v5296
    %v5298 = vsel %vm4670, %v5297, %v5293
    %v5299 = vlaneseq
    %v5300 = vshrl.u32 %v5299, 7
    %v5301 = vsub.s32 %v4646, %v5300
    %v5302 = vrot.slane %v4142, %v5301
    %v5303 = vlaneseq
    %v5304 = vshrl.u32 %v5303, 7
    %v5305 = vsub.s32 %v4651, %v5304
    %v5306 = vrot.slane %v4144, %v5305
    %v5307 = vsel %vm4656, %v5306, %v5302
    %v5308 = vlaneseq
    %v5309 = vshrl.u32 %v5308, 7
    %v5310 = vsub.s32 %v4658, %v5309
    %v5311 = vrot.slane %v4146, %v5310
    %v5312 = vsel %vm4663, %v5311, %v5307
    %v5313 = vlaneseq
    %v5314 = vshrl.u32 %v5313, 7
    %v5315 = vsub.s32 %v4665, %v5314
    %v5316 = vrot.slane %v4148, %v5315
    %v5317 = vsel %vm4670, %v5316, %v5312
    %v5318 = vlaneseq
    %v5319 = vshrl.u32 %v5318, 7
    %v5320 = vsub.s32 %v4646, %v5319
    %v5321 = vrot.slane %v4150, %v5320
    %v5322 = vlaneseq
    %v5323 = vshrl.u32 %v5322, 7
    %v5324 = vsub.s32 %v4651, %v5323
    %v5325 = vrot.slane %v4152, %v5324
    %v5326 = vsel %vm4656, %v5325, %v5321
    %v5327 = vlaneseq
    %v5328 = vshrl.u32 %v5327, 7
    %v5329 = vsub.s32 %v4658, %v5328
    %v5330 = vrot.slane %v4154, %v5329
    %v5331 = vsel %vm4663, %v5330, %v5326
    %v5332 = vlaneseq
    %v5333 = vshrl.u32 %v5332, 7
    %v5334 = vsub.s32 %v4665, %v5333
    %v5335 = vrot.slane %v4156, %v5334
    %v5336 = vsel %vm4670, %v5335, %v5331
    %v5337 = vlaneseq
    %v5338 = vshrl.u32 %v5337, 7
    %v5339 = vsub.s32 %v4646, %v5338
    %v5340 = vrot.slane %v4158, %v5339
    %v5341 = vlaneseq
    %v5342 = vshrl.u32 %v5341, 7
    %v5343 = vsub.s32 %v4651, %v5342
    %v5344 = vrot.slane %v4160, %v5343
    %v5345 = vsel %vm4656, %v5344, %v5340
    %v5346 = vlaneseq
    %v5347 = vshrl.u32 %v5346, 7
    %v5348 = vsub.s32 %v4658, %v5347
    %v5349 = vrot.slane %v4162, %v5348
    %v5350 = vsel %vm4663, %v5349, %v5345
    %v5351 = vlaneseq
    %v5352 = vshrl.u32 %v5351, 7
    %v5353 = vsub.s32 %v4665, %v5352
    %v5354 = vrot.slane %v4164, %v5353
    %v5355 = vsel %vm4670, %v5354, %v5350
    %v5356 = vlaneseq
    %v5357 = vshrl.u32 %v5356, 7
    %v5358 = vsub.s32 %v4646, %v5357
    %v5359 = vrot.slane %v4166, %v5358
    %v5360 = vlaneseq
    %v5361 = vshrl.u32 %v5360, 7
    %v5362 = vsub.s32 %v4651, %v5361
    %v5363 = vrot.slane %v4168, %v5362
    %v5364 = vsel %vm4656, %v5363, %v5359
    %v5365 = vlaneseq
    %v5366 = vshrl.u32 %v5365, 7
    %v5367 = vsub.s32 %v4658, %v5366
    %v5368 = vrot.slane %v4170, %v5367
    %v5369 = vsel %vm4663, %v5368, %v5364
    %v5370 = vlaneseq
    %v5371 = vshrl.u32 %v5370, 7
    %v5372 = vsub.s32 %v4665, %v5371
    %v5373 = vrot.slane %v4172, %v5372
    %v5374 = vsel %vm4670, %v5373, %v5369
    %v5375 = vlaneseq
    %v5376 = vshrl.u32 %v5375, 7
    %v5377 = vsub.s32 %v4646, %v5376
    %v5378 = vrot.slane %v4174, %v5377
    %v5379 = vlaneseq
    %v5380 = vshrl.u32 %v5379, 7
    %v5381 = vsub.s32 %v4651, %v5380
    %v5382 = vrot.slane %v4176, %v5381
    %v5383 = vsel %vm4656, %v5382, %v5378
    %v5384 = vlaneseq
    %v5385 = vshrl.u32 %v5384, 7
    %v5386 = vsub.s32 %v4658, %v5385
    %v5387 = vrot.slane %v4178, %v5386
    %v5388 = vsel %vm4663, %v5387, %v5383
    %v5389 = vlaneseq
    %v5390 = vshrl.u32 %v5389, 7
    %v5391 = vsub.s32 %v4665, %v5390
    %v5392 = vrot.slane %v4180, %v5391
    %v5393 = vsel %vm4670, %v5392, %v5388
    %v5394 = vlaneseq
    %v5395 = vshrl.u32 %v5394, 7
    %v5396 = vsub.s32 %v4646, %v5395
    %v5397 = vrot.slane %v4182, %v5396
    %v5398 = vlaneseq
    %v5399 = vshrl.u32 %v5398, 7
    %v5400 = vsub.s32 %v4651, %v5399
    %v5401 = vrot.slane %v4184, %v5400
    %v5402 = vsel %vm4656, %v5401, %v5397
    %v5403 = vlaneseq
    %v5404 = vshrl.u32 %v5403, 7
    %v5405 = vsub.s32 %v4658, %v5404
    %v5406 = vrot.slane %v4186, %v5405
    %v5407 = vsel %vm4663, %v5406, %v5402
    %v5408 = vlaneseq
    %v5409 = vshrl.u32 %v5408, 7
    %v5410 = vsub.s32 %v4665, %v5409
    %v5411 = vrot.slane %v4188, %v5410
    %v5412 = vsel %vm4670, %v5411, %v5407
    %v5413 = vlaneseq
    %v5414 = vshrl.u32 %v5413, 7
    %v5415 = vsub.s32 %v4646, %v5414
    %v5416 = vrot.slane %v4190, %v5415
    %v5417 = vlaneseq
    %v5418 = vshrl.u32 %v5417, 7
    %v5419 = vsub.s32 %v4651, %v5418
    %v5420 = vrot.slane %v4192, %v5419
    %v5421 = vsel %vm4656, %v5420, %v5416
    %v5422 = vlaneseq
    %v5423 = vshrl.u32 %v5422, 7
    %v5424 = vsub.s32 %v4658, %v5423
    %v5425 = vrot.slane %v4194, %v5424
    %v5426 = vsel %vm4663, %v5425, %v5421
    %v5427 = vlaneseq
    %v5428 = vshrl.u32 %v5427, 7
    %v5429 = vsub.s32 %v4665, %v5428
    %v5430 = vrot.slane %v4196, %v5429
    %v5431 = vsel %vm4670, %v5430, %v5426
    %v5432 = vlaneseq
    %v5433 = vshrl.u32 %v5432, 7
    %v5434 = vsub.s32 %v4646, %v5433
    %v5435 = vrot.slane %v4198, %v5434
    %v5436 = vlaneseq
    %v5437 = vshrl.u32 %v5436, 7
    %v5438 = vsub.s32 %v4651, %v5437
    %v5439 = vrot.slane %v4200, %v5438
    %v5440 = vsel %vm4656, %v5439, %v5435
    %v5441 = vlaneseq
    %v5442 = vshrl.u32 %v5441, 7
    %v5443 = vsub.s32 %v4658, %v5442
    %v5444 = vrot.slane %v4202, %v5443
    %v5445 = vsel %vm4663, %v5444, %v5440
    %v5446 = vlaneseq
    %v5447 = vshrl.u32 %v5446, 7
    %v5448 = vsub.s32 %v4665, %v5447
    %v5449 = vrot.slane %v4204, %v5448
    %v5450 = vsel %vm4670, %v5449, %v5445
    %v5451 = vlaneseq
    %v5452 = vshrl.u32 %v5451, 7
    %v5453 = vsub.s32 %v4646, %v5452
    %v5454 = vrot.slane %v4206, %v5453
    %v5455 = vlaneseq
    %v5456 = vshrl.u32 %v5455, 7
    %v5457 = vsub.s32 %v4651, %v5456
    %v5458 = vrot.slane %v4208, %v5457
    %v5459 = vsel %vm4656, %v5458, %v5454
    %v5460 = vlaneseq
    %v5461 = vshrl.u32 %v5460, 7
    %v5462 = vsub.s32 %v4658, %v5461
    %v5463 = vrot.slane %v4210, %v5462
    %v5464 = vsel %vm4663, %v5463, %v5459
    %v5465 = vlaneseq
    %v5466 = vshrl.u32 %v5465, 7
    %v5467 = vsub.s32 %v4665, %v5466
    %v5468 = vrot.slane %v4212, %v5467
    %v5469 = vsel %vm4670, %v5468, %v5464
    %v5470 = vlaneseq
    %v5471 = vshrl.u32 %v5470, 7
    %v5472 = vsub.s32 %v4646, %v5471
    %v5473 = vrot.slane %v4214, %v5472
    %v5474 = vlaneseq
    %v5475 = vshrl.u32 %v5474, 7
    %v5476 = vsub.s32 %v4651, %v5475
    %v5477 = vrot.slane %v4216, %v5476
    %v5478 = vsel %vm4656, %v5477, %v5473
    %v5479 = vlaneseq
    %v5480 = vshrl.u32 %v5479, 7
    %v5481 = vsub.s32 %v4658, %v5480
    %v5482 = vrot.slane %v4218, %v5481
    %v5483 = vsel %vm4663, %v5482, %v5478
    %v5484 = vlaneseq
    %v5485 = vshrl.u32 %v5484, 7
    %v5486 = vsub.s32 %v4665, %v5485
    %v5487 = vrot.slane %v4220, %v5486
    %v5488 = vsel %vm4670, %v5487, %v5483
    %v5489 = vlaneseq
    %v5490 = vshrl.u32 %v5489, 7
    %v5491 = vsub.s32 %v4646, %v5490
    %v5492 = vrot.slane %v4222, %v5491
    %v5493 = vlaneseq
    %v5494 = vshrl.u32 %v5493, 7
    %v5495 = vsub.s32 %v4651, %v5494
    %v5496 = vrot.slane %v4224, %v5495
    %v5497 = vsel %vm4656, %v5496, %v5492
    %v5498 = vlaneseq
    %v5499 = vshrl.u32 %v5498, 7
    %v5500 = vsub.s32 %v4658, %v5499
    %v5501 = vrot.slane %v4226, %v5500
    %v5502 = vsel %vm4663, %v5501, %v5497
    %v5503 = vlaneseq
    %v5504 = vshrl.u32 %v5503, 7
    %v5505 = vsub.s32 %v4665, %v5504
    %v5506 = vrot.slane %v4228, %v5505
    %v5507 = vsel %vm4670, %v5506, %v5502
    %v5508 = vlaneseq
    %v5509 = vshrl.u32 %v5508, 7
    %v5510 = vsub.s32 %v4646, %v5509
    %v5511 = vrot.slane %v4230, %v5510
    %v5512 = vlaneseq
    %v5513 = vshrl.u32 %v5512, 7
    %v5514 = vsub.s32 %v4651, %v5513
    %v5515 = vrot.slane %v4232, %v5514
    %v5516 = vsel %vm4656, %v5515, %v5511
    %v5517 = vlaneseq
    %v5518 = vshrl.u32 %v5517, 7
    %v5519 = vsub.s32 %v4658, %v5518
    %v5520 = vrot.slane %v4234, %v5519
    %v5521 = vsel %vm4663, %v5520, %v5516
    %v5522 = vlaneseq
    %v5523 = vshrl.u32 %v5522, 7
    %v5524 = vsub.s32 %v4665, %v5523
    %v5525 = vrot.slane %v4236, %v5524
    %v5526 = vsel %vm4670, %v5525, %v5521
    %v5527 = vlaneseq
    %v5528 = vshrl.u32 %v5527, 7
    %v5529 = vsub.s32 %v4646, %v5528
    %v5530 = vrot.slane %v4238, %v5529
    %v5531 = vlaneseq
    %v5532 = vshrl.u32 %v5531, 7
    %v5533 = vsub.s32 %v4651, %v5532
    %v5534 = vrot.slane %v4240, %v5533
    %v5535 = vsel %vm4656, %v5534, %v5530
    %v5536 = vlaneseq
    %v5537 = vshrl.u32 %v5536, 7
    %v5538 = vsub.s32 %v4658, %v5537
    %v5539 = vrot.slane %v4242, %v5538
    %v5540 = vsel %vm4663, %v5539, %v5535
    %v5541 = vlaneseq
    %v5542 = vshrl.u32 %v5541, 7
    %v5543 = vsub.s32 %v4665, %v5542
    %v5544 = vrot.slane %v4244, %v5543
    %v5545 = vsel %vm4670, %v5544, %v5540
    %v5546 = vlaneseq
    %v5547 = vshrl.u32 %v5546, 7
    %v5548 = vsub.s32 %v4646, %v5547
    %v5549 = vrot.slane %v4246, %v5548
    %v5550 = vlaneseq
    %v5551 = vshrl.u32 %v5550, 7
    %v5552 = vsub.s32 %v4651, %v5551
    %v5553 = vrot.slane %v4248, %v5552
    %v5554 = vsel %vm4656, %v5553, %v5549
    %v5555 = vlaneseq
    %v5556 = vshrl.u32 %v5555, 7
    %v5557 = vsub.s32 %v4658, %v5556
    %v5558 = vrot.slane %v4250, %v5557
    %v5559 = vsel %vm4663, %v5558, %v5554
    %v5560 = vlaneseq
    %v5561 = vshrl.u32 %v5560, 7
    %v5562 = vsub.s32 %v4665, %v5561
    %v5563 = vrot.slane %v4252, %v5562
    %v5564 = vsel %vm4670, %v5563, %v5559
    %v5565 = vlaneseq
    %v5566 = vshrl.u32 %v5565, 7
    %v5567 = vsub.s32 %v4646, %v5566
    %v5568 = vrot.slane %v4254, %v5567
    %v5569 = vlaneseq
    %v5570 = vshrl.u32 %v5569, 7
    %v5571 = vsub.s32 %v4651, %v5570
    %v5572 = vrot.slane %v4256, %v5571
    %v5573 = vsel %vm4656, %v5572, %v5568
    %v5574 = vlaneseq
    %v5575 = vshrl.u32 %v5574, 7
    %v5576 = vsub.s32 %v4658, %v5575
    %v5577 = vrot.slane %v4258, %v5576
    %v5578 = vsel %vm4663, %v5577, %v5573
    %v5579 = vlaneseq
    %v5580 = vshrl.u32 %v5579, 7
    %v5581 = vsub.s32 %v4665, %v5580
    %v5582 = vrot.slane %v4260, %v5581
    %v5583 = vsel %vm4670, %v5582, %v5578
    %v5584 = vlaneseq
    %v5585 = vshrl.u32 %v5584, 7
    %v5586 = vsub.s32 %v4646, %v5585
    %v5587 = vrot.slane %v4262, %v5586
    %v5588 = vlaneseq
    %v5589 = vshrl.u32 %v5588, 7
    %v5590 = vsub.s32 %v4651, %v5589
    %v5591 = vrot.slane %v4264, %v5590
    %v5592 = vsel %vm4656, %v5591, %v5587
    %v5593 = vlaneseq
    %v5594 = vshrl.u32 %v5593, 7
    %v5595 = vsub.s32 %v4658, %v5594
    %v5596 = vrot.slane %v4266, %v5595
    %v5597 = vsel %vm4663, %v5596, %v5592
    %v5598 = vlaneseq
    %v5599 = vshrl.u32 %v5598, 7
    %v5600 = vsub.s32 %v4665, %v5599
    %v5601 = vrot.slane %v4268, %v5600
    %v5602 = vsel %vm4670, %v5601, %v5597
    %v5603 = vlaneseq
    %v5604 = vshrl.u32 %v5603, 7
    %v5605 = vsub.s32 %v4646, %v5604
    %v5606 = vrot.slane %v4270, %v5605
    %v5607 = vlaneseq
    %v5608 = vshrl.u32 %v5607, 7
    %v5609 = vsub.s32 %v4651, %v5608
    %v5610 = vrot.slane %v4272, %v5609
    %v5611 = vsel %vm4656, %v5610, %v5606
    %v5612 = vlaneseq
    %v5613 = vshrl.u32 %v5612, 7
    %v5614 = vsub.s32 %v4658, %v5613
    %v5615 = vrot.slane %v4274, %v5614
    %v5616 = vsel %vm4663, %v5615, %v5611
    %v5617 = vlaneseq
    %v5618 = vshrl.u32 %v5617, 7
    %v5619 = vsub.s32 %v4665, %v5618
    %v5620 = vrot.slane %v4276, %v5619
    %v5621 = vsel %vm4670, %v5620, %v5616
    %v5622 = vlaneseq
    %v5623 = vshrl.u32 %v5622, 7
    %v5624 = vsub.s32 %v4646, %v5623
    %v5625 = vrot.slane %v4278, %v5624
    %v5626 = vlaneseq
    %v5627 = vshrl.u32 %v5626, 7
    %v5628 = vsub.s32 %v4651, %v5627
    %v5629 = vrot.slane %v4280, %v5628
    %v5630 = vsel %vm4656, %v5629, %v5625
    %v5631 = vlaneseq
    %v5632 = vshrl.u32 %v5631, 7
    %v5633 = vsub.s32 %v4658, %v5632
    %v5634 = vrot.slane %v4282, %v5633
    %v5635 = vsel %vm4663, %v5634, %v5630
    %v5636 = vlaneseq
    %v5637 = vshrl.u32 %v5636, 7
    %v5638 = vsub.s32 %v4665, %v5637
    %v5639 = vrot.slane %v4284, %v5638
    %v5640 = vsel %vm4670, %v5639, %v5635
    %v5641 = vlaneseq
    %v5642 = vshrl.u32 %v5641, 7
    %v5643 = vsub.s32 %v4646, %v5642
    %v5644 = vrot.slane %v4286, %v5643
    %v5645 = vlaneseq
    %v5646 = vshrl.u32 %v5645, 7
    %v5647 = vsub.s32 %v4651, %v5646
    %v5648 = vrot.slane %v4288, %v5647
    %v5649 = vsel %vm4656, %v5648, %v5644
    %v5650 = vlaneseq
    %v5651 = vshrl.u32 %v5650, 7
    %v5652 = vsub.s32 %v4658, %v5651
    %v5653 = vrot.slane %v4290, %v5652
    %v5654 = vsel %vm4663, %v5653, %v5649
    %v5655 = vlaneseq
    %v5656 = vshrl.u32 %v5655, 7
    %v5657 = vsub.s32 %v4665, %v5656
    %v5658 = vrot.slane %v4292, %v5657
    %v5659 = vsel %vm4670, %v5658, %v5654
    %v5660 = vlaneseq
    %v5661 = vshrl.u32 %v5660, 7
    %v5662 = vsub.s32 %v4646, %v5661
    %v5663 = vrot.slane %v4294, %v5662
    %v5664 = vlaneseq
    %v5665 = vshrl.u32 %v5664, 7
    %v5666 = vsub.s32 %v4651, %v5665
    %v5667 = vrot.slane %v4296, %v5666
    %v5668 = vsel %vm4656, %v5667, %v5663
    %v5669 = vlaneseq
    %v5670 = vshrl.u32 %v5669, 7
    %v5671 = vsub.s32 %v4658, %v5670
    %v5672 = vrot.slane %v4298, %v5671
    %v5673 = vsel %vm4663, %v5672, %v5668
    %v5674 = vlaneseq
    %v5675 = vshrl.u32 %v5674, 7
    %v5676 = vsub.s32 %v4665, %v5675
    %v5677 = vrot.slane %v4300, %v5676
    %v5678 = vsel %vm4670, %v5677, %v5673
    %v5679 = vlaneseq
    %v5680 = vshrl.u32 %v5679, 7
    %v5681 = vsub.s32 %v4646, %v5680
    %v5682 = vrot.slane %v4302, %v5681
    %v5683 = vlaneseq
    %v5684 = vshrl.u32 %v5683, 7
    %v5685 = vsub.s32 %v4651, %v5684
    %v5686 = vrot.slane %v4304, %v5685
    %v5687 = vsel %vm4656, %v5686, %v5682
    %v5688 = vlaneseq
    %v5689 = vshrl.u32 %v5688, 7
    %v5690 = vsub.s32 %v4658, %v5689
    %v5691 = vrot.slane %v4306, %v5690
    %v5692 = vsel %vm4663, %v5691, %v5687
    %v5693 = vlaneseq
    %v5694 = vshrl.u32 %v5693, 7
    %v5695 = vsub.s32 %v4665, %v5694
    %v5696 = vrot.slane %v4308, %v5695
    %v5697 = vsel %vm4670, %v5696, %v5692
    %v5698 = vlaneseq
    %v5699 = vshrl.u32 %v5698, 7
    %v5700 = vsub.s32 %v4646, %v5699
    %v5701 = vrot.slane %v4310, %v5700
    %v5702 = vlaneseq
    %v5703 = vshrl.u32 %v5702, 7
    %v5704 = vsub.s32 %v4651, %v5703
    %v5705 = vrot.slane %v4312, %v5704
    %v5706 = vsel %vm4656, %v5705, %v5701
    %v5707 = vlaneseq
    %v5708 = vshrl.u32 %v5707, 7
    %v5709 = vsub.s32 %v4658, %v5708
    %v5710 = vrot.slane %v4314, %v5709
    %v5711 = vsel %vm4663, %v5710, %v5706
    %v5712 = vlaneseq
    %v5713 = vshrl.u32 %v5712, 7
    %v5714 = vsub.s32 %v4665, %v5713
    %v5715 = vrot.slane %v4316, %v5714
    %v5716 = vsel %vm4670, %v5715, %v5711
    %v5717 = vlaneseq
    %v5718 = vshrl.u32 %v5717, 7
    %v5719 = vsub.s32 %v4646, %v5718
    %v5720 = vrot.slane %v4318, %v5719
    %v5721 = vlaneseq
    %v5722 = vshrl.u32 %v5721, 7
    %v5723 = vsub.s32 %v4651, %v5722
    %v5724 = vrot.slane %v4320, %v5723
    %v5725 = vsel %vm4656, %v5724, %v5720
    %v5726 = vlaneseq
    %v5727 = vshrl.u32 %v5726, 7
    %v5728 = vsub.s32 %v4658, %v5727
    %v5729 = vrot.slane %v4322, %v5728
    %v5730 = vsel %vm4663, %v5729, %v5725
    %v5731 = vlaneseq
    %v5732 = vshrl.u32 %v5731, 7
    %v5733 = vsub.s32 %v4665, %v5732
    %v5734 = vrot.slane %v4324, %v5733
    %v5735 = vsel %vm4670, %v5734, %v5730
    %v5736 = vlaneseq
    %v5737 = vshrl.u32 %v5736, 7
    %v5738 = vsub.s32 %v4646, %v5737
    %v5739 = vrot.slane %v4326, %v5738
    %v5740 = vlaneseq
    %v5741 = vshrl.u32 %v5740, 7
    %v5742 = vsub.s32 %v4651, %v5741
    %v5743 = vrot.slane %v4328, %v5742
    %v5744 = vsel %vm4656, %v5743, %v5739
    %v5745 = vlaneseq
    %v5746 = vshrl.u32 %v5745, 7
    %v5747 = vsub.s32 %v4658, %v5746
    %v5748 = vrot.slane %v4330, %v5747
    %v5749 = vsel %vm4663, %v5748, %v5744
    %v5750 = vlaneseq
    %v5751 = vshrl.u32 %v5750, 7
    %v5752 = vsub.s32 %v4665, %v5751
    %v5753 = vrot.slane %v4332, %v5752
    %v5754 = vsel %vm4670, %v5753, %v5749
    %v5755 = vlaneseq
    %v5756 = vshrl.u32 %v5755, 7
    %v5757 = vsub.s32 %v4646, %v5756
    %v5758 = vrot.slane %v4334, %v5757
    %v5759 = vlaneseq
    %v5760 = vshrl.u32 %v5759, 7
    %v5761 = vsub.s32 %v4651, %v5760
    %v5762 = vrot.slane %v4336, %v5761
    %v5763 = vsel %vm4656, %v5762, %v5758
    %v5764 = vlaneseq
    %v5765 = vshrl.u32 %v5764, 7
    %v5766 = vsub.s32 %v4658, %v5765
    %v5767 = vrot.slane %v4338, %v5766
    %v5768 = vsel %vm4663, %v5767, %v5763
    %v5769 = vlaneseq
    %v5770 = vshrl.u32 %v5769, 7
    %v5771 = vsub.s32 %v4665, %v5770
    %v5772 = vrot.slane %v4340, %v5771
    %v5773 = vsel %vm4670, %v5772, %v5768
    %v5774 = vlaneseq
    %v5775 = vshrl.u32 %v5774, 7
    %v5776 = vsub.s32 %v4646, %v5775
    %v5777 = vrot.slane %v4342, %v5776
    %v5778 = vlaneseq
    %v5779 = vshrl.u32 %v5778, 7
    %v5780 = vsub.s32 %v4651, %v5779
    %v5781 = vrot.slane %v4344, %v5780
    %v5782 = vsel %vm4656, %v5781, %v5777
    %v5783 = vlaneseq
    %v5784 = vshrl.u32 %v5783, 7
    %v5785 = vsub.s32 %v4658, %v5784
    %v5786 = vrot.slane %v4346, %v5785
    %v5787 = vsel %vm4663, %v5786, %v5782
    %v5788 = vlaneseq
    %v5789 = vshrl.u32 %v5788, 7
    %v5790 = vsub.s32 %v4665, %v5789
    %v5791 = vrot.slane %v4348, %v5790
    %v5792 = vsel %vm4670, %v5791, %v5787
    %v5793 = vlaneseq
    %v5794 = vshrl.u32 %v5793, 7
    %v5795 = vsub.s32 %v4646, %v5794
    %v5796 = vrot.slane %v4350, %v5795
    %v5797 = vlaneseq
    %v5798 = vshrl.u32 %v5797, 7
    %v5799 = vsub.s32 %v4651, %v5798
    %v5800 = vrot.slane %v4352, %v5799
    %v5801 = vsel %vm4656, %v5800, %v5796
    %v5802 = vlaneseq
    %v5803 = vshrl.u32 %v5802, 7
    %v5804 = vsub.s32 %v4658, %v5803
    %v5805 = vrot.slane %v4354, %v5804
    %v5806 = vsel %vm4663, %v5805, %v5801
    %v5807 = vlaneseq
    %v5808 = vshrl.u32 %v5807, 7
    %v5809 = vsub.s32 %v4665, %v5808
    %v5810 = vrot.slane %v4356, %v5809
    %v5811 = vsel %vm4670, %v5810, %v5806
    %v5812 = vlaneseq
    %v5813 = vshrl.u32 %v5812, 7
    %v5814 = vsub.s32 %v4646, %v5813
    %v5815 = vrot.slane %v4358, %v5814
    %v5816 = vlaneseq
    %v5817 = vshrl.u32 %v5816, 7
    %v5818 = vsub.s32 %v4651, %v5817
    %v5819 = vrot.slane %v4360, %v5818
    %v5820 = vsel %vm4656, %v5819, %v5815
    %v5821 = vlaneseq
    %v5822 = vshrl.u32 %v5821, 7
    %v5823 = vsub.s32 %v4658, %v5822
    %v5824 = vrot.slane %v4362, %v5823
    %v5825 = vsel %vm4663, %v5824, %v5820
    %v5826 = vlaneseq
    %v5827 = vshrl.u32 %v5826, 7
    %v5828 = vsub.s32 %v4665, %v5827
    %v5829 = vrot.slane %v4364, %v5828
    %v5830 = vsel %vm4670, %v5829, %v5825
    %v5831 = vlaneseq
    %v5832 = vshrl.u32 %v5831, 7
    %v5833 = vsub.s32 %v4646, %v5832
    %v5834 = vrot.slane %v4366, %v5833
    %v5835 = vlaneseq
    %v5836 = vshrl.u32 %v5835, 7
    %v5837 = vsub.s32 %v4651, %v5836
    %v5838 = vrot.slane %v4368, %v5837
    %v5839 = vsel %vm4656, %v5838, %v5834
    %v5840 = vlaneseq
    %v5841 = vshrl.u32 %v5840, 7
    %v5842 = vsub.s32 %v4658, %v5841
    %v5843 = vrot.slane %v4370, %v5842
    %v5844 = vsel %vm4663, %v5843, %v5839
    %v5845 = vlaneseq
    %v5846 = vshrl.u32 %v5845, 7
    %v5847 = vsub.s32 %v4665, %v5846
    %v5848 = vrot.slane %v4372, %v5847
    %v5849 = vsel %vm4670, %v5848, %v5844
    %v5850 = vlaneseq
    %v5851 = vshrl.u32 %v5850, 7
    %v5852 = vsub.s32 %v4646, %v5851
    %v5853 = vrot.slane %v4374, %v5852
    %v5854 = vlaneseq
    %v5855 = vshrl.u32 %v5854, 7
    %v5856 = vsub.s32 %v4651, %v5855
    %v5857 = vrot.slane %v4376, %v5856
    %v5858 = vsel %vm4656, %v5857, %v5853
    %v5859 = vlaneseq
    %v5860 = vshrl.u32 %v5859, 7
    %v5861 = vsub.s32 %v4658, %v5860
    %v5862 = vrot.slane %v4378, %v5861
    %v5863 = vsel %vm4663, %v5862, %v5858
    %v5864 = vlaneseq
    %v5865 = vshrl.u32 %v5864, 7
    %v5866 = vsub.s32 %v4665, %v5865
    %v5867 = vrot.slane %v4380, %v5866
    %v5868 = vsel %vm4670, %v5867, %v5863
    %vm5869 = vcmask 1041409
    %v5870 = vsel %vm5869, %v4690, %v4671
    %vm5871 = vcmask 1042434
    %v5872 = vsel %vm5871, %v4709, %v5870
    %vm5873 = vcmask 1043459
    %v5874 = vsel %vm5873, %v4728, %v5872
    %vm5875 = vcmask 1044484
    %v5876 = vsel %vm5875, %v4747, %v5874
    %vm5877 = vcmask 1045509
    %v5878 = vsel %vm5877, %v4766, %v5876
    %vm5879 = vcmask 1046534
    %v5880 = vsel %vm5879, %v4785, %v5878
    %vm5881 = vcmask 1047559
    %v5882 = vsel %vm5881, %v4804, %v5880
    %v5883 = vsel %vm5869, %v4842, %v4823
    %v5884 = vsel %vm5871, %v4861, %v5883
    %v5885 = vsel %vm5873, %v4880, %v5884
    %v5886 = vsel %vm5875, %v4899, %v5885
    %v5887 = vsel %vm5877, %v4918, %v5886
    %v5888 = vsel %vm5879, %v4937, %v5887
    %v5889 = vsel %vm5881, %v4956, %v5888
    %v5890 = vsel %vm5869, %v4994, %v4975
    %v5891 = vsel %vm5871, %v5013, %v5890
    %v5892 = vsel %vm5873, %v5032, %v5891
    %v5893 = vsel %vm5875, %v5051, %v5892
    %v5894 = vsel %vm5877, %v5070, %v5893
    %v5895 = vsel %vm5879, %v5089, %v5894
    %v5896 = vsel %vm5881, %v5108, %v5895
    %v5897 = vsel %vm5869, %v5146, %v5127
    %v5898 = vsel %vm5871, %v5165, %v5897
    %v5899 = vsel %vm5873, %v5184, %v5898
    %v5900 = vsel %vm5875, %v5203, %v5899
    %v5901 = vsel %vm5877, %v5222, %v5900
    %v5902 = vsel %vm5879, %v5241, %v5901
    %v5903 = vsel %vm5881, %v5260, %v5902
    %v5904 = vsel %vm5869, %v5298, %v5279
    %v5905 = vsel %vm5871, %v5317, %v5904
    %v5906 = vsel %vm5873, %v5336, %v5905
    %v5907 = vsel %vm5875, %v5355, %v5906
    %v5908 = vsel %vm5877, %v5374, %v5907
    %v5909 = vsel %vm5879, %v5393, %v5908
    %v5910 = vsel %vm5881, %v5412, %v5909
    %v5911 = vsel %vm5869, %v5450, %v5431
    %v5912 = vsel %vm5871, %v5469, %v5911
    %v5913 = vsel %vm5873, %v5488, %v5912
    %v5914 = vsel %vm5875, %v5507, %v5913
    %v5915 = vsel %vm5877, %v5526, %v5914
    %v5916 = vsel %vm5879, %v5545, %v5915
    %v5917 = vsel %vm5881, %v5564, %v5916
    %v5918 = vsel %vm5869, %v5602, %v5583
    %v5919 = vsel %vm5871, %v5621, %v5918
    %v5920 = vsel %vm5873, %v5640, %v5919
    %v5921 = vsel %vm5875, %v5659, %v5920
    %v5922 = vsel %vm5877, %v5678, %v5921
    %v5923 = vsel %vm5879, %v5697, %v5922
    %v5924 = vsel %vm5881, %v5716, %v5923
    %v5925 = vsel %vm5869, %v5754, %v5735
    %v5926 = vsel %vm5871, %v5773, %v5925
    %v5927 = vsel %vm5873, %v5792, %v5926
    %v5928 = vsel %vm5875, %v5811, %v5927
    %v5929 = vsel %vm5877, %v5830, %v5928
    %v5930 = vsel %vm5879, %v5849, %v5929
    %v5931 = vsel %vm5881, %v5868, %v5930
    %v5940 = vsel %vm4381, %v5882, 0.0
    %v5941 = vsel %vm4382, %v5889, 0.0
    %v5942 = vsel %vm4383, %v5896, 0.0
    %v5943 = vsel %vm4384, %v5903, 0.0
    %v5944 = vsel %vm4385, %v5910, 0.0
    %v5945 = vsel %vm4386, %v5917, 0.0
    %v5946 = vsel %vm4387, %v5924, 0.0
    %v5947 = vsel %vm4388, %v5931, 0.0
    %5948 = vst.msk [vmem:[#allocation9] sm:$0xff] %vm82, %v5940
    %5949 = vst.msk [vmem:[#allocation9 + $0x8] sm:$0xff] %vm82, %v5941
    %5950 = vst.msk [vmem:[#allocation9 + $0x10] sm:$0xff] %vm82, %v5942
    %5951 = vst.msk [vmem:[#allocation9 + $0x18] sm:$0xff] %vm82, %v5943
    %5952 = vst.msk [vmem:[#allocation9 + $0x20] sm:$0xff] %vm82, %v5944
    %5953 = vst.msk [vmem:[#allocation9 + $0x28] sm:$0xff] %vm82, %v5945
    %5954 = vst.msk [vmem:[#allocation9 + $0x30] sm:$0xff] %vm82, %v5946
    %5955 = vst.msk [vmem:[#allocation9 + $0x38] sm:$0xff] %vm82, %v5947
    // Predicated region
    $region38: #{tpu_custom_call.1} parent=1 // pred_check
      _
    $region39: #{tpu_custom_call.1} parent=1 // pred_check_branch
      %5957 = sbr.rel (0) target = $region41
    $region40: #{tpu_custom_call.1} parent=1 // pred_region
      %s5959 = ssub.s32 1024, 1024
      %5960 = vsyncadd [#allocation5], %s5959
      %s5961 = sshll.u32 [#allocation9], 4
      %s5962 = int_to_ptr.vmem [resolvable:$true] %s5961
      %5967 = dma.vmem_to_hbm [thread:$0]  %s5962, 1024, %s6, [#allocation5], 128, 128, 8
    $region41: #{tpu_custom_call.1} parent=1 // pred_fallthru
      _
    // Predicated region
    $region42: #{tpu_custom_call.1} parent=1 // pred_check
      _
    $region43: #{tpu_custom_call.1} parent=1 // pred_check_branch
      %5969 = sbr.rel (0) target = $region45
    $region44: #{tpu_custom_call.1} parent=1 // pred_region
      %5970 = dma.done [#allocation5], 1024
    $region45: #{tpu_custom_call.1} parent=1 // pred_fallthru
      _
    %5971 = vsyncpa [#allocation4], 1
    %5972 = vsyncpa [#allocation7], 1
    %5973 = vsyncpa [#allocation5], 1

</llo_original>
